<compile_context>
chip_gen: v7x
topology: tpu7x:2x2x1
jax: 0.10.0
libtpu: 0.0.40
codegen_flags: <defaults>
</compile_context>

<pallas_src>
import functools

import numpy as np
import jax
import jax.numpy as jnp
from jax.experimental import pallas as pl
from jax.experimental.pallas import tpu as pltpu


# ----------------------------------------------------------------------------
# Tiling helpers
# ----------------------------------------------------------------------------
def _round_up(a, b):
    return (a + b - 1) // b * b


def _pick_row_tile(R, widths):
    """Row tile for row-parallel matmul kernels.

    Large enough to approach the HBM roofline (up to 512 rows), small enough
    that the double-buffered activations stay far below the scoped VMEM limit
    on every generation (v7x only has 64 MiB physical VMEM), and small enough
    that the parallel grid has >= 4 steps when possible (v7x: 2 TensorCores).
    """
    budget = 8 * 1024 * 1024                   # bytes for row-tiled activations
    per_row = 4 * 2 * max(1, sum(widths))      # f32, double-buffered
    cap = max(8, (budget // per_row) // 8 * 8)
    tr = min(512, cap, max(128, _round_up(pl.cdiv(R, 8), 8)))
    return max(8, min(tr, _round_up(R, 8)))


def _pick_mode_block(K):
    """Largest mode-block size that still leaves >= 4 grid steps (if possible)."""
    for kb in range(K, 0, -1):
        if K % kb == 0 and K // kb >= 4:
            return kb
    return 1


_COMPILER_PARAMS = pltpu.CompilerParams(dimension_semantics=("parallel",))


# ----------------------------------------------------------------------------
# Pallas kernels
# ----------------------------------------------------------------------------
def _linear_kernel(x_ref, w_ref, b_ref, o_ref, *, relu):
    y = jnp.dot(x_ref[...], w_ref[...], preferred_element_type=jnp.float32)
    y = y + b_ref[...]
    if relu:
        y = jnp.maximum(y, 0.0)
    o_ref[...] = y.astype(o_ref.dtype)


def pallas_linear(x2d, w, b, relu=False):
    """y = x2d @ w + b (optionally ReLU).  x2d: (R, Cin), w: (Cin, Cout)."""
    R, Cin = x2d.shape
    Cout = w.shape[1]
    tr = _pick_row_tile(R, (Cin, Cout))
    return pl.pallas_call(
        functools.partial(_linear_kernel, relu=relu),
        out_shape=jax.ShapeDtypeStruct((R, Cout), x2d.dtype),
        grid_spec=pltpu.PrefetchScalarGridSpec(
            num_scalar_prefetch=0,
            grid=(pl.cdiv(R, tr),),
            in_specs=[
                pl.BlockSpec((tr, Cin), lambda i: (i, 0)),
                pl.BlockSpec((Cin, Cout), lambda i: (0, 0)),
                pl.BlockSpec((1, Cout), lambda i: (0, 0)),
            ],
            out_specs=pl.BlockSpec((tr, Cout), lambda i: (i, 0)),
        ),
        compiler_params=_COMPILER_PARAMS,
    )(x2d, w, b.reshape(1, Cout))


def _ffn_res_kernel(x_ref, w1_ref, b1_ref, w2_ref, b2_ref, r_ref, o_ref):
    # res + Linear(ReLU(Linear(x))): hidden activation stays in VMEM.
    h = jnp.dot(x_ref[...], w1_ref[...], preferred_element_type=jnp.float32)
    h = jnp.maximum(h + b1_ref[...], 0.0)
    y = jnp.dot(h, w2_ref[...], preferred_element_type=jnp.float32) + b2_ref[...]
    o_ref[...] = (y + r_ref[...]).astype(o_ref.dtype)


def pallas_ffn_residual(xf2d, res2d, w1, b1, w2, b2):
    """Fused 2-layer feed-forward + residual add over row tiles."""
    R, Cin = xf2d.shape
    H = w1.shape[1]
    Cout = w2.shape[1]
    tr = _pick_row_tile(R, (Cin, H, 2 * Cout))
    return pl.pallas_call(
        _ffn_res_kernel,
        out_shape=jax.ShapeDtypeStruct((R, Cout), xf2d.dtype),
        grid_spec=pltpu.PrefetchScalarGridSpec(
            num_scalar_prefetch=0,
            grid=(pl.cdiv(R, tr),),
            in_specs=[
                pl.BlockSpec((tr, Cin), lambda i: (i, 0)),
                pl.BlockSpec((Cin, H), lambda i: (0, 0)),
                pl.BlockSpec((1, H), lambda i: (0, 0)),
                pl.BlockSpec((H, Cout), lambda i: (0, 0)),
                pl.BlockSpec((1, Cout), lambda i: (0, 0)),
                pl.BlockSpec((tr, Cout), lambda i: (i, 0)),
            ],
            out_specs=pl.BlockSpec((tr, Cout), lambda i: (i, 0)),
        ),
        compiler_params=_COMPILER_PARAMS,
    )(xf2d, w1, b1.reshape(1, H), w2, b2.reshape(1, Cout), res2d)


def _heads_kernel(x_ref, wo1_ref, bo1_ref, wo2_ref, bo2_ref,
                  wr1_ref, br1_ref, wr2_ref, br2_ref, fo_ref, ro_ref):
    # Both heads (out: width->128->output_dim, res_out: width->128->width)
    # share the single x load; the 128-wide hidden stays in VMEM.
    x = x_ref[...]
    ho = jnp.dot(x, wo1_ref[...], preferred_element_type=jnp.float32) + bo1_ref[...]
    fo = jnp.dot(ho, wo2_ref[...], preferred_element_type=jnp.float32) + bo2_ref[...]
    fo_ref[...] = fo.astype(fo_ref.dtype)
    hr = jnp.dot(x, wr1_ref[...], preferred_element_type=jnp.float32) + br1_ref[...]
    ro = jnp.dot(hr, wr2_ref[...], preferred_element_type=jnp.float32) + br2_ref[...]
    ro_ref[...] = ro.astype(ro_ref.dtype)


def pallas_dual_head(x2d, out_p, res_p):
    R, Cin = x2d.shape
    wo1, bo1 = out_p[0]['w'], out_p[0]['b']
    wo2, bo2 = out_p[1]['w'], out_p[1]['b']
    wr1, br1 = res_p[0]['w'], res_p[0]['b']
    wr2, br2 = res_p[1]['w'], res_p[1]['b']
    Ho, Co = wo1.shape[1], wo2.shape[1]
    Hr, Cr = wr1.shape[1], wr2.shape[1]
    tr = _pick_row_tile(R, (Cin, Ho, Hr, Co, Cr))

    def full(shp):
        return pl.BlockSpec(shp, lambda i: (0,) * len(shp))

    return pl.pallas_call(
        _heads_kernel,
        out_shape=(jax.ShapeDtypeStruct((R, Co), x2d.dtype),
                   jax.ShapeDtypeStruct((R, Cr), x2d.dtype)),
        grid_spec=pltpu.PrefetchScalarGridSpec(
            num_scalar_prefetch=0,
            grid=(pl.cdiv(R, tr),),
            in_specs=[
                pl.BlockSpec((tr, Cin), lambda i: (i, 0)),
                full((Cin, Ho)), full((1, Ho)), full((Ho, Co)), full((1, Co)),
                full((Cin, Hr)), full((1, Hr)), full((Hr, Cr)), full((1, Cr)),
            ],
            out_specs=(pl.BlockSpec((tr, Co), lambda i: (i, 0)),
                       pl.BlockSpec((tr, Cr), lambda i: (i, 0))),
        ),
        compiler_params=_COMPILER_PARAMS,
    )(x2d, wo1, bo1.reshape(1, Ho), wo2, bo2.reshape(1, Co),
      wr1, br1.reshape(1, Hr), wr2, br2.reshape(1, Cr))


def _cmix_kernel(x_ref, w_ref, o_ref):
    # Stacked complex matmul per Fourier mode:
    #   [xr | xi] @ [[wr, wi], [-wi, wr]] = [or | oi]
    # one MXU contraction with K=2*Cin, N=2*Cout instead of 4 narrow dots.
    o_ref[...] = jnp.einsum('krc,kcd->krd', x_ref[...], w_ref[...],
                            preferred_element_type=jnp.float32).astype(o_ref.dtype)


def pallas_spectral_mix(xs, ws):
    """xs: (K, R, 2*Cin) stacked [real|imag] spectra; ws: (K, 2*Cin, 2*Cout)."""
    K, R, C2 = xs.shape
    D2 = ws.shape[-1]
    kb = _pick_mode_block(K)
    return pl.pallas_call(
        _cmix_kernel,
        out_shape=jax.ShapeDtypeStruct((K, R, D2), xs.dtype),
        grid_spec=pltpu.PrefetchScalarGridSpec(
            num_scalar_prefetch=0,
            grid=(K // kb,),
            in_specs=[pl.BlockSpec((kb, R, C2), lambda k: (k, 0, 0)),
                      pl.BlockSpec((kb, C2, D2), lambda k: (k, 0, 0))],
            out_specs=pl.BlockSpec((kb, R, D2), lambda k: (k, 0, 0)),
        ),
        compiler_params=_COMPILER_PARAMS,
    )(xs, ws)


# ----------------------------------------------------------------------------
# Model forward (JAX glue around the Pallas kernels)
# ----------------------------------------------------------------------------
def stack_fourier_weights(fourier_weights):
    """Pre-pack the 4 (Cin, Cout, modes, 2) Fourier weights into the two
    per-direction stacked real matrices used by the Pallas kernel."""
    def per(w):
        wr = jnp.transpose(w[..., 0], (2, 0, 1))        # (modes, Cin, Cout)
        wi = jnp.transpose(w[..., 1], (2, 0, 1))
        top = jnp.concatenate([wr, wi], axis=-1)        # (modes, Cin, 2*Cout)
        bot = jnp.concatenate([-wi, wr], axis=-1)
        return jnp.concatenate([top, bot], axis=-2)     # (modes, 2*Cin, 2*Cout)
    w_y = jnp.concatenate([per(fourier_weights[0]), per(fourier_weights[2])], axis=0)
    w_x = jnp.concatenate([per(fourier_weights[1]), per(fourier_weights[3])], axis=0)
    return w_y, w_x


def _mix_modes(sel_c, w_stacked, Cout):
    """sel_c: (K, R, Cin) complex slab; w_stacked: (K, 2*Cin, 2*Cout)."""
    xs = jnp.concatenate([sel_c.real, sel_c.imag], axis=-1)   # (K, R, 2*Cin)
    mixed = pallas_spectral_mix(xs, w_stacked)                # (K, R, 2*Cout)
    return mixed[..., :Cout] + 1j * mixed[..., Cout:]


def forward_fourier(x, w_y, w_x, modes):
    """DecomSpectralConv2d.forward_fourier (mode='full'), channels-last.

    x: (B, M, N, C);  w_y/w_x: (2*modes, 2*C, 2*Cout) stacked [low; high]."""
    B, M, N, C = x.shape
    Cout = w_y.shape[-1] // 2
    K = 2 * modes

    # ---- FFT along last spatial dim (N) ----
    x_fty = jnp.fft.rfft(x, axis=2, norm='ortho')              # (B, M, Kf, C)
    Kf = N // 2 + 1
    sel = jnp.concatenate([x_fty[:, :, :modes, :],
                           x_fty[:, :, Kf - modes:, :]], axis=2)   # (B, M, K, C)
    sel = jnp.transpose(sel, (2, 0, 1, 3)).reshape(K, B * M, C)
    mixed = _mix_modes(sel, w_y, Cout)                         # (K, B*M, Cout)
    mixed = jnp.transpose(mixed.reshape(K, B, M, Cout), (1, 2, 0, 3))
    out_ft = jnp.zeros((B, M, Kf, Cout), dtype=x_fty.dtype)
    out_ft = out_ft.at[:, :, :modes, :].set(mixed[:, :, :modes, :])
    out_ft = out_ft.at[:, :, Kf - modes:, :].set(mixed[:, :, modes:, :])
    xy = jnp.fft.irfft(out_ft, n=N, axis=2, norm='ortho')

    # ---- FFT along second spatial dim (M) ----
    x_ftx = jnp.fft.rfft(x, axis=1, norm='ortho')              # (B, Kfx, N, C)
    Kfx = M // 2 + 1
    sel = jnp.concatenate([x_ftx[:, :modes, :, :],
                           x_ftx[:, Kfx - modes:, :, :]], axis=1)  # (B, K, N, C)
    sel = jnp.transpose(sel, (1, 0, 2, 3)).reshape(K, B * N, C)
    mixed = _mix_modes(sel, w_x, Cout)                         # (K, B*N, Cout)
    mixed = jnp.transpose(mixed.reshape(K, B, N, Cout), (1, 0, 2, 3))
    out_ft = jnp.zeros((B, Kfx, N, Cout), dtype=x_ftx.dtype)
    out_ft = out_ft.at[:, :modes, :, :].set(mixed[:, :modes, :, :])
    out_ft = out_ft.at[:, Kfx - modes:, :, :].set(mixed[:, modes:, :, :])
    xx = jnp.fft.irfft(out_ft, n=M, axis=1, norm='ortho')

    return xx + xy                                             # (B, M, N, Cout)


def feed_forward(x2d, ffn_params):
    """Generic fallback: Linear -> ReLU -> ... -> Linear (no LN, dropout=0)."""
    n = len(ffn_params)
    y = x2d
    for i, p in enumerate(ffn_params):
        y = pallas_linear(y, p['w'], p['b'], relu=(i < n - 1))
    return y


def fno_block_forward(x, params, *, modes):
    """FNOFactorizedBlock2D.forward (use_fork=False, grid=None)."""
    B, M, N, Din = x.shape
    width = params['in_proj']['w'].shape[1]
    R = B * M * N

    # Pre-pack Fourier weights once, outside the per-layer loop.
    packed = [stack_fourier_weights(layer['fourier']) for layer in params['layers']]

    x2d = pallas_linear(x.reshape(R, Din),
                        params['in_proj']['w'], params['in_proj']['b'])
    x = x2d.reshape(B, M, N, width)

    for layer, (w_y, w_x) in zip(params['layers'], packed):
        xf = forward_fourier(x, w_y, w_x, modes)
        ff = layer['backcast_ff']
        if len(ff) == 2:
            # Fused Linear -> ReLU -> Linear + residual add (one HBM pass).
            x2d = pallas_ffn_residual(xf.reshape(R, width), x.reshape(R, width),
                                      ff[0]['w'], ff[0]['b'],
                                      ff[1]['w'], ff[1]['b'])
            x = x2d.reshape(B, M, N, width)
        else:
            b2d = feed_forward(xf.reshape(R, width), ff)
            x = x + b2d.reshape(B, M, N, width)

    # Both heads fused in one kernel sharing the x load.
    forecast2d, res2d = pallas_dual_head(x.reshape(R, width),
                                         params['out'], params['res_out'])
    forecast = forecast2d.reshape(B, M, N, -1)[..., None, :]   # unsqueeze(-2)
    res_out = res2d.reshape(B, M, N, width)
    signal_out = x
    return forecast, res_out, signal_out


# ----------------------------------------------------------------------------
# Deterministic parameter initialization (matches the module's shapes)
# ----------------------------------------------------------------------------
def init_params(key, modes, width, input_dim, output_dim, n_layers,
                factor=2, n_ff_layers=2):
    keys = iter(jax.random.split(key, 256))

    def linear(in_f, out_f):
        k1, k2 = jax.random.split(next(keys))
        bound = 1.0 / np.sqrt(in_f)
        return {'w': jax.random.uniform(k1, (in_f, out_f), jnp.float32, -bound, bound),
                'b': jax.random.uniform(k2, (out_f,), jnp.float32, -bound, bound)}

    def xavier_fourier():
        # torch xavier_normal_ on (in_dim, out_dim, modes, 2)
        fan_in = width * modes * 2
        fan_out = width * modes * 2
        std = float(np.sqrt(2.0 / (fan_in + fan_out)))
        return std * jax.random.normal(next(keys), (width, width, modes, 2), jnp.float32)

    def ffn():
        layers = []
        for i in range(n_ff_layers):
            in_f = width if i == 0 else width * factor
            out_f = width if i == n_ff_layers - 1 else width * factor
            layers.append(linear(in_f, out_f))
        return layers

    return {
        'in_proj': linear(input_dim, width),
        'layers': [{'fourier': [xavier_fourier() for _ in range(4)],
                    'backcast_ff': ffn()} for _ in range(n_layers)],
        'out': [linear(width, 128), linear(128, output_dim)],
        'res_out': [linear(width, 128), linear(128, width)],
    }


# ----------------------------------------------------------------------------
# Pure-JAX reference (mirrors the PyTorch forward) for verification
# ----------------------------------------------------------------------------
def ref_forward(x, params, *, modes):
    hp = jax.lax.Precision.HIGHEST

    def lin(y, p, relu=False):
        y = jnp.einsum('...i,io->...o', y, p['w'], precision=hp) + p['b']
        return jnp.maximum(y, 0.0) if relu else y

    def fourier_ref(x, fw):
        xc = jnp.transpose(x, (0, 3, 1, 2))
        Bc, C, M, N = xc.shape
        x_fty = jnp.fft.rfft(xc, axis=-1, norm='ortho')
        w0 = fw[0][..., 0] + 1j * fw[0][..., 1]
        w2 = fw[2][..., 0] + 1j * fw[2][..., 1]
        out_ft = jnp.zeros_like(x_fty)
        out_ft = out_ft.at[..., :modes].set(
            jnp.einsum('bixy,ioy->boxy', x_fty[..., :modes], w0))
        out_ft = out_ft.at[..., -modes:].set(
            jnp.einsum('bixy,ioy->boxy', x_fty[..., -modes:], w2))
        xy = jnp.fft.irfft(out_ft, n=N, axis=-1, norm='ortho')

        x_ftx = jnp.fft.rfft(xc, axis=-2, norm='ortho')
        w1 = fw[1][..., 0] + 1j * fw[1][..., 1]
        w3 = fw[3][..., 0] + 1j * fw[3][..., 1]
        out_ft = jnp.zeros_like(x_ftx)
        out_ft = out_ft.at[:, :, :modes, :].set(
            jnp.einsum('bixy,iox->boxy', x_ftx[:, :, :modes, :], w1))
        out_ft = out_ft.at[:, :, -modes:, :].set(
            jnp.einsum('bixy,iox->boxy', x_ftx[:, :, -modes:, :], w3))
        xx = jnp.fft.irfft(out_ft, n=M, axis=-2, norm='ortho')
        return jnp.transpose(xx + xy, (0, 2, 3, 1))

    x = lin(x, params['in_proj'])
    for layer in params['layers']:
        h = fourier_ref(x, layer['fourier'])
        nff = len(layer['backcast_ff'])
        for i, p in enumerate(layer['backcast_ff']):
            h = lin(h, p, relu=(i < nff - 1))
        x = x + h
    forecast = lin(lin(x, params['out'][0]), params['out'][1])
    res_out = lin(lin(x, params['res_out'][0]), params['res_out'][1])
    return forecast[..., None, :], res_out, x


# ----------------------------------------------------------------------------
if __name__ == "__main__":
    B, M, N = 2, 16, 16
    input_dim, width, output_dim = 12, 16, 5
    modes, n_layers = 4, 2

    key = jax.random.PRNGKey(0)
    kp, kx = jax.random.split(key)
    params = init_params(kp, modes, width, input_dim, output_dim, n_layers)
    x = jax.random.normal(kx, (B, M, N, input_dim), jnp.float32)

    fwd = jax.jit(lambda xx, pp: fno_block_forward(xx, pp, modes=modes))
    forecast, res_out, signal_out = fwd(x, params)
    jax.block_until_ready((forecast, res_out, signal_out))

    # sanity-check against the pure-JAX reference
    f_ref, r_ref, s_ref = ref_forward(x, params, modes=modes)
    np.testing.assert_allclose(np.asarray(forecast), np.asarray(f_ref),
                               rtol=2e-2, atol=2e-2)
    np.testing.assert_allclose(np.asarray(res_out), np.asarray(r_ref),
                               rtol=2e-2, atol=2e-2)
    np.testing.assert_allclose(np.asarray(signal_out), np.asarray(s_ref),
                               rtol=2e-2, atol=2e-2)

    assert forecast.shape == (B, M, N, 1, output_dim)
    assert res_out.shape == (B, M, N, width)
    assert signal_out.shape == (B, M, N, width)
    print("KERNEL_OK")
</pallas_src>

<mosaic_0001>
module attributes {stable_mosaic.version = 11 : i64} {
  func.func @_linear_kernel(%arg0: i32, %arg1: memref<128x12xf32, #tpu.memory_space<vmem>>, %arg2: memref<12x16xf32, #tpu.memory_space<vmem>>, %arg3: memref<1x16xf32, #tpu.memory_space<vmem>>, %arg4: memref<128x16xf32, #tpu.memory_space<vmem>>) attributes {dimension_semantics = [#tpu.dimension_semantics<parallel>], iteration_bounds = array<i64: 4>, scalar_prefetch = 0 : i64, scratch_operands = 0 : i64, tpu.core_type = #tpu.core_type<tc>, window_params = [{transform_indices = @transform_0, window_bounds = array<i64: 128, 12>}, {pipeline_mode = #tpu.pipeline_mode<synchronous>, transform_indices = @transform_1, window_bounds = array<i64: 12, 16>}, {pipeline_mode = #tpu.pipeline_mode<synchronous>, transform_indices = @transform_2, window_bounds = array<i64: 1, 16>}, {transform_indices = @transform_3, window_bounds = array<i64: 128, 16>}]} {
    %c0 = arith.constant 0 : index
    %c0_0 = arith.constant 0 : index
    %0 = vector.load %arg1[%c0, %c0_0] : memref<128x12xf32, #tpu.memory_space<vmem>>, vector<128x12xf32>
    %c0_1 = arith.constant 0 : index
    %c0_2 = arith.constant 0 : index
    %1 = vector.load %arg2[%c0_1, %c0_2] : memref<12x16xf32, #tpu.memory_space<vmem>>, vector<12x16xf32>
    %cst = arith.constant dense<0.000000e+00> : vector<128x16xf32>
    %2 = tpu.matmul %0, %1, %cst {dimension_numbers = #tpu.dot_dimension_numbers<[1], [0], [0], [1], [0, 0, 1, 1], [], []>} : vector<128x12xf32>, vector<12x16xf32>, vector<128x16xf32> -> vector<128x16xf32>
    %c0_3 = arith.constant 0 : index
    %c0_4 = arith.constant 0 : index
    %3 = vector.load %arg3[%c0_3, %c0_4] : memref<1x16xf32, #tpu.memory_space<vmem>>, vector<1x16xf32>
    %4 = vector.broadcast %3 : vector<1x16xf32> to vector<128x16xf32>
    %5 = arith.addf %2, %4 : vector<128x16xf32>
    %c0_5 = arith.constant 0 : index
    %c0_6 = arith.constant 0 : index
    %6 = vector.load %arg4[%c0_5, %c0_6] : memref<128x16xf32, #tpu.memory_space<vmem>>, vector<128x16xf32>
    tpu.vector_store %arg4[%c0_5, %c0_6], %5 {strides = array<i32>} : memref<128x16xf32, #tpu.memory_space<vmem>>, vector<128x16xf32>,
    return
  }
  func.func @transform_0(%arg0: i32) -> (i32, i32) {
    %c0_i32 = arith.constant 0 : i32
    %c0_i32_0 = arith.constant 0 : i32
    return %arg0, %c0_i32 : i32, i32
  }
  func.func @transform_1(%arg0: i32) -> (i32, i32) {
    %c0_i32 = arith.constant 0 : i32
    %c0_i32_0 = arith.constant 0 : i32
    %c0_i32_1 = arith.constant 0 : i32
    return %c0_i32, %c0_i32_0 : i32, i32
  }
  func.func @transform_2(%arg0: i32) -> (i32, i32) {
    %c0_i32 = arith.constant 0 : i32
    %c0_i32_0 = arith.constant 0 : i32
    %c0_i32_1 = arith.constant 0 : i32
    return %c0_i32, %c0_i32_0 : i32, i32
  }
  func.func @transform_3(%arg0: i32) -> (i32, i32) {
    %c0_i32 = arith.constant 0 : i32
    %c0_i32_0 = arith.constant 0 : i32
    return %arg0, %c0_i32 : i32, i32
  }
}

module attributes {stable_mosaic.version = 11 : i64} {
  func.func @_cmix_kernel(%arg0: i32, %arg1: memref<2x32x32xf32, #tpu.memory_space<vmem>>, %arg2: memref<2x32x32xf32, #tpu.memory_space<vmem>>, %arg3: memref<2x32x32xf32, #tpu.memory_space<vmem>>) attributes {dimension_semantics = [#tpu.dimension_semantics<parallel>], iteration_bounds = array<i64: 4>, scalar_prefetch = 0 : i64, scratch_operands = 0 : i64, tpu.core_type = #tpu.core_type<tc>, window_params = [{transform_indices = @transform_0, window_bounds = array<i64: 2, 32, 32>}, {transform_indices = @transform_1, window_bounds = array<i64: 2, 32, 32>}, {transform_indices = @transform_2, window_bounds = array<i64: 2, 32, 32>}]} {
    %c0 = arith.constant 0 : index
    %c0_0 = arith.constant 0 : index
    %c0_1 = arith.constant 0 : index
    %0 = vector.load %arg1[%c0, %c0_0, %c0_1] : memref<2x32x32xf32, #tpu.memory_space<vmem>>, vector<2x32x32xf32>
    %c0_2 = arith.constant 0 : index
    %c0_3 = arith.constant 0 : index
    %c0_4 = arith.constant 0 : index
    %1 = vector.load %arg2[%c0_2, %c0_3, %c0_4] : memref<2x32x32xf32, #tpu.memory_space<vmem>>, vector<2x32x32xf32>
    "tpu.trace_start"() <{level = 10 : i32, message = "krc,kcd->krd"}> : () -> ()
    %cst = arith.constant dense<0.000000e+00> : vector<2x32x32xf32>
    %2 = tpu.matmul %0, %1, %cst {dimension_numbers = #tpu.dot_dimension_numbers<[2], [1], [1], [2], [0, 0, 0, 1, 1, 2], [0], [0]>} : vector<2x32x32xf32>, vector<2x32x32xf32>, vector<2x32x32xf32> -> vector<2x32x32xf32>
    "tpu.trace_stop"() : () -> ()
    %c0_5 = arith.constant 0 : index
    %c0_6 = arith.constant 0 : index
    %c0_7 = arith.constant 0 : index
    %3 = vector.load %arg3[%c0_5, %c0_6, %c0_7] : memref<2x32x32xf32, #tpu.memory_space<vmem>>, vector<2x32x32xf32>
    tpu.vector_store %arg3[%c0_5, %c0_6, %c0_7], %2 {strides = array<i32>} : memref<2x32x32xf32, #tpu.memory_space<vmem>>, vector<2x32x32xf32>,
    return
  }
  func.func @transform_0(%arg0: i32) -> (i32, i32, i32) {
    %c0_i32 = arith.constant 0 : i32
    %c0_i32_0 = arith.constant 0 : i32
    %c0_i32_1 = arith.constant 0 : i32
    return %arg0, %c0_i32, %c0_i32_0 : i32, i32, i32
  }
  func.func @transform_1(%arg0: i32) -> (i32, i32, i32) {
    %c0_i32 = arith.constant 0 : i32
    %c0_i32_0 = arith.constant 0 : i32
    %c0_i32_1 = arith.constant 0 : i32
    return %arg0, %c0_i32, %c0_i32_0 : i32, i32, i32
  }
  func.func @transform_2(%arg0: i32) -> (i32, i32, i32) {
    %c0_i32 = arith.constant 0 : i32
    %c0_i32_0 = arith.constant 0 : i32
    %c0_i32_1 = arith.constant 0 : i32
    return %arg0, %c0_i32, %c0_i32_0 : i32, i32, i32
  }
}

module attributes {stable_mosaic.version = 11 : i64} {
  func.func @_ffn_res_kernel(%arg0: i32, %arg1: memref<128x16xf32, #tpu.memory_space<vmem>>, %arg2: memref<16x32xf32, #tpu.memory_space<vmem>>, %arg3: memref<1x32xf32, #tpu.memory_space<vmem>>, %arg4: memref<32x16xf32, #tpu.memory_space<vmem>>, %arg5: memref<1x16xf32, #tpu.memory_space<vmem>>, %arg6: memref<128x16xf32, #tpu.memory_space<vmem>>, %arg7: memref<128x16xf32, #tpu.memory_space<vmem>>) attributes {dimension_semantics = [#tpu.dimension_semantics<parallel>], iteration_bounds = array<i64: 4>, scalar_prefetch = 0 : i64, scratch_operands = 0 : i64, tpu.core_type = #tpu.core_type<tc>, window_params = [{transform_indices = @transform_0, window_bounds = array<i64: 128, 16>}, {pipeline_mode = #tpu.pipeline_mode<synchronous>, transform_indices = @transform_1, window_bounds = array<i64: 16, 32>}, {pipeline_mode = #tpu.pipeline_mode<synchronous>, transform_indices = @transform_2, window_bounds = array<i64: 1, 32>}, {pipeline_mode = #tpu.pipeline_mode<synchronous>, transform_indices = @transform_3, window_bounds = array<i64: 32, 16>}, {pipeline_mode = #tpu.pipeline_mode<synchronous>, transform_indices = @transform_4, window_bounds = array<i64: 1, 16>}, {transform_indices = @transform_5, window_bounds = array<i64: 128, 16>}, {transform_indices = @transform_6, window_bounds = array<i64: 128, 16>}]} {
    %c0 = arith.constant 0 : index
    %c0_0 = arith.constant 0 : index
    %0 = vector.load %arg1[%c0, %c0_0] : memref<128x16xf32, #tpu.memory_space<vmem>>, vector<128x16xf32>
    %c0_1 = arith.constant 0 : index
    %c0_2 = arith.constant 0 : index
    %1 = vector.load %arg2[%c0_1, %c0_2] : memref<16x32xf32, #tpu.memory_space<vmem>>, vector<16x32xf32>
    %cst = arith.constant dense<0.000000e+00> : vector<128x32xf32>
    %2 = tpu.matmul %0, %1, %cst {dimension_numbers = #tpu.dot_dimension_numbers<[1], [0], [0], [1], [0, 0, 1, 1], [], []>} : vector<128x16xf32>, vector<16x32xf32>, vector<128x32xf32> -> vector<128x32xf32>
    %c0_3 = arith.constant 0 : index
    %c0_4 = arith.constant 0 : index
    %3 = vector.load %arg3[%c0_3, %c0_4] : memref<1x32xf32, #tpu.memory_space<vmem>>, vector<1x32xf32>
    %4 = vector.broadcast %3 : vector<1x32xf32> to vector<128x32xf32>
    %5 = arith.addf %2, %4 : vector<128x32xf32>
    %cst_5 = arith.constant 0.000000e+00 : f32
    %6 = vector.broadcast %cst_5 : f32 to vector<128x32xf32>
    %7 = arith.maximumf %5, %6 : vector<128x32xf32>
    %c0_6 = arith.constant 0 : index
    %c0_7 = arith.constant 0 : index
    %8 = vector.load %arg4[%c0_6, %c0_7] : memref<32x16xf32, #tpu.memory_space<vmem>>, vector<32x16xf32>
    %cst_8 = arith.constant dense<0.000000e+00> : vector<128x16xf32>
    %9 = tpu.matmul %7, %8, %cst_8 {dimension_numbers = #tpu.dot_dimension_numbers<[1], [0], [0], [1], [0, 0, 1, 1], [], []>} : vector<128x32xf32>, vector<32x16xf32>, vector<128x16xf32> -> vector<128x16xf32>
    %c0_9 = arith.constant 0 : index
    %c0_10 = arith.constant 0 : index
    %10 = vector.load %arg5[%c0_9, %c0_10] : memref<1x16xf32, #tpu.memory_space<vmem>>, vector<1x16xf32>
    %11 = vector.broadcast %10 : vector<1x16xf32> to vector<128x16xf32>
    %12 = arith.addf %9, %11 : vector<128x16xf32>
    %c0_11 = arith.constant 0 : index
    %c0_12 = arith.constant 0 : index
    %13 = vector.load %arg6[%c0_11, %c0_12] : memref<128x16xf32, #tpu.memory_space<vmem>>, vector<128x16xf32>
    %14 = arith.addf %12, %13 : vector<128x16xf32>
    %c0_13 = arith.constant 0 : index
    %c0_14 = arith.constant 0 : index
    %15 = vector.load %arg7[%c0_13, %c0_14] : memref<128x16xf32, #tpu.memory_space<vmem>>, vector<128x16xf32>
    tpu.vector_store %arg7[%c0_13, %c0_14], %14 {strides = array<i32>} : memref<128x16xf32, #tpu.memory_space<vmem>>, vector<128x16xf32>,
    return
  }
  func.func @transform_0(%arg0: i32) -> (i32, i32) {
    %c0_i32 = arith.constant 0 : i32
    %c0_i32_0 = arith.constant 0 : i32
    return %arg0, %c0_i32 : i32, i32
  }
  func.func @transform_1(%arg0: i32) -> (i32, i32) {
    %c0_i32 = arith.constant 0 : i32
    %c0_i32_0 = arith.constant 0 : i32
    %c0_i32_1 = arith.constant 0 : i32
    return %c0_i32, %c0_i32_0 : i32, i32
  }
  func.func @transform_2(%arg0: i32) -> (i32, i32) {
    %c0_i32 = arith.constant 0 : i32
    %c0_i32_0 = arith.constant 0 : i32
    %c0_i32_1 = arith.constant 0 : i32
    return %c0_i32, %c0_i32_0 : i32, i32
  }
  func.func @transform_3(%arg0: i32) -> (i32, i32) {
    %c0_i32 = arith.constant 0 : i32
    %c0_i32_0 = arith.constant 0 : i32
    %c0_i32_1 = arith.constant 0 : i32
    return %c0_i32, %c0_i32_0 : i32, i32
  }
  func.func @transform_4(%arg0: i32) -> (i32, i32) {
    %c0_i32 = arith.constant 0 : i32
    %c0_i32_0 = arith.constant 0 : i32
    %c0_i32_1 = arith.constant 0 : i32
    return %c0_i32, %c0_i32_0 : i32, i32
  }
  func.func @transform_5(%arg0: i32) -> (i32, i32) {
    %c0_i32 = arith.constant 0 : i32
    %c0_i32_0 = arith.constant 0 : i32
    return %arg0, %c0_i32 : i32, i32
  }
  func.func @transform_6(%arg0: i32) -> (i32, i32) {
    %c0_i32 = arith.constant 0 : i32
    %c0_i32_0 = arith.constant 0 : i32
    return %arg0, %c0_i32 : i32, i32
  }
}

module attributes {stable_mosaic.version = 11 : i64} {
  func.func @_heads_kernel(%arg0: i32, %arg1: memref<128x16xf32, #tpu.memory_space<vmem>>, %arg2: memref<16x128xf32, #tpu.memory_space<vmem>>, %arg3: memref<1x128xf32, #tpu.memory_space<vmem>>, %arg4: memref<128x5xf32, #tpu.memory_space<vmem>>, %arg5: memref<1x5xf32, #tpu.memory_space<vmem>>, %arg6: memref<16x128xf32, #tpu.memory_space<vmem>>, %arg7: memref<1x128xf32, #tpu.memory_space<vmem>>, %arg8: memref<128x16xf32, #tpu.memory_space<vmem>>, %arg9: memref<1x16xf32, #tpu.memory_space<vmem>>, %arg10: memref<128x5xf32, #tpu.memory_space<vmem>>, %arg11: memref<128x16xf32, #tpu.memory_space<vmem>>) attributes {dimension_semantics = [#tpu.dimension_semantics<parallel>], iteration_bounds = array<i64: 4>, scalar_prefetch = 0 : i64, scratch_operands = 0 : i64, tpu.core_type = #tpu.core_type<tc>, window_params = [{transform_indices = @transform_0, window_bounds = array<i64: 128, 16>}, {pipeline_mode = #tpu.pipeline_mode<synchronous>, transform_indices = @transform_1, window_bounds = array<i64: 16, 128>}, {pipeline_mode = #tpu.pipeline_mode<synchronous>, transform_indices = @transform_2, window_bounds = array<i64: 1, 128>}, {pipeline_mode = #tpu.pipeline_mode<synchronous>, transform_indices = @transform_3, window_bounds = array<i64: 128, 5>}, {pipeline_mode = #tpu.pipeline_mode<synchronous>, transform_indices = @transform_4, window_bounds = array<i64: 1, 5>}, {pipeline_mode = #tpu.pipeline_mode<synchronous>, transform_indices = @transform_5, window_bounds = array<i64: 16, 128>}, {pipeline_mode = #tpu.pipeline_mode<synchronous>, transform_indices = @transform_6, window_bounds = array<i64: 1, 128>}, {pipeline_mode = #tpu.pipeline_mode<synchronous>, transform_indices = @transform_7, window_bounds = array<i64: 128, 16>}, {pipeline_mode = #tpu.pipeline_mode<synchronous>, transform_indices = @transform_8, window_bounds = array<i64: 1, 16>}, {transform_indices = @transform_9, window_bounds = array<i64: 128, 5>}, {transform_indices = @transform_10, window_bounds = array<i64: 128, 16>}]} {
    %c0 = arith.constant 0 : index
    %c0_0 = arith.constant 0 : index
    %0 = vector.load %arg1[%c0, %c0_0] : memref<128x16xf32, #tpu.memory_space<vmem>>, vector<128x16xf32>
    %c0_1 = arith.constant 0 : index
    %c0_2 = arith.constant 0 : index
    %1 = vector.load %arg2[%c0_1, %c0_2] : memref<16x128xf32, #tpu.memory_space<vmem>>, vector<16x128xf32>
    %cst = arith.constant dense<0.000000e+00> : vector<128x128xf32>
    %2 = tpu.matmul %0, %1, %cst {dimension_numbers = #tpu.dot_dimension_numbers<[1], [0], [0], [1], [0, 0, 1, 1], [], []>} : vector<128x16xf32>, vector<16x128xf32>, vector<128x128xf32> -> vector<128x128xf32>
    %c0_3 = arith.constant 0 : index
    %c0_4 = arith.constant 0 : index
    %3 = vector.load %arg3[%c0_3, %c0_4] : memref<1x128xf32, #tpu.memory_space<vmem>>, vector<1x128xf32>
    %4 = vector.broadcast %3 : vector<1x128xf32> to vector<128x128xf32>
    %5 = arith.addf %2, %4 : vector<128x128xf32>
    %c0_5 = arith.constant 0 : index
    %c0_6 = arith.constant 0 : index
    %6 = vector.load %arg4[%c0_5, %c0_6] : memref<128x5xf32, #tpu.memory_space<vmem>>, vector<128x5xf32>
    %cst_7 = arith.constant dense<0.000000e+00> : vector<128x5xf32>
    %7 = tpu.matmul %5, %6, %cst_7 {dimension_numbers = #tpu.dot_dimension_numbers<[1], [0], [0], [1], [0, 0, 1, 1], [], []>} : vector<128x128xf32>, vector<128x5xf32>, vector<128x5xf32> -> vector<128x5xf32>
    %c0_8 = arith.constant 0 : index
    %c0_9 = arith.constant 0 : index
    %8 = vector.load %arg5[%c0_8, %c0_9] : memref<1x5xf32, #tpu.memory_space<vmem>>, vector<1x5xf32>
    %9 = vector.broadcast %8 : vector<1x5xf32> to vector<128x5xf32>
    %10 = arith.addf %7, %9 : vector<128x5xf32>
    %c0_10 = arith.constant 0 : index
    %c0_11 = arith.constant 0 : index
    %11 = vector.load %arg10[%c0_10, %c0_11] : memref<128x5xf32, #tpu.memory_space<vmem>>, vector<128x5xf32>
    tpu.vector_store %arg10[%c0_10, %c0_11], %10 {strides = array<i32>} : memref<128x5xf32, #tpu.memory_space<vmem>>, vector<128x5xf32>,
    %c0_12 = arith.constant 0 : index
    %c0_13 = arith.constant 0 : index
    %12 = vector.load %arg6[%c0_12, %c0_13] : memref<16x128xf32, #tpu.memory_space<vmem>>, vector<16x128xf32>
    %cst_14 = arith.constant dense<0.000000e+00> : vector<128x128xf32>
    %13 = tpu.matmul %0, %12, %cst_14 {dimension_numbers = #tpu.dot_dimension_numbers<[1], [0], [0], [1], [0, 0, 1, 1], [], []>} : vector<128x16xf32>, vector<16x128xf32>, vector<128x128xf32> -> vector<128x128xf32>
    %c0_15 = arith.constant 0 : index
    %c0_16 = arith.constant 0 : index
    %14 = vector.load %arg7[%c0_15, %c0_16] : memref<1x128xf32, #tpu.memory_space<vmem>>, vector<1x128xf32>
    %15 = vector.broadcast %14 : vector<1x128xf32> to vector<128x128xf32>
    %16 = arith.addf %13, %15 : vector<128x128xf32>
    %c0_17 = arith.constant 0 : index
    %c0_18 = arith.constant 0 : index
    %17 = vector.load %arg8[%c0_17, %c0_18] : memref<128x16xf32, #tpu.memory_space<vmem>>, vector<128x16xf32>
    %cst_19 = arith.constant dense<0.000000e+00> : vector<128x16xf32>
    %18 = tpu.matmul %16, %17, %cst_19 {dimension_numbers = #tpu.dot_dimension_numbers<[1], [0], [0], [1], [0, 0, 1, 1], [], []>} : vector<128x128xf32>, vector<128x16xf32>, vector<128x16xf32> -> vector<128x16xf32>
    %c0_20 = arith.constant 0 : index
    %c0_21 = arith.constant 0 : index
    %19 = vector.load %arg9[%c0_20, %c0_21] : memref<1x16xf32, #tpu.memory_space<vmem>>, vector<1x16xf32>
    %20 = vector.broadcast %19 : vector<1x16xf32> to vector<128x16xf32>
    %21 = arith.addf %18, %20 : vector<128x16xf32>
    %c0_22 = arith.constant 0 : index
    %c0_23 = arith.constant 0 : index
    %22 = vector.load %arg11[%c0_22, %c0_23] : memref<128x16xf32, #tpu.memory_space<vmem>>, vector<128x16xf32>
    tpu.vector_store %arg11[%c0_22, %c0_23], %21 {strides = array<i32>} : memref<128x16xf32, #tpu.memory_space<vmem>>, vector<128x16xf32>,
    return
  }
  func.func @transform_0(%arg0: i32) -> (i32, i32) {
    %c0_i32 = arith.constant 0 : i32
    %c0_i32_0 = arith.constant 0 : i32
    return %arg0, %c0_i32 : i32, i32
  }
  func.func @transform_1(%arg0: i32) -> (i32, i32) {
    %c0_i32 = arith.constant 0 : i32
    %c0_i32_0 = arith.constant 0 : i32
    %c0_i32_1 = arith.constant 0 : i32
    return %c0_i32, %c0_i32_0 : i32, i32
  }
  func.func @transform_2(%arg0: i32) -> (i32, i32) {
    %c0_i32 = arith.constant 0 : i32
    %c0_i32_0 = arith.constant 0 : i32
    %c0_i32_1 = arith.constant 0 : i32
    return %c0_i32, %c0_i32_0 : i32, i32
  }
  func.func @transform_3(%arg0: i32) -> (i32, i32) {
    %c0_i32 = arith.constant 0 : i32
    %c0_i32_0 = arith.constant 0 : i32
    %c0_i32_1 = arith.constant 0 : i32
    return %c0_i32, %c0_i32_0 : i32, i32
  }
  func.func @transform_4(%arg0: i32) -> (i32, i32) {
    %c0_i32 = arith.constant 0 : i32
    %c0_i32_0 = arith.constant 0 : i32
    %c0_i32_1 = arith.constant 0 : i32
    return %c0_i32, %c0_i32_0 : i32, i32
  }
  func.func @transform_5(%arg0: i32) -> (i32, i32) {
    %c0_i32 = arith.constant 0 : i32
    %c0_i32_0 = arith.constant 0 : i32
    %c0_i32_1 = arith.constant 0 : i32
    return %c0_i32, %c0_i32_0 : i32, i32
  }
  func.func @transform_6(%arg0: i32) -> (i32, i32) {
    %c0_i32 = arith.constant 0 : i32
    %c0_i32_0 = arith.constant 0 : i32
    %c0_i32_1 = arith.constant 0 : i32
    return %c0_i32, %c0_i32_0 : i32, i32
  }
  func.func @transform_7(%arg0: i32) -> (i32, i32) {
    %c0_i32 = arith.constant 0 : i32
    %c0_i32_0 = arith.constant 0 : i32
    %c0_i32_1 = arith.constant 0 : i32
    return %c0_i32, %c0_i32_0 : i32, i32
  }
  func.func @transform_8(%arg0: i32) -> (i32, i32) {
    %c0_i32 = arith.constant 0 : i32
    %c0_i32_0 = arith.constant 0 : i32
    %c0_i32_1 = arith.constant 0 : i32
    return %c0_i32, %c0_i32_0 : i32, i32
  }
  func.func @transform_9(%arg0: i32) -> (i32, i32) {
    %c0_i32 = arith.constant 0 : i32
    %c0_i32_0 = arith.constant 0 : i32
    return %arg0, %c0_i32 : i32, i32
  }
  func.func @transform_10(%arg0: i32) -> (i32, i32) {
    %c0_i32 = arith.constant 0 : i32
    %c0_i32_0 = arith.constant 0 : i32
    return %arg0, %c0_i32 : i32, i32
  }
}

</mosaic_0001>

<llo_original>
// kernel: _lambda_.8
$region0: #{_lambda_.8}
  #allocation0 [shape = 'u32[]', space=smem, size = 0x4, offset = 0x4, fixed_abs, tag = 'smem constant byte address 0x4 - core index']
  #allocation1 [shape = 'u32[144,128]{1,0:T(1,128)}', space=vmem, size = 0x12000, scoped, tag = 'internal scratch']
  %s0 = inlined_call_operand.vmem [shape: f32[512,12], index: 0, kind: input, shape index: {}]
  %s1 = inlined_call_operand.vmem [shape: f32[12,16], index: 1, kind: input, shape index: {}]
  %s2 = inlined_call_operand.vmem [shape: f32[1,16], index: 2, kind: input, shape index: {}]
  %s3 = inlined_call_operand.vmem [shape: f32[512,16], index: 3, kind: output, shape index: {}]
  %s4 = sld [smem:[#allocation0]]
  $region45: #{_lambda_.8} parent=0
    _
  %s6 = ssub.s32 1, %s4
  %s7 = scalar_select 0, %s6, %s4
  loop: start=0, step=1, limit=6
  $region2: #{_lambda_.8} parent=0 // loop_pre_header
    _
  $region3: #{_lambda_.8} parent=0 // loop_header
    %s9 = sphi 0, %s13
    %p10 = scmp.ge.s32.totalorder %s9, 6
    %s19 = sphi 0, %s21
    %s22 = sphi 0, %s19
    %s23 = sphi 0, %s22
    %s39 = sphi 0, %s23
    %s43 = sphi 0, %s43
    %s45 = sphi 0, %s43
    %s46 = sphi 0, %s45
    %s60 = sphi 0, %s46
    %s64 = sphi 0, %s64
    %s66 = sphi 0, %s64
    %s67 = sphi 0, %s66
    %s81 = sphi 0, %s67
    %s87 = sphi 0, %s89
    %s90 = sphi 0, %s87
    %s91 = sphi 0, %s90
    %s107 = sphi 0, %s91
  $region4: #{_lambda_.8} parent=0 // loop_header_branch
    %12 = sbr.rel (%p10) target = $region8
  $region5: #{_lambda_.8} parent=0 // loop_body
    %s14 = ssub.s32 %s9, 1
    %s15 = ssub.s32 %s9, 2
    %s16 = sadd.s32 %s9, 1
    %s17 = ssub.s32 %s9, %s16
    %p18 = scmp.eq.s32.totalorder %s17, 0
    %s20 = sadd.s32 %s19, 1
    %s21 = scalar_select %p18, %s19, %s20
    %p24 = pneg %p18
    %p25 = scmp.eq.s32.totalorder %s9, 3
    %p26 = por %p24, %p25
    %p27 = scmp.ne.s32.totalorder %s19, %s22
    %p28 = scmp.eq.s32.totalorder %s9, 0
    %p29 = por %p27, %p28
    %p30 = scmp.ne.s32.totalorder %s19, %s22
    %p31 = scmp.eq.s32.totalorder %s14, 3
    %p32 = por %p30, %p31
    %p33 = scmp.ne.s32.totalorder %s22, %s23
    %p34 = scmp.eq.s32.totalorder %s14, 0
    %p35 = por %p33, %p34
    %p36 = scmp.ne.s32.totalorder %s22, %s23
    %p37 = scmp.eq.s32.totalorder %s15, 3
    %p38 = por %p36, %p37
    %p40 = scmp.ne.s32.totalorder %s23, %s39
    %p41 = scmp.eq.s32.totalorder %s15, 0
    %p42 = por %p40, %p41
    %s44 = sadd.s32 %s43, 1
    %p47 = scmp.eq.s32.totalorder %s9, 3
    %p48 = scmp.ne.s32.totalorder %s43, %s45
    %p49 = scmp.eq.s32.totalorder %s9, 0
    %p50 = por %p48, %p49
    %p51 = scmp.ne.s32.totalorder %s43, %s45
    %p52 = scmp.eq.s32.totalorder %s14, 3
    %p53 = por %p51, %p52
    %p54 = scmp.ne.s32.totalorder %s45, %s46
    %p55 = scmp.eq.s32.totalorder %s14, 0
    %p56 = por %p54, %p55
    %p57 = scmp.ne.s32.totalorder %s45, %s46
    %p58 = scmp.eq.s32.totalorder %s15, 3
    %p59 = por %p57, %p58
    %p61 = scmp.ne.s32.totalorder %s46, %s60
    %p62 = scmp.eq.s32.totalorder %s15, 0
    %p63 = por %p61, %p62
    %s65 = sadd.s32 %s64, 1
    %p68 = scmp.eq.s32.totalorder %s9, 3
    %p69 = scmp.ne.s32.totalorder %s64, %s66
    %p70 = scmp.eq.s32.totalorder %s9, 0
    %p71 = por %p69, %p70
    %p72 = scmp.ne.s32.totalorder %s64, %s66
    %p73 = scmp.eq.s32.totalorder %s14, 3
    %p74 = por %p72, %p73
    %p75 = scmp.ne.s32.totalorder %s66, %s67
    %p76 = scmp.eq.s32.totalorder %s14, 0
    %p77 = por %p75, %p76
    %p78 = scmp.ne.s32.totalorder %s66, %s67
    %p79 = scmp.eq.s32.totalorder %s15, 3
    %p80 = por %p78, %p79
    %p82 = scmp.ne.s32.totalorder %s67, %s81
    %p83 = scmp.eq.s32.totalorder %s15, 0
    %p84 = por %p82, %p83
    %s85 = ssub.s32 %s9, %s16
    %p86 = scmp.eq.s32.totalorder %s85, 0
    %s88 = sadd.s32 %s87, 1
    %s89 = scalar_select %p86, %s87, %s88
    %p92 = pneg %p86
    %p93 = scmp.eq.s32.totalorder %s9, 3
    %p94 = por %p92, %p93
    %p95 = scmp.ne.s32.totalorder %s87, %s90
    %p96 = scmp.eq.s32.totalorder %s9, 0
    %p97 = por %p95, %p96
    %p98 = scmp.ne.s32.totalorder %s87, %s90
    %p99 = scmp.eq.s32.totalorder %s14, 3
    %p100 = por %p98, %p99
    %p101 = scmp.ne.s32.totalorder %s90, %s91
    %p102 = scmp.eq.s32.totalorder %s14, 0
    %p103 = por %p101, %p102
    %p104 = scmp.ne.s32.totalorder %s90, %s91
    %p105 = scmp.eq.s32.totalorder %s15, 3
    %p106 = por %p104, %p105
    %p108 = scmp.ne.s32.totalorder %s91, %s107
    %p109 = scmp.eq.s32.totalorder %s15, 0
    %p110 = por %p108, %p109
    %p111 = scmp.le.s32.totalorder 1, %s9
    %p112 = scmp.lt.s32.totalorder %s9, 5
    %p113 = pnand %p111, %p112
    %p114 = pneg %p113
    // Predicated region
    $region9: #{_lambda_.8} parent=5 // pred_check
      _
    $region10: #{_lambda_.8} parent=5 // pred_check_branch
      %116 = sbr.rel (%p113) target = $region12
    $region11: #{_lambda_.8} parent=5 // pred_region
      %s117 = ssub.s32 %s9, 1
      // Predicated region
      $region13: #{_lambda_.8} parent=11 // pred_check
        %p118 = pneg %p56
      $region14: #{_lambda_.8} parent=11 // pred_check_branch
        %120 = sbr.rel (%p118) target = $region16
      $region15: #{_lambda_.8} parent=11 // pred_region
        _
      $region16: #{_lambda_.8} parent=11 // pred_fallthru
        _
      // Predicated region
      $region17: #{_lambda_.8} parent=11 // pred_check
        %p121 = pneg %p77
      $region18: #{_lambda_.8} parent=11 // pred_check_branch
        %123 = sbr.rel (%p121) target = $region20
      $region19: #{_lambda_.8} parent=11 // pred_region
        _
      $region20: #{_lambda_.8} parent=11 // pred_fallthru
        _
    $region12: #{_lambda_.8} parent=5 // pred_fallthru
      _
    %p124 = scmp.lt.s32.totalorder %s9, 4
    // Predicated region
    $region21: #{_lambda_.8} parent=5 // pred_check
      %p125 = pneg %p124
    $region22: #{_lambda_.8} parent=5 // pred_check_branch
      %127 = sbr.rel (%p125) target = $region24
    $region23: #{_lambda_.8} parent=5 // pred_region
      // Predicated region
      $region25: #{_lambda_.8} parent=23 // pred_check
        %p128 = pneg %p29
      $region26: #{_lambda_.8} parent=23 // pred_check_branch
        %130 = sbr.rel (%p128) target = $region28
      $region27: #{_lambda_.8} parent=23 // pred_region
        %s131 = smul.u32 16, %s9
        %p132 = scmp.lt.s32.totalorder %s131, 63
        %s133 = scalar_select %p132, %s131, 63
        %s134 = smul.addr %s133, 8
        %s135 = scalar_lea.vmem %s0, %s134
        %s136 = smul.u32 16, %s9
      $region28: #{_lambda_.8} parent=23 // pred_fallthru
        _
    $region24: #{_lambda_.8} parent=5 // pred_fallthru
      _
    %p137 = scmp.le.s32.totalorder 1, %s9
    %p138 = scmp.lt.s32.totalorder %s9, 5
    %p139 = pnand %p137, %p138
    %p140 = pneg %p139
    // Predicated region
    $region29: #{_lambda_.8} parent=5 // pred_check
      _
    $region30: #{_lambda_.8} parent=5 // pred_check_branch
      %142 = sbr.rel (%p139) target = $region32
    $region31: #{_lambda_.8} parent=5 // pred_region
      %s143 = ssub.s32 %s9, 1
      %s144 = smul.u32 16, %s14
      %p145 = scmp.lt.s32.totalorder %s144, 63
      %s146 = scalar_select %p145, %s144, 63
      %s147 = smul.addr %s146, 8
      %s148 = scalar_lea.vmem %s0, %s147
      %p149 = pneg %p35
      %p150 = pneg %p32
      %p151 = pneg %p56
      %p152 = pneg %p53
      %p153 = pneg %p77
      %p154 = pneg %p74
      %p155 = pneg %p103
      %p156 = pneg %p100
      %s157 = smul.u32 16, %s14
      %p158 = scmp.lt.s32.totalorder %s157, 63
      %s159 = scalar_select %p158, %s157, 63
      %s160 = smul.addr %s159, 8
      %s161 = scalar_lea.vmem %s3, %s160
      %s162 = smul.u32 16, %s14
      %p163 = scmp.lt.s32.totalorder %s162, 63
      %s164 = scalar_select %p163, %s162, 63
      %s165 = smul.addr %s164, 8
      %s166 = scalar_lea.vmem %s0, %s165
      %s167 = smul.u32 16, %s14
      %s168 = smul.u32 16, %s14
      %p169 = scmp.lt.s32.totalorder %s168, 63
      %s170 = scalar_select %p169, %s168, 63
      %s171 = smul.addr %s170, 8
      %s172 = scalar_lea.vmem %s3, %s171
      %s173 = smul.u32 16, %s14
      %v174 = vld [vmem:[%s166] sm:$0xff]
      %v175 = vld [vmem:[%s166 + $0x8] sm:$0xff]
      %v176 = vld [vmem:[%s166 + $0x10] sm:$0xff]
      %v177 = vld [vmem:[%s166 + $0x18] sm:$0xff]
      %v178 = vld [vmem:[%s166 + $0x20] sm:$0xff]
      %v179 = vld [vmem:[%s166 + $0x28] sm:$0xff]
      %v180 = vld [vmem:[%s166 + $0x30] sm:$0xff]
      %v181 = vld [vmem:[%s166 + $0x38] sm:$0xff]
      %v182 = vld [vmem:[%s166 + $0x40] sm:$0xff]
      %v183 = vld [vmem:[%s166 + $0x48] sm:$0xff]
      %v184 = vld [vmem:[%s166 + $0x50] sm:$0xff]
      %v185 = vld [vmem:[%s166 + $0x58] sm:$0xff]
      %v186 = vld [vmem:[%s166 + $0x60] sm:$0xff]
      %v187 = vld [vmem:[%s166 + $0x68] sm:$0xff]
      %v188 = vld [vmem:[%s166 + $0x70] sm:$0xff]
      %v189 = vld [vmem:[%s166 + $0x78] sm:$0xff]
      %v190 = vld [vmem:[%s1] sm:$0xff]
      %v191 = vld [vmem:[%s1 + $0x8] sm:$0xf]
      %v192 = vld [vmem:[%s2] sm:$0x1]
      %v194 = vlaneseq
      %v195 = vshrl.u32 %v194, 7
      %v196 = vsub.s32 0, %v195
      %v197 = vrot.slane %v192, %v196
      %vm199 = vcmask 97280
      %v201 = vsel %vm199, %v174, 0
      %v204 = vsel %vm199, %v175, 0
      %v207 = vsel %vm199, %v176, 0
      %v210 = vsel %vm199, %v177, 0
      %v213 = vsel %vm199, %v178, 0
      %v216 = vsel %vm199, %v179, 0
      %v219 = vsel %vm199, %v180, 0
      %v222 = vsel %vm199, %v181, 0
      %v225 = vsel %vm199, %v182, 0
      %v228 = vsel %vm199, %v183, 0
      %v231 = vsel %vm199, %v184, 0
      %v234 = vsel %vm199, %v185, 0
      %v237 = vsel %vm199, %v186, 0
      %v240 = vsel %vm199, %v187, 0
      %v243 = vsel %vm199, %v188, 0
      %v246 = vsel %vm199, %v189, 0
      %vm248 = vcmask 1043456
      %v250 = vsel %vm248, %v191, 0
      %252 = vmatprep.subr.mxu0 0.0
      %253 = vmatpush1.msra.mxu0 %v190
      %254 = vmatprep.subr.mxu0 0.0
      %255 = vmatpush1.msra.mxu0 %v250
      %256 = vmatprep.subr.mxu0 0.0
      %257 = vmatpush1.msra.mxu0 0.0
      %258 = vmatprep.subr.mxu0 0.0
      %259 = vmatpush1.msra.mxu0 0.0
      %260 = vmatprep.subr.mxu0 0.0
      %261 = vmatpush1.msra.mxu0 0.0
      %262 = vmatprep.subr.mxu0 0.0
      %263 = vmatpush1.msra.mxu0 0.0
      %264 = vmatprep.subr.mxu0 0.0
      %265 = vmatpush1.msra.mxu0 0.0
      %266 = vmatprep.subr.mxu0 0.0
      %267 = vmatpush1.msra.mxu0 0.0
      %268 = vmatprep.subr.mxu0 0.0
      %269 = vmatpush1.msra.mxu0 0.0
      %270 = vmatprep.subr.mxu0 0.0
      %271 = vmatpush1.msra.mxu0 0.0
      %272 = vmatprep.subr.mxu0 0.0
      %273 = vmatpush1.msra.mxu0 0.0
      %274 = vmatprep.subr.mxu0 0.0
      %275 = vmatpush1.msra.mxu0 0.0
      %276 = vmatprep.subr.mxu0 0.0
      %277 = vmatpush1.msra.mxu0 0.0
      %278 = vmatprep.subr.mxu0 0.0
      %279 = vmatpush1.msra.mxu0 0.0
      %280 = vmatprep.subr.mxu0 0.0
      %281 = vmatpush1.msra.mxu0 0.0
      %282 = vmatprep.subr.mxu0 0.0
      %283 = vmatpush1.msra.mxu0 0.0
      %284 = vmatprep.subr.mxu0 0.0
      %285 = vmatpush1.msra.mxu0 0.0
      %286 = vmatprep.subr.mxu0 0.0
      %287 = vmatpush1.msra.mxu0 0.0
      %288 = vmatprep.subr.mxu0 0.0
      %289 = vmatpush1.msra.mxu0 0.0
      %290 = vmatprep.subr.mxu0 0.0
      %291 = vmatpush1.msra.mxu0 0.0
      %292 = vmatprep.subr.mxu0 0.0
      %293 = vmatpush1.msra.mxu0 0.0
      %294 = vmatprep.subr.mxu0 0.0
      %295 = vmatpush1.msra.mxu0 0.0
      %296 = vmatprep.subr.mxu0 0.0
      %297 = vmatpush1.msra.mxu0 0.0
      %298 = vmatprep.subr.mxu0 0.0
      %299 = vmatpush1.msra.mxu0 0.0
      %300 = vmatprep.subr.mxu0 0.0
      %301 = vmatpush1.msra.mxu0 0.0
      %302 = vmatprep.subr.mxu0 0.0
      %303 = vmatpush1.msra.mxu0 0.0
      %304 = vmatprep.subr.mxu0 0.0
      %305 = vmatpush1.msra.mxu0 0.0
      %306 = vmatprep.subr.mxu0 0.0
      %307 = vmatpush1.msra.mxu0 0.0
      %308 = vmatprep.subr.mxu0 0.0
      %309 = vmatpush1.msra.mxu0 0.0
      %310 = vmatprep.subr.mxu0 0.0
      %311 = vmatpush1.msra.mxu0 0.0
      %312 = vmatprep.subr.mxu0 0.0
      %313 = vmatpush1.msra.mxu0 0.0
      %314 = vmatprep.subr.mxu0 0.0
      %315 = vmatpush1.msra.mxu0 0.0
      %316 = vmatprep.mubr.f32.mxu0 0.0
      %317 = vmatmul.mubr.f32.gmra.mrb[0].mxu0 %v201
      %v318 = vpop.f32.mrb[0].mxu0
      %v319 = vadd.f32 %v197, %v318
      %v320 = vpop.f32.mrb[0].mxu0
      %321 = vmatprep.mubr.f32.mxu0 0.0
      %322 = vmatmul.mubr.f32.gmra.mrb[0].mxu0 %v204
      %v323 = vpop.f32.mrb[0].mxu0
      %v324 = vadd.f32 %v197, %v323
      %v325 = vpop.f32.mrb[0].mxu0
      %326 = vmatprep.mubr.f32.mxu0 0.0
      %327 = vmatmul.mubr.f32.gmra.mrb[0].mxu0 %v207
      %v328 = vpop.f32.mrb[0].mxu0
      %v329 = vadd.f32 %v197, %v328
      %v330 = vpop.f32.mrb[0].mxu0
      %331 = vmatprep.mubr.f32.mxu0 0.0
      %332 = vmatmul.mubr.f32.gmra.mrb[0].mxu0 %v210
      %v333 = vpop.f32.mrb[0].mxu0
      %v334 = vadd.f32 %v197, %v333
      %v335 = vpop.f32.mrb[0].mxu0
      %336 = vmatprep.mubr.f32.mxu0 0.0
      %337 = vmatmul.mubr.f32.gmra.mrb[0].mxu0 %v213
      %v338 = vpop.f32.mrb[0].mxu0
      %v339 = vadd.f32 %v197, %v338
      %v340 = vpop.f32.mrb[0].mxu0
      %341 = vmatprep.mubr.f32.mxu0 0.0
      %342 = vmatmul.mubr.f32.gmra.mrb[0].mxu0 %v216
      %v343 = vpop.f32.mrb[0].mxu0
      %v344 = vadd.f32 %v197, %v343
      %v345 = vpop.f32.mrb[0].mxu0
      %346 = vmatprep.mubr.f32.mxu0 0.0
      %347 = vmatmul.mubr.f32.gmra.mrb[0].mxu0 %v219
      %v348 = vpop.f32.mrb[0].mxu0
      %v349 = vadd.f32 %v197, %v348
      %v350 = vpop.f32.mrb[0].mxu0
      %351 = vmatprep.mubr.f32.mxu0 0.0
      %352 = vmatmul.mubr.f32.gmra.mrb[0].mxu0 %v222
      %v353 = vpop.f32.mrb[0].mxu0
      %v354 = vadd.f32 %v197, %v353
      %v355 = vpop.f32.mrb[0].mxu0
      %356 = vmatprep.mubr.f32.mxu0 0.0
      %357 = vmatmul.mubr.f32.gmra.mrb[0].mxu0 %v225
      %v358 = vpop.f32.mrb[0].mxu0
      %v359 = vadd.f32 %v197, %v358
      %v360 = vpop.f32.mrb[0].mxu0
      %361 = vmatprep.mubr.f32.mxu0 0.0
      %362 = vmatmul.mubr.f32.gmra.mrb[0].mxu0 %v228
      %v363 = vpop.f32.mrb[0].mxu0
      %v364 = vadd.f32 %v197, %v363
      %v365 = vpop.f32.mrb[0].mxu0
      %366 = vmatprep.mubr.f32.mxu0 0.0
      %367 = vmatmul.mubr.f32.gmra.mrb[0].mxu0 %v231
      %v368 = vpop.f32.mrb[0].mxu0
      %v369 = vadd.f32 %v197, %v368
      %v370 = vpop.f32.mrb[0].mxu0
      %371 = vmatprep.mubr.f32.mxu0 0.0
      %372 = vmatmul.mubr.f32.gmra.mrb[0].mxu0 %v234
      %v373 = vpop.f32.mrb[0].mxu0
      %v374 = vadd.f32 %v197, %v373
      %v375 = vpop.f32.mrb[0].mxu0
      %376 = vmatprep.mubr.f32.mxu0 0.0
      %377 = vmatmul.mubr.f32.gmra.mrb[0].mxu0 %v237
      %v378 = vpop.f32.mrb[0].mxu0
      %v379 = vadd.f32 %v197, %v378
      %v380 = vpop.f32.mrb[0].mxu0
      %381 = vmatprep.mubr.f32.mxu0 0.0
      %382 = vmatmul.mubr.f32.gmra.mrb[0].mxu0 %v240
      %v383 = vpop.f32.mrb[0].mxu0
      %v384 = vadd.f32 %v197, %v383
      %v385 = vpop.f32.mrb[0].mxu0
      %386 = vmatprep.mubr.f32.mxu0 0.0
      %387 = vmatmul.mubr.f32.gmra.mrb[0].mxu0 %v243
      %v388 = vpop.f32.mrb[0].mxu0
      %v389 = vadd.f32 %v197, %v388
      %v390 = vpop.f32.mrb[0].mxu0
      %391 = vmatprep.mubr.f32.mxu0 0.0
      %392 = vmatmul.mubr.f32.gmra.mrb[0].mxu0 %v246
      %v393 = vpop.f32.mrb[0].mxu0
      %v394 = vadd.f32 %v197, %v393
      %v395 = vpop.f32.mrb[0].mxu0
      %396 = vdwg.mxu0
      %vm397 = vcmask 130048
      %398 = vst.msk [vmem:[%s172] sm:$0xff] %vm397, %v319
      %399 = vst.msk [vmem:[%s172 + $0x8] sm:$0xff] %vm397, %v324
      %400 = vst.msk [vmem:[%s172 + $0x10] sm:$0xff] %vm397, %v329
      %401 = vst.msk [vmem:[%s172 + $0x18] sm:$0xff] %vm397, %v334
      %402 = vst.msk [vmem:[%s172 + $0x20] sm:$0xff] %vm397, %v339
      %403 = vst.msk [vmem:[%s172 + $0x28] sm:$0xff] %vm397, %v344
      %404 = vst.msk [vmem:[%s172 + $0x30] sm:$0xff] %vm397, %v349
      %405 = vst.msk [vmem:[%s172 + $0x38] sm:$0xff] %vm397, %v354
      %406 = vst.msk [vmem:[%s172 + $0x40] sm:$0xff] %vm397, %v359
      %407 = vst.msk [vmem:[%s172 + $0x48] sm:$0xff] %vm397, %v364
      %408 = vst.msk [vmem:[%s172 + $0x50] sm:$0xff] %vm397, %v369
      %409 = vst.msk [vmem:[%s172 + $0x58] sm:$0xff] %vm397, %v374
      %410 = vst.msk [vmem:[%s172 + $0x60] sm:$0xff] %vm397, %v379
      %411 = vst.msk [vmem:[%s172 + $0x68] sm:$0xff] %vm397, %v384
      %412 = vst.msk [vmem:[%s172 + $0x70] sm:$0xff] %vm397, %v389
      %413 = vst.msk [vmem:[%s172 + $0x78] sm:$0xff] %vm397, %v394
      %s414 = smul.u32 16, %s14
      %p415 = scmp.lt.s32.totalorder %s414, 63
      %s416 = scalar_select %p415, %s414, 63
      %s417 = smul.addr %s416, 8
      %s418 = scalar_lea.vmem %s3, %s417
      // Predicated region
      $region33: #{_lambda_.8} parent=31 // pred_check
        %p419 = pneg %p100
      $region34: #{_lambda_.8} parent=31 // pred_check_branch
        %421 = sbr.rel (%p419) target = $region36
      $region35: #{_lambda_.8} parent=31 // pred_region
        %s422 = smul.u32 16, %s14
      $region36: #{_lambda_.8} parent=31 // pred_fallthru
        _
    $region32: #{_lambda_.8} parent=5 // pred_fallthru
      _
    %p423 = scmp.le.s32.totalorder 2, %s9
    // Predicated region
    $region37: #{_lambda_.8} parent=5 // pred_check
      %p424 = pneg %p423
    $region38: #{_lambda_.8} parent=5 // pred_check_branch
      %426 = sbr.rel (%p424) target = $region40
    $region39: #{_lambda_.8} parent=5 // pred_region
      %s427 = ssub.s32 %s9, 2
      // Predicated region
      $region41: #{_lambda_.8} parent=39 // pred_check
        %p428 = pneg %p106
      $region42: #{_lambda_.8} parent=39 // pred_check_branch
        %430 = sbr.rel (%p428) target = $region44
      $region43: #{_lambda_.8} parent=39 // pred_region
        %s431 = smul.u32 16, %s15
        %p432 = scmp.lt.s32.totalorder %s431, 63
        %s433 = scalar_select %p432, %s431, 63
        %s434 = smul.addr %s433, 8
        %s435 = scalar_lea.vmem %s3, %s434
      $region44: #{_lambda_.8} parent=39 // pred_fallthru
        _
    $region40: #{_lambda_.8} parent=5 // pred_fallthru
      _
  $region6: #{_lambda_.8} parent=0 // loop_footer
    %s13 = sadd.s32 1, %s9
  $region7: #{_lambda_.8} parent=0 // loop_footer_branch
    %8 = sbr.rel target = $region3
  $region8: #{_lambda_.8} parent=0 // loop_exit
    _

// kernel: _lambda_.10
$region0: #{_lambda_.10}
  #allocation0 [shape = 'u32[]', space=smem, size = 0x4, offset = 0x4, fixed_abs, tag = 'smem constant byte address 0x4 - core index']
  #allocation1 [shape = 'u32[144,128]{1,0:T(1,128)}', space=vmem, size = 0x12000, scoped, tag = 'internal scratch']
  %s0 = inlined_call_operand.vmem [shape: f32[8,32,32], index: 0, kind: input, shape index: {}]
  %s1 = inlined_call_operand.vmem [shape: f32[8,32,32], index: 1, kind: input, shape index: {}]
  %s2 = inlined_call_operand.vmem [shape: f32[8,32,32], index: 2, kind: output, shape index: {}]
  %s3 = sld [smem:[#allocation0]]
  $region41: #{_lambda_.10} parent=0
    _
  %s5 = ssub.s32 1, %s3
  %s6 = scalar_select 0, %s5, %s3
  loop: start=0, step=1, limit=6
  $region2: #{_lambda_.10} parent=0 // loop_pre_header
    _
  $region3: #{_lambda_.10} parent=0 // loop_header
    %s8 = sphi 0, %s12
    %p9 = scmp.ge.s32.totalorder %s8, 6
    %s18 = sphi 0, %s20
    %s21 = sphi 0, %s18
    %s22 = sphi 0, %s21
    %s38 = sphi 0, %s22
    %s44 = sphi 0, %s46
    %s47 = sphi 0, %s44
    %s48 = sphi 0, %s47
    %s64 = sphi 0, %s48
    %s70 = sphi 0, %s72
    %s73 = sphi 0, %s70
    %s74 = sphi 0, %s73
    %s90 = sphi 0, %s74
  $region4: #{_lambda_.10} parent=0 // loop_header_branch
    %11 = sbr.rel (%p9) target = $region8
  $region5: #{_lambda_.10} parent=0 // loop_body
    %s13 = ssub.s32 %s8, 1
    %s14 = ssub.s32 %s8, 2
    %s15 = sadd.s32 %s8, 1
    %s16 = ssub.s32 %s8, %s15
    %p17 = scmp.eq.s32.totalorder %s16, 0
    %s19 = sadd.s32 %s18, 1
    %s20 = scalar_select %p17, %s18, %s19
    %p23 = pneg %p17
    %p24 = scmp.eq.s32.totalorder %s8, 3
    %p25 = por %p23, %p24
    %p26 = scmp.ne.s32.totalorder %s18, %s21
    %p27 = scmp.eq.s32.totalorder %s8, 0
    %p28 = por %p26, %p27
    %p29 = scmp.ne.s32.totalorder %s18, %s21
    %p30 = scmp.eq.s32.totalorder %s13, 3
    %p31 = por %p29, %p30
    %p32 = scmp.ne.s32.totalorder %s21, %s22
    %p33 = scmp.eq.s32.totalorder %s13, 0
    %p34 = por %p32, %p33
    %p35 = scmp.ne.s32.totalorder %s21, %s22
    %p36 = scmp.eq.s32.totalorder %s14, 3
    %p37 = por %p35, %p36
    %p39 = scmp.ne.s32.totalorder %s22, %s38
    %p40 = scmp.eq.s32.totalorder %s14, 0
    %p41 = por %p39, %p40
    %s42 = ssub.s32 %s8, %s15
    %p43 = scmp.eq.s32.totalorder %s42, 0
    %s45 = sadd.s32 %s44, 1
    %s46 = scalar_select %p43, %s44, %s45
    %p49 = pneg %p43
    %p50 = scmp.eq.s32.totalorder %s8, 3
    %p51 = por %p49, %p50
    %p52 = scmp.ne.s32.totalorder %s44, %s47
    %p53 = scmp.eq.s32.totalorder %s8, 0
    %p54 = por %p52, %p53
    %p55 = scmp.ne.s32.totalorder %s44, %s47
    %p56 = scmp.eq.s32.totalorder %s13, 3
    %p57 = por %p55, %p56
    %p58 = scmp.ne.s32.totalorder %s47, %s48
    %p59 = scmp.eq.s32.totalorder %s13, 0
    %p60 = por %p58, %p59
    %p61 = scmp.ne.s32.totalorder %s47, %s48
    %p62 = scmp.eq.s32.totalorder %s14, 3
    %p63 = por %p61, %p62
    %p65 = scmp.ne.s32.totalorder %s48, %s64
    %p66 = scmp.eq.s32.totalorder %s14, 0
    %p67 = por %p65, %p66
    %s68 = ssub.s32 %s8, %s15
    %p69 = scmp.eq.s32.totalorder %s68, 0
    %s71 = sadd.s32 %s70, 1
    %s72 = scalar_select %p69, %s70, %s71
    %p75 = pneg %p69
    %p76 = scmp.eq.s32.totalorder %s8, 3
    %p77 = por %p75, %p76
    %p78 = scmp.ne.s32.totalorder %s70, %s73
    %p79 = scmp.eq.s32.totalorder %s8, 0
    %p80 = por %p78, %p79
    %p81 = scmp.ne.s32.totalorder %s70, %s73
    %p82 = scmp.eq.s32.totalorder %s13, 3
    %p83 = por %p81, %p82
    %p84 = scmp.ne.s32.totalorder %s73, %s74
    %p85 = scmp.eq.s32.totalorder %s13, 0
    %p86 = por %p84, %p85
    %p87 = scmp.ne.s32.totalorder %s73, %s74
    %p88 = scmp.eq.s32.totalorder %s14, 3
    %p89 = por %p87, %p88
    %p91 = scmp.ne.s32.totalorder %s74, %s90
    %p92 = scmp.eq.s32.totalorder %s14, 0
    %p93 = por %p91, %p92
    %p94 = scmp.le.s32.totalorder 1, %s8
    %p95 = scmp.lt.s32.totalorder %s8, 5
    %p96 = pnand %p94, %p95
    %p97 = pneg %p96
    // Predicated region
    $region9: #{_lambda_.10} parent=5 // pred_check
      _
    $region10: #{_lambda_.10} parent=5 // pred_check_branch
      %99 = sbr.rel (%p96) target = $region12
    $region11: #{_lambda_.10} parent=5 // pred_region
      %s100 = ssub.s32 %s8, 1
    $region12: #{_lambda_.10} parent=5 // pred_fallthru
      _
    %p101 = scmp.lt.s32.totalorder %s8, 4
    // Predicated region
    $region13: #{_lambda_.10} parent=5 // pred_check
      %p102 = pneg %p101
    $region14: #{_lambda_.10} parent=5 // pred_check_branch
      %104 = sbr.rel (%p102) target = $region16
    $region15: #{_lambda_.10} parent=5 // pred_region
      // Predicated region
      $region17: #{_lambda_.10} parent=15 // pred_check
        %p105 = pneg %p28
      $region18: #{_lambda_.10} parent=15 // pred_check_branch
        %107 = sbr.rel (%p105) target = $region20
      $region19: #{_lambda_.10} parent=15 // pred_region
        %s108 = smul.u32 2, %s8
        %p109 = scmp.lt.s32.totalorder %s108, 7
        %s110 = scalar_select %p109, %s108, 7
        %s111 = smul.addr %s110, 4
        %s112 = smul.addr %s111, 8
        %s113 = scalar_lea.vmem %s0, %s112
        %s114 = smul.u32 2, %s8
      $region20: #{_lambda_.10} parent=15 // pred_fallthru
        _
      // Predicated region
      $region21: #{_lambda_.10} parent=15 // pred_check
        %p115 = pneg %p54
      $region22: #{_lambda_.10} parent=15 // pred_check_branch
        %117 = sbr.rel (%p115) target = $region24
      $region23: #{_lambda_.10} parent=15 // pred_region
        %s118 = smul.u32 2, %s8
        %p119 = scmp.lt.s32.totalorder %s118, 7
        %s120 = scalar_select %p119, %s118, 7
        %s121 = smul.addr %s120, 4
        %s122 = smul.addr %s121, 8
        %s123 = scalar_lea.vmem %s1, %s122
        %s124 = smul.u32 2, %s8
      $region24: #{_lambda_.10} parent=15 // pred_fallthru
        _
    $region16: #{_lambda_.10} parent=5 // pred_fallthru
      _
    %p125 = scmp.le.s32.totalorder 1, %s8
    %p126 = scmp.lt.s32.totalorder %s8, 5
    %p127 = pnand %p125, %p126
    %p128 = pneg %p127
    // Predicated region
    $region25: #{_lambda_.10} parent=5 // pred_check
      _
    $region26: #{_lambda_.10} parent=5 // pred_check_branch
      %130 = sbr.rel (%p127) target = $region28
    $region27: #{_lambda_.10} parent=5 // pred_region
      %s131 = ssub.s32 %s8, 1
      %s132 = smul.u32 2, %s13
      %p133 = scmp.lt.s32.totalorder %s132, 7
      %s134 = scalar_select %p133, %s132, 7
      %s135 = smul.addr %s134, 4
      %s136 = smul.addr %s135, 8
      %s137 = scalar_lea.vmem %s0, %s136
      %p138 = pneg %p34
      %p139 = pneg %p31
      %s140 = smul.u32 2, %s13
      %p141 = scmp.lt.s32.totalorder %s140, 7
      %s142 = scalar_select %p141, %s140, 7
      %s143 = smul.addr %s142, 4
      %s144 = smul.addr %s143, 8
      %s145 = scalar_lea.vmem %s1, %s144
      %p146 = pneg %p60
      %p147 = pneg %p57
      %p148 = pneg %p86
      %p149 = pneg %p83
      %s150 = smul.u32 2, %s13
      %p151 = scmp.lt.s32.totalorder %s150, 7
      %s152 = scalar_select %p151, %s150, 7
      %s153 = smul.addr %s152, 4
      %s154 = smul.addr %s153, 8
      %s155 = scalar_lea.vmem %s2, %s154
      %s156 = smul.u32 2, %s13
      %p157 = scmp.lt.s32.totalorder %s156, 7
      %s158 = scalar_select %p157, %s156, 7
      %s159 = smul.addr %s158, 4
      %s160 = smul.addr %s159, 8
      %s161 = scalar_lea.vmem %s0, %s160
      %s162 = smul.u32 2, %s13
      %s163 = smul.u32 2, %s13
      %p164 = scmp.lt.s32.totalorder %s163, 7
      %s165 = scalar_select %p164, %s163, 7
      %s166 = smul.addr %s165, 4
      %s167 = smul.addr %s166, 8
      %s168 = scalar_lea.vmem %s1, %s167
      %s169 = smul.u32 2, %s13
      %s170 = smul.u32 2, %s13
      %p171 = scmp.lt.s32.totalorder %s170, 7
      %s172 = scalar_select %p171, %s170, 7
      %s173 = smul.addr %s172, 4
      %s174 = smul.addr %s173, 8
      %s175 = scalar_lea.vmem %s2, %s174
      %s176 = smul.u32 2, %s13
      %v177 = vld [vmem:[%s161] sm:$0xff]
      %v178 = vld [vmem:[%s161 + $0x8] sm:$0xff]
      %v179 = vld [vmem:[%s161 + $0x10] sm:$0xff]
      %v180 = vld [vmem:[%s161 + $0x18] sm:$0xff]
      %v181 = vld [vmem:[%s161 + $0x20] sm:$0xff]
      %v182 = vld [vmem:[%s161 + $0x28] sm:$0xff]
      %v183 = vld [vmem:[%s161 + $0x30] sm:$0xff]
      %v184 = vld [vmem:[%s161 + $0x38] sm:$0xff]
      %v185 = vld [vmem:[%s168] sm:$0xff]
      %v186 = vld [vmem:[%s168 + $0x8] sm:$0xff]
      %v187 = vld [vmem:[%s168 + $0x10] sm:$0xff]
      %v188 = vld [vmem:[%s168 + $0x18] sm:$0xff]
      %v189 = vld [vmem:[%s168 + $0x20] sm:$0xff]
      %v190 = vld [vmem:[%s168 + $0x28] sm:$0xff]
      %v191 = vld [vmem:[%s168 + $0x30] sm:$0xff]
      %v192 = vld [vmem:[%s168 + $0x38] sm:$0xff]
      %vm193 = vcmask 261120
      %v195 = vsel %vm193, %v177, 0
      %v198 = vsel %vm193, %v178, 0
      %v201 = vsel %vm193, %v179, 0
      %v204 = vsel %vm193, %v180, 0
      %206 = vmatprep.subr.mxu0 0.0
      %207 = vmatpush1.msra.mxu0 %v185
      %208 = vmatprep.subr.mxu0 0.0
      %209 = vmatpush1.msra.mxu0 %v186
      %210 = vmatprep.subr.mxu0 0.0
      %211 = vmatpush1.msra.mxu0 %v187
      %212 = vmatprep.subr.mxu0 0.0
      %213 = vmatpush1.msra.mxu0 %v188
      %214 = vmatprep.subr.mxu0 0.0
      %215 = vmatpush1.msra.mxu0 0.0
      %216 = vmatprep.subr.mxu0 0.0
      %217 = vmatpush1.msra.mxu0 0.0
      %218 = vmatprep.subr.mxu0 0.0
      %219 = vmatpush1.msra.mxu0 0.0
      %220 = vmatprep.subr.mxu0 0.0
      %221 = vmatpush1.msra.mxu0 0.0
      %222 = vmatprep.subr.mxu0 0.0
      %223 = vmatpush1.msra.mxu0 0.0
      %224 = vmatprep.subr.mxu0 0.0
      %225 = vmatpush1.msra.mxu0 0.0
      %226 = vmatprep.subr.mxu0 0.0
      %227 = vmatpush1.msra.mxu0 0.0
      %228 = vmatprep.subr.mxu0 0.0
      %229 = vmatpush1.msra.mxu0 0.0
      %230 = vmatprep.subr.mxu0 0.0
      %231 = vmatpush1.msra.mxu0 0.0
      %232 = vmatprep.subr.mxu0 0.0
      %233 = vmatpush1.msra.mxu0 0.0
      %234 = vmatprep.subr.mxu0 0.0
      %235 = vmatpush1.msra.mxu0 0.0
      %236 = vmatprep.subr.mxu0 0.0
      %237 = vmatpush1.msra.mxu0 0.0
      %238 = vmatprep.subr.mxu0 0.0
      %239 = vmatpush1.msra.mxu0 0.0
      %240 = vmatprep.subr.mxu0 0.0
      %241 = vmatpush1.msra.mxu0 0.0
      %242 = vmatprep.subr.mxu0 0.0
      %243 = vmatpush1.msra.mxu0 0.0
      %244 = vmatprep.subr.mxu0 0.0
      %245 = vmatpush1.msra.mxu0 0.0
      %246 = vmatprep.subr.mxu0 0.0
      %247 = vmatpush1.msra.mxu0 0.0
      %248 = vmatprep.subr.mxu0 0.0
      %249 = vmatpush1.msra.mxu0 0.0
      %250 = vmatprep.subr.mxu0 0.0
      %251 = vmatpush1.msra.mxu0 0.0
      %252 = vmatprep.subr.mxu0 0.0
      %253 = vmatpush1.msra.mxu0 0.0
      %254 = vmatprep.subr.mxu0 0.0
      %255 = vmatpush1.msra.mxu0 0.0
      %256 = vmatprep.subr.mxu0 0.0
      %257 = vmatpush1.msra.mxu0 0.0
      %258 = vmatprep.subr.mxu0 0.0
      %259 = vmatpush1.msra.mxu0 0.0
      %260 = vmatprep.subr.mxu0 0.0
      %261 = vmatpush1.msra.mxu0 0.0
      %262 = vmatprep.subr.mxu0 0.0
      %263 = vmatpush1.msra.mxu0 0.0
      %264 = vmatprep.subr.mxu0 0.0
      %265 = vmatpush1.msra.mxu0 0.0
      %266 = vmatprep.subr.mxu0 0.0
      %267 = vmatpush1.msra.mxu0 0.0
      %268 = vmatprep.subr.mxu0 0.0
      %269 = vmatpush1.msra.mxu0 0.0
      %270 = vmatprep.mubr.f32.mxu0 0.0
      %271 = vmatmul.mubr.f32.gmra.mrb[0].mxu0 %v195
      %v272 = vpop.f32.mrb[0].mxu0
      %v273 = vadd.f32 0.0, %v272
      %v274 = vpop.f32.mrb[0].mxu0
      %275 = vmatprep.mubr.f32.mxu0 0.0
      %276 = vmatmul.mubr.f32.gmra.mrb[0].mxu0 %v198
      %v277 = vpop.f32.mrb[0].mxu0
      %v278 = vadd.f32 0.0, %v277
      %v279 = vpop.f32.mrb[0].mxu0
      %280 = vmatprep.mubr.f32.mxu0 0.0
      %281 = vmatmul.mubr.f32.gmra.mrb[0].mxu0 %v201
      %v282 = vpop.f32.mrb[0].mxu0
      %v283 = vadd.f32 0.0, %v282
      %v284 = vpop.f32.mrb[0].mxu0
      %285 = vmatprep.mubr.f32.mxu0 0.0
      %286 = vmatmul.mubr.f32.gmra.mrb[0].mxu0 %v204
      %v287 = vpop.f32.mrb[0].mxu0
      %v288 = vadd.f32 0.0, %v287
      %v289 = vpop.f32.mrb[0].mxu0
      %290 = vdwg.mxu0
      %v292 = vsel %vm193, %v181, 0
      %v295 = vsel %vm193, %v182, 0
      %v298 = vsel %vm193, %v183, 0
      %v301 = vsel %vm193, %v184, 0
      %303 = vmatprep.subr.mxu0 0.0
      %304 = vmatpush1.msra.mxu0 %v189
      %305 = vmatprep.subr.mxu0 0.0
      %306 = vmatpush1.msra.mxu0 %v190
      %307 = vmatprep.subr.mxu0 0.0
      %308 = vmatpush1.msra.mxu0 %v191
      %309 = vmatprep.subr.mxu0 0.0
      %310 = vmatpush1.msra.mxu0 %v192
      %311 = vmatprep.subr.mxu0 0.0
      %312 = vmatpush1.msra.mxu0 0.0
      %313 = vmatprep.subr.mxu0 0.0
      %314 = vmatpush1.msra.mxu0 0.0
      %315 = vmatprep.subr.mxu0 0.0
      %316 = vmatpush1.msra.mxu0 0.0
      %317 = vmatprep.subr.mxu0 0.0
      %318 = vmatpush1.msra.mxu0 0.0
      %319 = vmatprep.subr.mxu0 0.0
      %320 = vmatpush1.msra.mxu0 0.0
      %321 = vmatprep.subr.mxu0 0.0
      %322 = vmatpush1.msra.mxu0 0.0
      %323 = vmatprep.subr.mxu0 0.0
      %324 = vmatpush1.msra.mxu0 0.0
      %325 = vmatprep.subr.mxu0 0.0
      %326 = vmatpush1.msra.mxu0 0.0
      %327 = vmatprep.subr.mxu0 0.0
      %328 = vmatpush1.msra.mxu0 0.0
      %329 = vmatprep.subr.mxu0 0.0
      %330 = vmatpush1.msra.mxu0 0.0
      %331 = vmatprep.subr.mxu0 0.0
      %332 = vmatpush1.msra.mxu0 0.0
      %333 = vmatprep.subr.mxu0 0.0
      %334 = vmatpush1.msra.mxu0 0.0
      %335 = vmatprep.subr.mxu0 0.0
      %336 = vmatpush1.msra.mxu0 0.0
      %337 = vmatprep.subr.mxu0 0.0
      %338 = vmatpush1.msra.mxu0 0.0
      %339 = vmatprep.subr.mxu0 0.0
      %340 = vmatpush1.msra.mxu0 0.0
      %341 = vmatprep.subr.mxu0 0.0
      %342 = vmatpush1.msra.mxu0 0.0
      %343 = vmatprep.subr.mxu0 0.0
      %344 = vmatpush1.msra.mxu0 0.0
      %345 = vmatprep.subr.mxu0 0.0
      %346 = vmatpush1.msra.mxu0 0.0
      %347 = vmatprep.subr.mxu0 0.0
      %348 = vmatpush1.msra.mxu0 0.0
      %349 = vmatprep.subr.mxu0 0.0
      %350 = vmatpush1.msra.mxu0 0.0
      %351 = vmatprep.subr.mxu0 0.0
      %352 = vmatpush1.msra.mxu0 0.0
      %353 = vmatprep.subr.mxu0 0.0
      %354 = vmatpush1.msra.mxu0 0.0
      %355 = vmatprep.subr.mxu0 0.0
      %356 = vmatpush1.msra.mxu0 0.0
      %357 = vmatprep.subr.mxu0 0.0
      %358 = vmatpush1.msra.mxu0 0.0
      %359 = vmatprep.subr.mxu0 0.0
      %360 = vmatpush1.msra.mxu0 0.0
      %361 = vmatprep.subr.mxu0 0.0
      %362 = vmatpush1.msra.mxu0 0.0
      %363 = vmatprep.subr.mxu0 0.0
      %364 = vmatpush1.msra.mxu0 0.0
      %365 = vmatprep.subr.mxu0 0.0
      %366 = vmatpush1.msra.mxu0 0.0
      %367 = vmatprep.mubr.f32.mxu0 0.0
      %368 = vmatmul.mubr.f32.gmra.mrb[0].mxu0 %v292
      %v369 = vpop.f32.mrb[0].mxu0
      %v370 = vadd.f32 0.0, %v369
      %v371 = vpop.f32.mrb[0].mxu0
      %372 = vmatprep.mubr.f32.mxu0 0.0
      %373 = vmatmul.mubr.f32.gmra.mrb[0].mxu0 %v295
      %v374 = vpop.f32.mrb[0].mxu0
      %v375 = vadd.f32 0.0, %v374
      %v376 = vpop.f32.mrb[0].mxu0
      %377 = vmatprep.mubr.f32.mxu0 0.0
      %378 = vmatmul.mubr.f32.gmra.mrb[0].mxu0 %v298
      %v379 = vpop.f32.mrb[0].mxu0
      %v380 = vadd.f32 0.0, %v379
      %v381 = vpop.f32.mrb[0].mxu0
      %382 = vmatprep.mubr.f32.mxu0 0.0
      %383 = vmatmul.mubr.f32.gmra.mrb[0].mxu0 %v301
      %v384 = vpop.f32.mrb[0].mxu0
      %v385 = vadd.f32 0.0, %v384
      %v386 = vpop.f32.mrb[0].mxu0
      %387 = vdwg.mxu0
      %388 = vst.msk [vmem:[%s175] sm:$0xff] %vm193, %v273
      %389 = vst.msk [vmem:[%s175 + $0x8] sm:$0xff] %vm193, %v278
      %390 = vst.msk [vmem:[%s175 + $0x10] sm:$0xff] %vm193, %v283
      %391 = vst.msk [vmem:[%s175 + $0x18] sm:$0xff] %vm193, %v288
      %392 = vst.msk [vmem:[%s175 + $0x20] sm:$0xff] %vm193, %v370
      %393 = vst.msk [vmem:[%s175 + $0x28] sm:$0xff] %vm193, %v375
      %394 = vst.msk [vmem:[%s175 + $0x30] sm:$0xff] %vm193, %v380
      %395 = vst.msk [vmem:[%s175 + $0x38] sm:$0xff] %vm193, %v385
      %s396 = smul.u32 2, %s13
      %p397 = scmp.lt.s32.totalorder %s396, 7
      %s398 = scalar_select %p397, %s396, 7
      %s399 = smul.addr %s398, 4
      %s400 = smul.addr %s399, 8
      %s401 = scalar_lea.vmem %s2, %s400
      // Predicated region
      $region29: #{_lambda_.10} parent=27 // pred_check
        %p402 = pneg %p83
      $region30: #{_lambda_.10} parent=27 // pred_check_branch
        %404 = sbr.rel (%p402) target = $region32
      $region31: #{_lambda_.10} parent=27 // pred_region
        %s405 = smul.u32 2, %s13
      $region32: #{_lambda_.10} parent=27 // pred_fallthru
        _
    $region28: #{_lambda_.10} parent=5 // pred_fallthru
      _
    %p406 = scmp.le.s32.totalorder 2, %s8
    // Predicated region
    $region33: #{_lambda_.10} parent=5 // pred_check
      %p407 = pneg %p406
    $region34: #{_lambda_.10} parent=5 // pred_check_branch
      %409 = sbr.rel (%p407) target = $region36
    $region35: #{_lambda_.10} parent=5 // pred_region
      %s410 = ssub.s32 %s8, 2
      // Predicated region
      $region37: #{_lambda_.10} parent=35 // pred_check
        %p411 = pneg %p89
      $region38: #{_lambda_.10} parent=35 // pred_check_branch
        %413 = sbr.rel (%p411) target = $region40
      $region39: #{_lambda_.10} parent=35 // pred_region
        %s414 = smul.u32 2, %s14
        %p415 = scmp.lt.s32.totalorder %s414, 7
        %s416 = scalar_select %p415, %s414, 7
        %s417 = smul.addr %s416, 4
        %s418 = smul.addr %s417, 8
        %s419 = scalar_lea.vmem %s2, %s418
      $region40: #{_lambda_.10} parent=35 // pred_fallthru
        _
    $region36: #{_lambda_.10} parent=5 // pred_fallthru
      _
  $region6: #{_lambda_.10} parent=0 // loop_footer
    %s12 = sadd.s32 1, %s8
  $region7: #{_lambda_.10} parent=0 // loop_footer_branch
    %7 = sbr.rel target = $region3
  $region8: #{_lambda_.10} parent=0 // loop_exit
    _

// kernel: reverse.10
$region0: #{reverse.10}
  %s0 = inlined_call_operand.vmem [shape: f32[2,16,16,7], index: 0, kind: input, shape index: {}]
  %s1 = inlined_call_operand.vmem [shape: f32[2,16,16,7], index: 1, kind: output, shape index: {}]
  %v2 = vlaneseq
  %v3 = vsub.s32 6, %v2
  %4 = vset.pattern.permute.xlu0 %v3
  $region1: #{reverse.10} parent=0
    #allocation0 [shape = 'u8[262144]{0}', space=vmem, size = 0x40000, scoped, tag = 'operand span for operand 0']
    #allocation1 [shape = 'u8[262144]{0}', space=vmem, size = 0x40000, scoped, tag = 'operand span for operand 1']
    // Predicated region
    $region2: #{reverse.10} parent=1 // pred_check
      _
    $region3: #{reverse.10} parent=1 // pred_check_branch
      %6 = sbr.rel (0) target = $region5
    $region4: #{reverse.10} parent=1 // pred_region
      // Predicated region
      $region6: #{reverse.10} parent=4 // pred_check
        _
      $region7: #{reverse.10} parent=4 // pred_check_branch
        %8 = sbr.rel (0) target = $region9
      $region8: #{reverse.10} parent=4 // pred_region
        // Predicated region
        $region21: #{reverse.10} parent=8 // pred_check
          _
        $region22: #{reverse.10} parent=8 // pred_check_branch
          %149 = sbr.rel (0) target = $region24
        $region23: #{reverse.10} parent=8 // pred_region
          loop: start=0, step=1, limit=1
          $region25: #{reverse.10} parent=23 // loop_pre_header
            _
          $region26: #{reverse.10} parent=23 // loop_header
            %s151 = sphi 0, %s155
            %p152 = scmp.ge.s32.totalorder %s151, 1
            %s156 = sphi %s0, %s0
            %s157 = sphi [#allocation0], [#allocation0]
          $region27: #{reverse.10} parent=23 // loop_header_branch
            %154 = sbr.rel (%p152) target = $region31
          $region28: #{reverse.10} parent=23 // loop_body
            %v158 = vld [vmem:[%s156] sm:$0xff]
            %159 = vst [vmem:[%s157] sm:$0xff] %v158
            %v160 = vld [vmem:[%s156 + $0x8] sm:$0xff]
            %161 = vst [vmem:[%s157 + $0x8] sm:$0xff] %v160
            %v162 = vld [vmem:[%s156 + $0x10] sm:$0xff]
            %163 = vst [vmem:[%s157 + $0x10] sm:$0xff] %v162
            %v164 = vld [vmem:[%s156 + $0x18] sm:$0xff]
            %165 = vst [vmem:[%s157 + $0x18] sm:$0xff] %v164
            %v166 = vld [vmem:[%s156 + $0x20] sm:$0xff]
            %167 = vst [vmem:[%s157 + $0x20] sm:$0xff] %v166
            %v168 = vld [vmem:[%s156 + $0x28] sm:$0xff]
            %169 = vst [vmem:[%s157 + $0x28] sm:$0xff] %v168
            %v170 = vld [vmem:[%s156 + $0x30] sm:$0xff]
            %171 = vst [vmem:[%s157 + $0x30] sm:$0xff] %v170
            %v172 = vld [vmem:[%s156 + $0x38] sm:$0xff]
            %173 = vst [vmem:[%s157 + $0x38] sm:$0xff] %v172
            %v174 = vld [vmem:[%s156 + $0x40] sm:$0xff]
            %175 = vst [vmem:[%s157 + $0x40] sm:$0xff] %v174
            %v176 = vld [vmem:[%s156 + $0x48] sm:$0xff]
            %177 = vst [vmem:[%s157 + $0x48] sm:$0xff] %v176
            %v178 = vld [vmem:[%s156 + $0x50] sm:$0xff]
            %179 = vst [vmem:[%s157 + $0x50] sm:$0xff] %v178
            %v180 = vld [vmem:[%s156 + $0x58] sm:$0xff]
            %181 = vst [vmem:[%s157 + $0x58] sm:$0xff] %v180
            %v182 = vld [vmem:[%s156 + $0x60] sm:$0xff]
            %183 = vst [vmem:[%s157 + $0x60] sm:$0xff] %v182
            %v184 = vld [vmem:[%s156 + $0x68] sm:$0xff]
            %185 = vst [vmem:[%s157 + $0x68] sm:$0xff] %v184
            %v186 = vld [vmem:[%s156 + $0x70] sm:$0xff]
            %187 = vst [vmem:[%s157 + $0x70] sm:$0xff] %v186
            %v188 = vld [vmem:[%s156 + $0x78] sm:$0xff]
            %189 = vst [vmem:[%s157 + $0x78] sm:$0xff] %v188
            %v190 = vld [vmem:[%s156 + $0x80] sm:$0xff]
            %191 = vst [vmem:[%s157 + $0x80] sm:$0xff] %v190
            %v192 = vld [vmem:[%s156 + $0x88] sm:$0xff]
            %193 = vst [vmem:[%s157 + $0x88] sm:$0xff] %v192
            %v194 = vld [vmem:[%s156 + $0x90] sm:$0xff]
            %195 = vst [vmem:[%s157 + $0x90] sm:$0xff] %v194
            %v196 = vld [vmem:[%s156 + $0x98] sm:$0xff]
            %197 = vst [vmem:[%s157 + $0x98] sm:$0xff] %v196
            %v198 = vld [vmem:[%s156 + $0xa0] sm:$0xff]
            %199 = vst [vmem:[%s157 + $0xa0] sm:$0xff] %v198
            %v200 = vld [vmem:[%s156 + $0xa8] sm:$0xff]
            %201 = vst [vmem:[%s157 + $0xa8] sm:$0xff] %v200
            %v202 = vld [vmem:[%s156 + $0xb0] sm:$0xff]
            %203 = vst [vmem:[%s157 + $0xb0] sm:$0xff] %v202
            %v204 = vld [vmem:[%s156 + $0xb8] sm:$0xff]
            %205 = vst [vmem:[%s157 + $0xb8] sm:$0xff] %v204
            %v206 = vld [vmem:[%s156 + $0xc0] sm:$0xff]
            %207 = vst [vmem:[%s157 + $0xc0] sm:$0xff] %v206
            %v208 = vld [vmem:[%s156 + $0xc8] sm:$0xff]
            %209 = vst [vmem:[%s157 + $0xc8] sm:$0xff] %v208
            %v210 = vld [vmem:[%s156 + $0xd0] sm:$0xff]
            %211 = vst [vmem:[%s157 + $0xd0] sm:$0xff] %v210
            %v212 = vld [vmem:[%s156 + $0xd8] sm:$0xff]
            %213 = vst [vmem:[%s157 + $0xd8] sm:$0xff] %v212
            %v214 = vld [vmem:[%s156 + $0xe0] sm:$0xff]
            %215 = vst [vmem:[%s157 + $0xe0] sm:$0xff] %v214
            %v216 = vld [vmem:[%s156 + $0xe8] sm:$0xff]
            %217 = vst [vmem:[%s157 + $0xe8] sm:$0xff] %v216
            %v218 = vld [vmem:[%s156 + $0xf0] sm:$0xff]
            %219 = vst [vmem:[%s157 + $0xf0] sm:$0xff] %v218
            %v220 = vld [vmem:[%s156 + $0xf8] sm:$0xff]
            %221 = vst [vmem:[%s157 + $0xf8] sm:$0xff] %v220
            %v222 = vld [vmem:[%s156 + $0x100] sm:$0xff]
            %223 = vst [vmem:[%s157 + $0x100] sm:$0xff] %v222
            %v224 = vld [vmem:[%s156 + $0x108] sm:$0xff]
            %225 = vst [vmem:[%s157 + $0x108] sm:$0xff] %v224
            %v226 = vld [vmem:[%s156 + $0x110] sm:$0xff]
            %227 = vst [vmem:[%s157 + $0x110] sm:$0xff] %v226
            %v228 = vld [vmem:[%s156 + $0x118] sm:$0xff]
            %229 = vst [vmem:[%s157 + $0x118] sm:$0xff] %v228
            %v230 = vld [vmem:[%s156 + $0x120] sm:$0xff]
            %231 = vst [vmem:[%s157 + $0x120] sm:$0xff] %v230
            %v232 = vld [vmem:[%s156 + $0x128] sm:$0xff]
            %233 = vst [vmem:[%s157 + $0x128] sm:$0xff] %v232
            %v234 = vld [vmem:[%s156 + $0x130] sm:$0xff]
            %235 = vst [vmem:[%s157 + $0x130] sm:$0xff] %v234
            %v236 = vld [vmem:[%s156 + $0x138] sm:$0xff]
            %237 = vst [vmem:[%s157 + $0x138] sm:$0xff] %v236
            %v238 = vld [vmem:[%s156 + $0x140] sm:$0xff]
            %239 = vst [vmem:[%s157 + $0x140] sm:$0xff] %v238
            %v240 = vld [vmem:[%s156 + $0x148] sm:$0xff]
            %241 = vst [vmem:[%s157 + $0x148] sm:$0xff] %v240
            %v242 = vld [vmem:[%s156 + $0x150] sm:$0xff]
            %243 = vst [vmem:[%s157 + $0x150] sm:$0xff] %v242
            %v244 = vld [vmem:[%s156 + $0x158] sm:$0xff]
            %245 = vst [vmem:[%s157 + $0x158] sm:$0xff] %v244
            %v246 = vld [vmem:[%s156 + $0x160] sm:$0xff]
            %247 = vst [vmem:[%s157 + $0x160] sm:$0xff] %v246
            %v248 = vld [vmem:[%s156 + $0x168] sm:$0xff]
            %249 = vst [vmem:[%s157 + $0x168] sm:$0xff] %v248
            %v250 = vld [vmem:[%s156 + $0x170] sm:$0xff]
            %251 = vst [vmem:[%s157 + $0x170] sm:$0xff] %v250
            %v252 = vld [vmem:[%s156 + $0x178] sm:$0xff]
            %253 = vst [vmem:[%s157 + $0x178] sm:$0xff] %v252
            %v254 = vld [vmem:[%s156 + $0x180] sm:$0xff]
            %255 = vst [vmem:[%s157 + $0x180] sm:$0xff] %v254
            %v256 = vld [vmem:[%s156 + $0x188] sm:$0xff]
            %257 = vst [vmem:[%s157 + $0x188] sm:$0xff] %v256
            %v258 = vld [vmem:[%s156 + $0x190] sm:$0xff]
            %259 = vst [vmem:[%s157 + $0x190] sm:$0xff] %v258
            %v260 = vld [vmem:[%s156 + $0x198] sm:$0xff]
            %261 = vst [vmem:[%s157 + $0x198] sm:$0xff] %v260
            %v262 = vld [vmem:[%s156 + $0x1a0] sm:$0xff]
            %263 = vst [vmem:[%s157 + $0x1a0] sm:$0xff] %v262
            %v264 = vld [vmem:[%s156 + $0x1a8] sm:$0xff]
            %265 = vst [vmem:[%s157 + $0x1a8] sm:$0xff] %v264
            %v266 = vld [vmem:[%s156 + $0x1b0] sm:$0xff]
            %267 = vst [vmem:[%s157 + $0x1b0] sm:$0xff] %v266
            %v268 = vld [vmem:[%s156 + $0x1b8] sm:$0xff]
            %269 = vst [vmem:[%s157 + $0x1b8] sm:$0xff] %v268
            %v270 = vld [vmem:[%s156 + $0x1c0] sm:$0xff]
            %271 = vst [vmem:[%s157 + $0x1c0] sm:$0xff] %v270
            %v272 = vld [vmem:[%s156 + $0x1c8] sm:$0xff]
            %273 = vst [vmem:[%s157 + $0x1c8] sm:$0xff] %v272
            %v274 = vld [vmem:[%s156 + $0x1d0] sm:$0xff]
            %275 = vst [vmem:[%s157 + $0x1d0] sm:$0xff] %v274
            %v276 = vld [vmem:[%s156 + $0x1d8] sm:$0xff]
            %277 = vst [vmem:[%s157 + $0x1d8] sm:$0xff] %v276
            %v278 = vld [vmem:[%s156 + $0x1e0] sm:$0xff]
            %279 = vst [vmem:[%s157 + $0x1e0] sm:$0xff] %v278
            %v280 = vld [vmem:[%s156 + $0x1e8] sm:$0xff]
            %281 = vst [vmem:[%s157 + $0x1e8] sm:$0xff] %v280
            %v282 = vld [vmem:[%s156 + $0x1f0] sm:$0xff]
            %283 = vst [vmem:[%s157 + $0x1f0] sm:$0xff] %v282
            %v284 = vld [vmem:[%s156 + $0x1f8] sm:$0xff]
            %285 = vst [vmem:[%s157 + $0x1f8] sm:$0xff] %v284
          $region29: #{reverse.10} parent=23 // loop_footer
            %s155 = sadd.s32 1, %s151
          $region30: #{reverse.10} parent=23 // loop_footer_branch
            %150 = sbr.rel target = $region26
          $region31: #{reverse.10} parent=23 // loop_exit
            _
        $region24: #{reverse.10} parent=8 // pred_fallthru
          _
        // Predicated region
        $region32: #{reverse.10} parent=8 // pred_check
          _
        $region33: #{reverse.10} parent=8 // pred_check_branch
          %287 = sbr.rel target = $region35
        $region34: #{reverse.10} parent=8 // pred_region
          _
        $region35: #{reverse.10} parent=8 // pred_fallthru
          _
      $region9: #{reverse.10} parent=4 // pred_fallthru
        _
      // Predicated region
      $region10: #{reverse.10} parent=4 // pred_check
        _
      $region11: #{reverse.10} parent=4 // pred_check_branch
        %10 = sbr.rel target = $region13
      $region12: #{reverse.10} parent=4 // pred_region
        loop: start=0, step=1, limit=1
        $region14: #{reverse.10} parent=12 // loop_pre_header
          _
        $region15: #{reverse.10} parent=12 // loop_header
          %s13 = sphi 0, %s17
          %p14 = scmp.ge.s32.totalorder %s13, 1
          %s18 = sphi %s0, %s0
          %s19 = sphi [#allocation0], [#allocation0]
        $region16: #{reverse.10} parent=12 // loop_header_branch
          %16 = sbr.rel (%p14) target = $region20
        $region17: #{reverse.10} parent=12 // loop_body
          %v20 = vld [vmem:[%s18] sm:$0xff]
          %21 = vst [vmem:[%s19] sm:$0xff] %v20
          %v22 = vld [vmem:[%s18 + $0x8] sm:$0xff]
          %23 = vst [vmem:[%s19 + $0x8] sm:$0xff] %v22
          %v24 = vld [vmem:[%s18 + $0x10] sm:$0xff]
          %25 = vst [vmem:[%s19 + $0x10] sm:$0xff] %v24
          %v26 = vld [vmem:[%s18 + $0x18] sm:$0xff]
          %27 = vst [vmem:[%s19 + $0x18] sm:$0xff] %v26
          %v28 = vld [vmem:[%s18 + $0x20] sm:$0xff]
          %29 = vst [vmem:[%s19 + $0x20] sm:$0xff] %v28
          %v30 = vld [vmem:[%s18 + $0x28] sm:$0xff]
          %31 = vst [vmem:[%s19 + $0x28] sm:$0xff] %v30
          %v32 = vld [vmem:[%s18 + $0x30] sm:$0xff]
          %33 = vst [vmem:[%s19 + $0x30] sm:$0xff] %v32
          %v34 = vld [vmem:[%s18 + $0x38] sm:$0xff]
          %35 = vst [vmem:[%s19 + $0x38] sm:$0xff] %v34
          %v36 = vld [vmem:[%s18 + $0x40] sm:$0xff]
          %37 = vst [vmem:[%s19 + $0x40] sm:$0xff] %v36
          %v38 = vld [vmem:[%s18 + $0x48] sm:$0xff]
          %39 = vst [vmem:[%s19 + $0x48] sm:$0xff] %v38
          %v40 = vld [vmem:[%s18 + $0x50] sm:$0xff]
          %41 = vst [vmem:[%s19 + $0x50] sm:$0xff] %v40
          %v42 = vld [vmem:[%s18 + $0x58] sm:$0xff]
          %43 = vst [vmem:[%s19 + $0x58] sm:$0xff] %v42
          %v44 = vld [vmem:[%s18 + $0x60] sm:$0xff]
          %45 = vst [vmem:[%s19 + $0x60] sm:$0xff] %v44
          %v46 = vld [vmem:[%s18 + $0x68] sm:$0xff]
          %47 = vst [vmem:[%s19 + $0x68] sm:$0xff] %v46
          %v48 = vld [vmem:[%s18 + $0x70] sm:$0xff]
          %49 = vst [vmem:[%s19 + $0x70] sm:$0xff] %v48
          %v50 = vld [vmem:[%s18 + $0x78] sm:$0xff]
          %51 = vst [vmem:[%s19 + $0x78] sm:$0xff] %v50
          %v52 = vld [vmem:[%s18 + $0x80] sm:$0xff]
          %53 = vst [vmem:[%s19 + $0x80] sm:$0xff] %v52
          %v54 = vld [vmem:[%s18 + $0x88] sm:$0xff]
          %55 = vst [vmem:[%s19 + $0x88] sm:$0xff] %v54
          %v56 = vld [vmem:[%s18 + $0x90] sm:$0xff]
          %57 = vst [vmem:[%s19 + $0x90] sm:$0xff] %v56
          %v58 = vld [vmem:[%s18 + $0x98] sm:$0xff]
          %59 = vst [vmem:[%s19 + $0x98] sm:$0xff] %v58
          %v60 = vld [vmem:[%s18 + $0xa0] sm:$0xff]
          %61 = vst [vmem:[%s19 + $0xa0] sm:$0xff] %v60
          %v62 = vld [vmem:[%s18 + $0xa8] sm:$0xff]
          %63 = vst [vmem:[%s19 + $0xa8] sm:$0xff] %v62
          %v64 = vld [vmem:[%s18 + $0xb0] sm:$0xff]
          %65 = vst [vmem:[%s19 + $0xb0] sm:$0xff] %v64
          %v66 = vld [vmem:[%s18 + $0xb8] sm:$0xff]
          %67 = vst [vmem:[%s19 + $0xb8] sm:$0xff] %v66
          %v68 = vld [vmem:[%s18 + $0xc0] sm:$0xff]
          %69 = vst [vmem:[%s19 + $0xc0] sm:$0xff] %v68
          %v70 = vld [vmem:[%s18 + $0xc8] sm:$0xff]
          %71 = vst [vmem:[%s19 + $0xc8] sm:$0xff] %v70
          %v72 = vld [vmem:[%s18 + $0xd0] sm:$0xff]
          %73 = vst [vmem:[%s19 + $0xd0] sm:$0xff] %v72
          %v74 = vld [vmem:[%s18 + $0xd8] sm:$0xff]
          %75 = vst [vmem:[%s19 + $0xd8] sm:$0xff] %v74
          %v76 = vld [vmem:[%s18 + $0xe0] sm:$0xff]
          %77 = vst [vmem:[%s19 + $0xe0] sm:$0xff] %v76
          %v78 = vld [vmem:[%s18 + $0xe8] sm:$0xff]
          %79 = vst [vmem:[%s19 + $0xe8] sm:$0xff] %v78
          %v80 = vld [vmem:[%s18 + $0xf0] sm:$0xff]
          %81 = vst [vmem:[%s19 + $0xf0] sm:$0xff] %v80
          %v82 = vld [vmem:[%s18 + $0xf8] sm:$0xff]
          %83 = vst [vmem:[%s19 + $0xf8] sm:$0xff] %v82
          %v84 = vld [vmem:[%s18 + $0x100] sm:$0xff]
          %85 = vst [vmem:[%s19 + $0x100] sm:$0xff] %v84
          %v86 = vld [vmem:[%s18 + $0x108] sm:$0xff]
          %87 = vst [vmem:[%s19 + $0x108] sm:$0xff] %v86
          %v88 = vld [vmem:[%s18 + $0x110] sm:$0xff]
          %89 = vst [vmem:[%s19 + $0x110] sm:$0xff] %v88
          %v90 = vld [vmem:[%s18 + $0x118] sm:$0xff]
          %91 = vst [vmem:[%s19 + $0x118] sm:$0xff] %v90
          %v92 = vld [vmem:[%s18 + $0x120] sm:$0xff]
          %93 = vst [vmem:[%s19 + $0x120] sm:$0xff] %v92
          %v94 = vld [vmem:[%s18 + $0x128] sm:$0xff]
          %95 = vst [vmem:[%s19 + $0x128] sm:$0xff] %v94
          %v96 = vld [vmem:[%s18 + $0x130] sm:$0xff]
          %97 = vst [vmem:[%s19 + $0x130] sm:$0xff] %v96
          %v98 = vld [vmem:[%s18 + $0x138] sm:$0xff]
          %99 = vst [vmem:[%s19 + $0x138] sm:$0xff] %v98
          %v100 = vld [vmem:[%s18 + $0x140] sm:$0xff]
          %101 = vst [vmem:[%s19 + $0x140] sm:$0xff] %v100
          %v102 = vld [vmem:[%s18 + $0x148] sm:$0xff]
          %103 = vst [vmem:[%s19 + $0x148] sm:$0xff] %v102
          %v104 = vld [vmem:[%s18 + $0x150] sm:$0xff]
          %105 = vst [vmem:[%s19 + $0x150] sm:$0xff] %v104
          %v106 = vld [vmem:[%s18 + $0x158] sm:$0xff]
          %107 = vst [vmem:[%s19 + $0x158] sm:$0xff] %v106
          %v108 = vld [vmem:[%s18 + $0x160] sm:$0xff]
          %109 = vst [vmem:[%s19 + $0x160] sm:$0xff] %v108
          %v110 = vld [vmem:[%s18 + $0x168] sm:$0xff]
          %111 = vst [vmem:[%s19 + $0x168] sm:$0xff] %v110
          %v112 = vld [vmem:[%s18 + $0x170] sm:$0xff]
          %113 = vst [vmem:[%s19 + $0x170] sm:$0xff] %v112
          %v114 = vld [vmem:[%s18 + $0x178] sm:$0xff]
          %115 = vst [vmem:[%s19 + $0x178] sm:$0xff] %v114
          %v116 = vld [vmem:[%s18 + $0x180] sm:$0xff]
          %117 = vst [vmem:[%s19 + $0x180] sm:$0xff] %v116
          %v118 = vld [vmem:[%s18 + $0x188] sm:$0xff]
          %119 = vst [vmem:[%s19 + $0x188] sm:$0xff] %v118
          %v120 = vld [vmem:[%s18 + $0x190] sm:$0xff]
          %121 = vst [vmem:[%s19 + $0x190] sm:$0xff] %v120
          %v122 = vld [vmem:[%s18 + $0x198] sm:$0xff]
          %123 = vst [vmem:[%s19 + $0x198] sm:$0xff] %v122
          %v124 = vld [vmem:[%s18 + $0x1a0] sm:$0xff]
          %125 = vst [vmem:[%s19 + $0x1a0] sm:$0xff] %v124
          %v126 = vld [vmem:[%s18 + $0x1a8] sm:$0xff]
          %127 = vst [vmem:[%s19 + $0x1a8] sm:$0xff] %v126
          %v128 = vld [vmem:[%s18 + $0x1b0] sm:$0xff]
          %129 = vst [vmem:[%s19 + $0x1b0] sm:$0xff] %v128
          %v130 = vld [vmem:[%s18 + $0x1b8] sm:$0xff]
          %131 = vst [vmem:[%s19 + $0x1b8] sm:$0xff] %v130
          %v132 = vld [vmem:[%s18 + $0x1c0] sm:$0xff]
          %133 = vst [vmem:[%s19 + $0x1c0] sm:$0xff] %v132
          %v134 = vld [vmem:[%s18 + $0x1c8] sm:$0xff]
          %135 = vst [vmem:[%s19 + $0x1c8] sm:$0xff] %v134
          %v136 = vld [vmem:[%s18 + $0x1d0] sm:$0xff]
          %137 = vst [vmem:[%s19 + $0x1d0] sm:$0xff] %v136
          %v138 = vld [vmem:[%s18 + $0x1d8] sm:$0xff]
          %139 = vst [vmem:[%s19 + $0x1d8] sm:$0xff] %v138
          %v140 = vld [vmem:[%s18 + $0x1e0] sm:$0xff]
          %141 = vst [vmem:[%s19 + $0x1e0] sm:$0xff] %v140
          %v142 = vld [vmem:[%s18 + $0x1e8] sm:$0xff]
          %143 = vst [vmem:[%s19 + $0x1e8] sm:$0xff] %v142
          %v144 = vld [vmem:[%s18 + $0x1f0] sm:$0xff]
          %145 = vst [vmem:[%s19 + $0x1f0] sm:$0xff] %v144
          %v146 = vld [vmem:[%s18 + $0x1f8] sm:$0xff]
          %147 = vst [vmem:[%s19 + $0x1f8] sm:$0xff] %v146
        $region18: #{reverse.10} parent=12 // loop_footer
          %s17 = sadd.s32 1, %s13
        $region19: #{reverse.10} parent=12 // loop_footer_branch
          %12 = sbr.rel target = $region15
        $region20: #{reverse.10} parent=12 // loop_exit
          _
      $region13: #{reverse.10} parent=4 // pred_fallthru
        _
    $region5: #{reverse.10} parent=1 // pred_fallthru
      _
    %288 = vnop
    %v289 = vld [vmem:[#allocation0] sm:$0xff]
    %290 = vperm.xlu0 %4, %v289
    %v291 = vpop.permute.xlu0 %290
    %292 = vst [vmem:[#allocation1] sm:$0xff] %v291
    %s293 = scalar_lea.vmem [#allocation1], 8
    %s294 = scalar_lea.vmem [#allocation0], 8
    %v295 = vld [vmem:[%s294] sm:$0xff]
    %296 = vperm.xlu0 %4, %v295
    %v297 = vpop.permute.xlu0 %296
    %298 = vst [vmem:[%s293] sm:$0xff] %v297
    %s299 = scalar_lea.vmem [#allocation1], 16
    %s300 = scalar_lea.vmem [#allocation0], 16
    %v301 = vld [vmem:[%s300] sm:$0xff]
    %302 = vperm.xlu0 %4, %v301
    %v303 = vpop.permute.xlu0 %302
    %304 = vst [vmem:[%s299] sm:$0xff] %v303
    %s305 = scalar_lea.vmem %s299, 8 [#allocation1]
    %s306 = scalar_lea.vmem %s300, 8 [#allocation0]
    %v307 = vld [vmem:[%s306] sm:$0xff]
    %308 = vperm.xlu0 %4, %v307
    %v309 = vpop.permute.xlu0 %308
    %310 = vst [vmem:[%s305] sm:$0xff] %v309
    %s311 = scalar_lea.vmem [#allocation1], 32
    %s312 = scalar_lea.vmem [#allocation0], 32
    %v313 = vld [vmem:[%s312] sm:$0xff]
    %314 = vperm.xlu0 %4, %v313
    %v315 = vpop.permute.xlu0 %314
    %316 = vst [vmem:[%s311] sm:$0xff] %v315
    %s317 = scalar_lea.vmem %s311, 8 [#allocation1]
    %s318 = scalar_lea.vmem %s312, 8 [#allocation0]
    %v319 = vld [vmem:[%s318] sm:$0xff]
    %320 = vperm.xlu0 %4, %v319
    %v321 = vpop.permute.xlu0 %320
    %322 = vst [vmem:[%s317] sm:$0xff] %v321
    %s323 = scalar_lea.vmem [#allocation1], 48
    %s324 = scalar_lea.vmem [#allocation0], 48
    %v325 = vld [vmem:[%s324] sm:$0xff]
    %326 = vperm.xlu0 %4, %v325
    %v327 = vpop.permute.xlu0 %326
    %328 = vst [vmem:[%s323] sm:$0xff] %v327
    %s329 = scalar_lea.vmem %s323, 8 [#allocation1]
    %s330 = scalar_lea.vmem %s324, 8 [#allocation0]
    %v331 = vld [vmem:[%s330] sm:$0xff]
    %332 = vperm.xlu0 %4, %v331
    %v333 = vpop.permute.xlu0 %332
    %334 = vst [vmem:[%s329] sm:$0xff] %v333
    %s335 = scalar_lea.vmem [#allocation1], 64
    %s336 = scalar_lea.vmem [#allocation0], 64
    %v337 = vld [vmem:[%s336] sm:$0xff]
    %338 = vperm.xlu0 %4, %v337
    %v339 = vpop.permute.xlu0 %338
    %340 = vst [vmem:[%s335] sm:$0xff] %v339
    %s341 = scalar_lea.vmem %s335, 8 [#allocation1]
    %s342 = scalar_lea.vmem %s336, 8 [#allocation0]
    %v343 = vld [vmem:[%s342] sm:$0xff]
    %344 = vperm.xlu0 %4, %v343
    %v345 = vpop.permute.xlu0 %344
    %346 = vst [vmem:[%s341] sm:$0xff] %v345
    %s347 = scalar_lea.vmem [#allocation1], 80
    %s348 = scalar_lea.vmem [#allocation0], 80
    %v349 = vld [vmem:[%s348] sm:$0xff]
    %350 = vperm.xlu0 %4, %v349
    %v351 = vpop.permute.xlu0 %350
    %352 = vst [vmem:[%s347] sm:$0xff] %v351
    %s353 = scalar_lea.vmem %s347, 8 [#allocation1]
    %s354 = scalar_lea.vmem %s348, 8 [#allocation0]
    %v355 = vld [vmem:[%s354] sm:$0xff]
    %356 = vperm.xlu0 %4, %v355
    %v357 = vpop.permute.xlu0 %356
    %358 = vst [vmem:[%s353] sm:$0xff] %v357
    %s359 = scalar_lea.vmem [#allocation1], 96
    %s360 = scalar_lea.vmem [#allocation0], 96
    %v361 = vld [vmem:[%s360] sm:$0xff]
    %362 = vperm.xlu0 %4, %v361
    %v363 = vpop.permute.xlu0 %362
    %364 = vst [vmem:[%s359] sm:$0xff] %v363
    %s365 = scalar_lea.vmem %s359, 8 [#allocation1]
    %s366 = scalar_lea.vmem %s360, 8 [#allocation0]
    %v367 = vld [vmem:[%s366] sm:$0xff]
    %368 = vperm.xlu0 %4, %v367
    %v369 = vpop.permute.xlu0 %368
    %370 = vst [vmem:[%s365] sm:$0xff] %v369
    %s371 = scalar_lea.vmem [#allocation1], 112
    %s372 = scalar_lea.vmem [#allocation0], 112
    %v373 = vld [vmem:[%s372] sm:$0xff]
    %374 = vperm.xlu0 %4, %v373
    %v375 = vpop.permute.xlu0 %374
    %376 = vst [vmem:[%s371] sm:$0xff] %v375
    %s377 = scalar_lea.vmem %s371, 8 [#allocation1]
    %s378 = scalar_lea.vmem %s372, 8 [#allocation0]
    %v379 = vld [vmem:[%s378] sm:$0xff]
    %380 = vperm.xlu0 %4, %v379
    %v381 = vpop.permute.xlu0 %380
    %382 = vst [vmem:[%s377] sm:$0xff] %v381
    %s383 = scalar_lea.vmem [#allocation1], 128
    %s384 = scalar_lea.vmem [#allocation0], 128
    %v385 = vld [vmem:[%s384] sm:$0xff]
    %386 = vperm.xlu0 %4, %v385
    %v387 = vpop.permute.xlu0 %386
    %388 = vst [vmem:[%s383] sm:$0xff] %v387
    %s389 = scalar_lea.vmem %s383, 8 [#allocation1]
    %s390 = scalar_lea.vmem %s384, 8 [#allocation0]
    %v391 = vld [vmem:[%s390] sm:$0xff]
    %392 = vperm.xlu0 %4, %v391
    %v393 = vpop.permute.xlu0 %392
    %394 = vst [vmem:[%s389] sm:$0xff] %v393
    %s395 = scalar_lea.vmem [#allocation1], 144
    %s396 = scalar_lea.vmem [#allocation0], 144
    %v397 = vld [vmem:[%s396] sm:$0xff]
    %398 = vperm.xlu0 %4, %v397
    %v399 = vpop.permute.xlu0 %398
    %400 = vst [vmem:[%s395] sm:$0xff] %v399
    %s401 = scalar_lea.vmem %s395, 8 [#allocation1]
    %s402 = scalar_lea.vmem %s396, 8 [#allocation0]
    %v403 = vld [vmem:[%s402] sm:$0xff]
    %404 = vperm.xlu0 %4, %v403
    %v405 = vpop.permute.xlu0 %404
    %406 = vst [vmem:[%s401] sm:$0xff] %v405
    %s407 = scalar_lea.vmem [#allocation1], 160
    %s408 = scalar_lea.vmem [#allocation0], 160
    %v409 = vld [vmem:[%s408] sm:$0xff]
    %410 = vperm.xlu0 %4, %v409
    %v411 = vpop.permute.xlu0 %410
    %412 = vst [vmem:[%s407] sm:$0xff] %v411
    %s413 = scalar_lea.vmem %s407, 8 [#allocation1]
    %s414 = scalar_lea.vmem %s408, 8 [#allocation0]
    %v415 = vld [vmem:[%s414] sm:$0xff]
    %416 = vperm.xlu0 %4, %v415
    %v417 = vpop.permute.xlu0 %416
    %418 = vst [vmem:[%s413] sm:$0xff] %v417
    %s419 = scalar_lea.vmem [#allocation1], 176
    %s420 = scalar_lea.vmem [#allocation0], 176
    %v421 = vld [vmem:[%s420] sm:$0xff]
    %422 = vperm.xlu0 %4, %v421
    %v423 = vpop.permute.xlu0 %422
    %424 = vst [vmem:[%s419] sm:$0xff] %v423
    %s425 = scalar_lea.vmem %s419, 8 [#allocation1]
    %s426 = scalar_lea.vmem %s420, 8 [#allocation0]
    %v427 = vld [vmem:[%s426] sm:$0xff]
    %428 = vperm.xlu0 %4, %v427
    %v429 = vpop.permute.xlu0 %428
    %430 = vst [vmem:[%s425] sm:$0xff] %v429
    %s431 = scalar_lea.vmem [#allocation1], 192
    %s432 = scalar_lea.vmem [#allocation0], 192
    %v433 = vld [vmem:[%s432] sm:$0xff]
    %434 = vperm.xlu0 %4, %v433
    %v435 = vpop.permute.xlu0 %434
    %436 = vst [vmem:[%s431] sm:$0xff] %v435
    %s437 = scalar_lea.vmem %s431, 8 [#allocation1]
    %s438 = scalar_lea.vmem %s432, 8 [#allocation0]
    %v439 = vld [vmem:[%s438] sm:$0xff]
    %440 = vperm.xlu0 %4, %v439
    %v441 = vpop.permute.xlu0 %440
    %442 = vst [vmem:[%s437] sm:$0xff] %v441
    %s443 = scalar_lea.vmem [#allocation1], 208
    %s444 = scalar_lea.vmem [#allocation0], 208
    %v445 = vld [vmem:[%s444] sm:$0xff]
    %446 = vperm.xlu0 %4, %v445
    %v447 = vpop.permute.xlu0 %446
    %448 = vst [vmem:[%s443] sm:$0xff] %v447
    %s449 = scalar_lea.vmem %s443, 8 [#allocation1]
    %s450 = scalar_lea.vmem %s444, 8 [#allocation0]
    %v451 = vld [vmem:[%s450] sm:$0xff]
    %452 = vperm.xlu0 %4, %v451
    %v453 = vpop.permute.xlu0 %452
    %454 = vst [vmem:[%s449] sm:$0xff] %v453
    %s455 = scalar_lea.vmem [#allocation1], 224
    %s456 = scalar_lea.vmem [#allocation0], 224
    %v457 = vld [vmem:[%s456] sm:$0xff]
    %458 = vperm.xlu0 %4, %v457
    %v459 = vpop.permute.xlu0 %458
    %460 = vst [vmem:[%s455] sm:$0xff] %v459
    %s461 = scalar_lea.vmem %s455, 8 [#allocation1]
    %s462 = scalar_lea.vmem %s456, 8 [#allocation0]
    %v463 = vld [vmem:[%s462] sm:$0xff]
    %464 = vperm.xlu0 %4, %v463
    %v465 = vpop.permute.xlu0 %464
    %466 = vst [vmem:[%s461] sm:$0xff] %v465
    %s467 = scalar_lea.vmem [#allocation1], 240
    %s468 = scalar_lea.vmem [#allocation0], 240
    %v469 = vld [vmem:[%s468] sm:$0xff]
    %470 = vperm.xlu0 %4, %v469
    %v471 = vpop.permute.xlu0 %470
    %472 = vst [vmem:[%s467] sm:$0xff] %v471
    %s473 = scalar_lea.vmem %s467, 8 [#allocation1]
    %s474 = scalar_lea.vmem %s468, 8 [#allocation0]
    %v475 = vld [vmem:[%s474] sm:$0xff]
    %476 = vperm.xlu0 %4, %v475
    %v477 = vpop.permute.xlu0 %476
    %478 = vst [vmem:[%s473] sm:$0xff] %v477
    %s479 = scalar_lea.vmem [#allocation1], 256
    %s480 = scalar_lea.vmem [#allocation0], 256
    %v481 = vld [vmem:[%s480] sm:$0xff]
    %482 = vperm.xlu0 %4, %v481
    %v483 = vpop.permute.xlu0 %482
    %484 = vst [vmem:[%s479] sm:$0xff] %v483
    %s485 = scalar_lea.vmem %s479, 8 [#allocation1]
    %s486 = scalar_lea.vmem %s480, 8 [#allocation0]
    %v487 = vld [vmem:[%s486] sm:$0xff]
    %488 = vperm.xlu0 %4, %v487
    %v489 = vpop.permute.xlu0 %488
    %490 = vst [vmem:[%s485] sm:$0xff] %v489
    %s491 = scalar_lea.vmem [#allocation1], 272
    %s492 = scalar_lea.vmem [#allocation0], 272
    %v493 = vld [vmem:[%s492] sm:$0xff]
    %494 = vperm.xlu0 %4, %v493
    %v495 = vpop.permute.xlu0 %494
    %496 = vst [vmem:[%s491] sm:$0xff] %v495
    %s497 = scalar_lea.vmem %s491, 8 [#allocation1]
    %s498 = scalar_lea.vmem %s492, 8 [#allocation0]
    %v499 = vld [vmem:[%s498] sm:$0xff]
    %500 = vperm.xlu0 %4, %v499
    %v501 = vpop.permute.xlu0 %500
    %502 = vst [vmem:[%s497] sm:$0xff] %v501
    %s503 = scalar_lea.vmem [#allocation1], 288
    %s504 = scalar_lea.vmem [#allocation0], 288
    %v505 = vld [vmem:[%s504] sm:$0xff]
    %506 = vperm.xlu0 %4, %v505
    %v507 = vpop.permute.xlu0 %506
    %508 = vst [vmem:[%s503] sm:$0xff] %v507
    %s509 = scalar_lea.vmem %s503, 8 [#allocation1]
    %s510 = scalar_lea.vmem %s504, 8 [#allocation0]
    %v511 = vld [vmem:[%s510] sm:$0xff]
    %512 = vperm.xlu0 %4, %v511
    %v513 = vpop.permute.xlu0 %512
    %514 = vst [vmem:[%s509] sm:$0xff] %v513
    %s515 = scalar_lea.vmem [#allocation1], 304
    %s516 = scalar_lea.vmem [#allocation0], 304
    %v517 = vld [vmem:[%s516] sm:$0xff]
    %518 = vperm.xlu0 %4, %v517
    %v519 = vpop.permute.xlu0 %518
    %520 = vst [vmem:[%s515] sm:$0xff] %v519
    %s521 = scalar_lea.vmem %s515, 8 [#allocation1]
    %s522 = scalar_lea.vmem %s516, 8 [#allocation0]
    %v523 = vld [vmem:[%s522] sm:$0xff]
    %524 = vperm.xlu0 %4, %v523
    %v525 = vpop.permute.xlu0 %524
    %526 = vst [vmem:[%s521] sm:$0xff] %v525
    %s527 = scalar_lea.vmem [#allocation1], 320
    %s528 = scalar_lea.vmem [#allocation0], 320
    %v529 = vld [vmem:[%s528] sm:$0xff]
    %530 = vperm.xlu0 %4, %v529
    %v531 = vpop.permute.xlu0 %530
    %532 = vst [vmem:[%s527] sm:$0xff] %v531
    %s533 = scalar_lea.vmem %s527, 8 [#allocation1]
    %s534 = scalar_lea.vmem %s528, 8 [#allocation0]
    %v535 = vld [vmem:[%s534] sm:$0xff]
    %536 = vperm.xlu0 %4, %v535
    %v537 = vpop.permute.xlu0 %536
    %538 = vst [vmem:[%s533] sm:$0xff] %v537
    %s539 = scalar_lea.vmem [#allocation1], 336
    %s540 = scalar_lea.vmem [#allocation0], 336
    %v541 = vld [vmem:[%s540] sm:$0xff]
    %542 = vperm.xlu0 %4, %v541
    %v543 = vpop.permute.xlu0 %542
    %544 = vst [vmem:[%s539] sm:$0xff] %v543
    %s545 = scalar_lea.vmem %s539, 8 [#allocation1]
    %s546 = scalar_lea.vmem %s540, 8 [#allocation0]
    %v547 = vld [vmem:[%s546] sm:$0xff]
    %548 = vperm.xlu0 %4, %v547
    %v549 = vpop.permute.xlu0 %548
    %550 = vst [vmem:[%s545] sm:$0xff] %v549
    %s551 = scalar_lea.vmem [#allocation1], 352
    %s552 = scalar_lea.vmem [#allocation0], 352
    %v553 = vld [vmem:[%s552] sm:$0xff]
    %554 = vperm.xlu0 %4, %v553
    %v555 = vpop.permute.xlu0 %554
    %556 = vst [vmem:[%s551] sm:$0xff] %v555
    %s557 = scalar_lea.vmem %s551, 8 [#allocation1]
    %s558 = scalar_lea.vmem %s552, 8 [#allocation0]
    %v559 = vld [vmem:[%s558] sm:$0xff]
    %560 = vperm.xlu0 %4, %v559
    %v561 = vpop.permute.xlu0 %560
    %562 = vst [vmem:[%s557] sm:$0xff] %v561
    %s563 = scalar_lea.vmem [#allocation1], 368
    %s564 = scalar_lea.vmem [#allocation0], 368
    %v565 = vld [vmem:[%s564] sm:$0xff]
    %566 = vperm.xlu0 %4, %v565
    %v567 = vpop.permute.xlu0 %566
    %568 = vst [vmem:[%s563] sm:$0xff] %v567
    %s569 = scalar_lea.vmem %s563, 8 [#allocation1]
    %s570 = scalar_lea.vmem %s564, 8 [#allocation0]
    %v571 = vld [vmem:[%s570] sm:$0xff]
    %572 = vperm.xlu0 %4, %v571
    %v573 = vpop.permute.xlu0 %572
    %574 = vst [vmem:[%s569] sm:$0xff] %v573
    %s575 = scalar_lea.vmem [#allocation1], 384
    %s576 = scalar_lea.vmem [#allocation0], 384
    %v577 = vld [vmem:[%s576] sm:$0xff]
    %578 = vperm.xlu0 %4, %v577
    %v579 = vpop.permute.xlu0 %578
    %580 = vst [vmem:[%s575] sm:$0xff] %v579
    %s581 = scalar_lea.vmem %s575, 8 [#allocation1]
    %s582 = scalar_lea.vmem %s576, 8 [#allocation0]
    %v583 = vld [vmem:[%s582] sm:$0xff]
    %584 = vperm.xlu0 %4, %v583
    %v585 = vpop.permute.xlu0 %584
    %586 = vst [vmem:[%s581] sm:$0xff] %v585
    %s587 = scalar_lea.vmem [#allocation1], 400
    %s588 = scalar_lea.vmem [#allocation0], 400
    %v589 = vld [vmem:[%s588] sm:$0xff]
    %590 = vperm.xlu0 %4, %v589
    %v591 = vpop.permute.xlu0 %590
    %592 = vst [vmem:[%s587] sm:$0xff] %v591
    %s593 = scalar_lea.vmem %s587, 8 [#allocation1]
    %s594 = scalar_lea.vmem %s588, 8 [#allocation0]
    %v595 = vld [vmem:[%s594] sm:$0xff]
    %596 = vperm.xlu0 %4, %v595
    %v597 = vpop.permute.xlu0 %596
    %598 = vst [vmem:[%s593] sm:$0xff] %v597
    %s599 = scalar_lea.vmem [#allocation1], 416
    %s600 = scalar_lea.vmem [#allocation0], 416
    %v601 = vld [vmem:[%s600] sm:$0xff]
    %602 = vperm.xlu0 %4, %v601
    %v603 = vpop.permute.xlu0 %602
    %604 = vst [vmem:[%s599] sm:$0xff] %v603
    %s605 = scalar_lea.vmem %s599, 8 [#allocation1]
    %s606 = scalar_lea.vmem %s600, 8 [#allocation0]
    %v607 = vld [vmem:[%s606] sm:$0xff]
    %608 = vperm.xlu0 %4, %v607
    %v609 = vpop.permute.xlu0 %608
    %610 = vst [vmem:[%s605] sm:$0xff] %v609
    %s611 = scalar_lea.vmem [#allocation1], 432
    %s612 = scalar_lea.vmem [#allocation0], 432
    %v613 = vld [vmem:[%s612] sm:$0xff]
    %614 = vperm.xlu0 %4, %v613
    %v615 = vpop.permute.xlu0 %614
    %616 = vst [vmem:[%s611] sm:$0xff] %v615
    %s617 = scalar_lea.vmem %s611, 8 [#allocation1]
    %s618 = scalar_lea.vmem %s612, 8 [#allocation0]
    %v619 = vld [vmem:[%s618] sm:$0xff]
    %620 = vperm.xlu0 %4, %v619
    %v621 = vpop.permute.xlu0 %620
    %622 = vst [vmem:[%s617] sm:$0xff] %v621
    %s623 = scalar_lea.vmem [#allocation1], 448
    %s624 = scalar_lea.vmem [#allocation0], 448
    %v625 = vld [vmem:[%s624] sm:$0xff]
    %626 = vperm.xlu0 %4, %v625
    %v627 = vpop.permute.xlu0 %626
    %628 = vst [vmem:[%s623] sm:$0xff] %v627
    %s629 = scalar_lea.vmem %s623, 8 [#allocation1]
    %s630 = scalar_lea.vmem %s624, 8 [#allocation0]
    %v631 = vld [vmem:[%s630] sm:$0xff]
    %632 = vperm.xlu0 %4, %v631
    %v633 = vpop.permute.xlu0 %632
    %634 = vst [vmem:[%s629] sm:$0xff] %v633
    %s635 = scalar_lea.vmem [#allocation1], 464
    %s636 = scalar_lea.vmem [#allocation0], 464
    %v637 = vld [vmem:[%s636] sm:$0xff]
    %638 = vperm.xlu0 %4, %v637
    %v639 = vpop.permute.xlu0 %638
    %640 = vst [vmem:[%s635] sm:$0xff] %v639
    %s641 = scalar_lea.vmem %s635, 8 [#allocation1]
    %s642 = scalar_lea.vmem %s636, 8 [#allocation0]
    %v643 = vld [vmem:[%s642] sm:$0xff]
    %644 = vperm.xlu0 %4, %v643
    %v645 = vpop.permute.xlu0 %644
    %646 = vst [vmem:[%s641] sm:$0xff] %v645
    %s647 = scalar_lea.vmem [#allocation1], 480
    %s648 = scalar_lea.vmem [#allocation0], 480
    %v649 = vld [vmem:[%s648] sm:$0xff]
    %650 = vperm.xlu0 %4, %v649
    %v651 = vpop.permute.xlu0 %650
    %652 = vst [vmem:[%s647] sm:$0xff] %v651
    %s653 = scalar_lea.vmem %s647, 8 [#allocation1]
    %s654 = scalar_lea.vmem %s648, 8 [#allocation0]
    %v655 = vld [vmem:[%s654] sm:$0xff]
    %656 = vperm.xlu0 %4, %v655
    %v657 = vpop.permute.xlu0 %656
    %658 = vst [vmem:[%s653] sm:$0xff] %v657
    %s659 = scalar_lea.vmem [#allocation1], 496
    %s660 = scalar_lea.vmem [#allocation0], 496
    %v661 = vld [vmem:[%s660] sm:$0xff]
    %662 = vperm.xlu0 %4, %v661
    %v663 = vpop.permute.xlu0 %662
    %664 = vst [vmem:[%s659] sm:$0xff] %v663
    %s665 = scalar_lea.vmem %s659, 8 [#allocation1]
    %s666 = scalar_lea.vmem %s660, 8 [#allocation0]
    %v667 = vld [vmem:[%s666] sm:$0xff]
    %668 = vperm.xlu0 %4, %v667
    %v669 = vpop.permute.xlu0 %668
    %670 = vst [vmem:[%s665] sm:$0xff] %v669
    // Predicated region
    $region36: #{reverse.10} parent=1 // pred_check
      _
    $region37: #{reverse.10} parent=1 // pred_check_branch
      %672 = sbr.rel (0) target = $region39
    $region38: #{reverse.10} parent=1 // pred_region
      // Predicated region
      $region40: #{reverse.10} parent=38 // pred_check
        _
      $region41: #{reverse.10} parent=38 // pred_check_branch
        %674 = sbr.rel (0) target = $region43
      $region42: #{reverse.10} parent=38 // pred_region
        // Predicated region
        $region55: #{reverse.10} parent=42 // pred_check
          _
        $region56: #{reverse.10} parent=42 // pred_check_branch
          %815 = sbr.rel (0) target = $region58
        $region57: #{reverse.10} parent=42 // pred_region
          loop: start=0, step=1, limit=1
          $region59: #{reverse.10} parent=57 // loop_pre_header
            _
          $region60: #{reverse.10} parent=57 // loop_header
            %s817 = sphi 0, %s821
            %p818 = scmp.ge.s32.totalorder %s817, 1
            %s822 = sphi [#allocation1], [#allocation1]
            %s823 = sphi %s1, %s1
          $region61: #{reverse.10} parent=57 // loop_header_branch
            %820 = sbr.rel (%p818) target = $region65
          $region62: #{reverse.10} parent=57 // loop_body
            %v824 = vld [vmem:[%s822] sm:$0xff]
            %825 = vst [vmem:[%s823] sm:$0xff] %v824
            %v826 = vld [vmem:[%s822 + $0x8] sm:$0xff]
            %827 = vst [vmem:[%s823 + $0x8] sm:$0xff] %v826
            %v828 = vld [vmem:[%s822 + $0x10] sm:$0xff]
            %829 = vst [vmem:[%s823 + $0x10] sm:$0xff] %v828
            %v830 = vld [vmem:[%s822 + $0x18] sm:$0xff]
            %831 = vst [vmem:[%s823 + $0x18] sm:$0xff] %v830
            %v832 = vld [vmem:[%s822 + $0x20] sm:$0xff]
            %833 = vst [vmem:[%s823 + $0x20] sm:$0xff] %v832
            %v834 = vld [vmem:[%s822 + $0x28] sm:$0xff]
            %835 = vst [vmem:[%s823 + $0x28] sm:$0xff] %v834
            %v836 = vld [vmem:[%s822 + $0x30] sm:$0xff]
            %837 = vst [vmem:[%s823 + $0x30] sm:$0xff] %v836
            %v838 = vld [vmem:[%s822 + $0x38] sm:$0xff]
            %839 = vst [vmem:[%s823 + $0x38] sm:$0xff] %v838
            %v840 = vld [vmem:[%s822 + $0x40] sm:$0xff]
            %841 = vst [vmem:[%s823 + $0x40] sm:$0xff] %v840
            %v842 = vld [vmem:[%s822 + $0x48] sm:$0xff]
            %843 = vst [vmem:[%s823 + $0x48] sm:$0xff] %v842
            %v844 = vld [vmem:[%s822 + $0x50] sm:$0xff]
            %845 = vst [vmem:[%s823 + $0x50] sm:$0xff] %v844
            %v846 = vld [vmem:[%s822 + $0x58] sm:$0xff]
            %847 = vst [vmem:[%s823 + $0x58] sm:$0xff] %v846
            %v848 = vld [vmem:[%s822 + $0x60] sm:$0xff]
            %849 = vst [vmem:[%s823 + $0x60] sm:$0xff] %v848
            %v850 = vld [vmem:[%s822 + $0x68] sm:$0xff]
            %851 = vst [vmem:[%s823 + $0x68] sm:$0xff] %v850
            %v852 = vld [vmem:[%s822 + $0x70] sm:$0xff]
            %853 = vst [vmem:[%s823 + $0x70] sm:$0xff] %v852
            %v854 = vld [vmem:[%s822 + $0x78] sm:$0xff]
            %855 = vst [vmem:[%s823 + $0x78] sm:$0xff] %v854
            %v856 = vld [vmem:[%s822 + $0x80] sm:$0xff]
            %857 = vst [vmem:[%s823 + $0x80] sm:$0xff] %v856
            %v858 = vld [vmem:[%s822 + $0x88] sm:$0xff]
            %859 = vst [vmem:[%s823 + $0x88] sm:$0xff] %v858
            %v860 = vld [vmem:[%s822 + $0x90] sm:$0xff]
            %861 = vst [vmem:[%s823 + $0x90] sm:$0xff] %v860
            %v862 = vld [vmem:[%s822 + $0x98] sm:$0xff]
            %863 = vst [vmem:[%s823 + $0x98] sm:$0xff] %v862
            %v864 = vld [vmem:[%s822 + $0xa0] sm:$0xff]
            %865 = vst [vmem:[%s823 + $0xa0] sm:$0xff] %v864
            %v866 = vld [vmem:[%s822 + $0xa8] sm:$0xff]
            %867 = vst [vmem:[%s823 + $0xa8] sm:$0xff] %v866
            %v868 = vld [vmem:[%s822 + $0xb0] sm:$0xff]
            %869 = vst [vmem:[%s823 + $0xb0] sm:$0xff] %v868
            %v870 = vld [vmem:[%s822 + $0xb8] sm:$0xff]
            %871 = vst [vmem:[%s823 + $0xb8] sm:$0xff] %v870
            %v872 = vld [vmem:[%s822 + $0xc0] sm:$0xff]
            %873 = vst [vmem:[%s823 + $0xc0] sm:$0xff] %v872
            %v874 = vld [vmem:[%s822 + $0xc8] sm:$0xff]
            %875 = vst [vmem:[%s823 + $0xc8] sm:$0xff] %v874
            %v876 = vld [vmem:[%s822 + $0xd0] sm:$0xff]
            %877 = vst [vmem:[%s823 + $0xd0] sm:$0xff] %v876
            %v878 = vld [vmem:[%s822 + $0xd8] sm:$0xff]
            %879 = vst [vmem:[%s823 + $0xd8] sm:$0xff] %v878
            %v880 = vld [vmem:[%s822 + $0xe0] sm:$0xff]
            %881 = vst [vmem:[%s823 + $0xe0] sm:$0xff] %v880
            %v882 = vld [vmem:[%s822 + $0xe8] sm:$0xff]
            %883 = vst [vmem:[%s823 + $0xe8] sm:$0xff] %v882
            %v884 = vld [vmem:[%s822 + $0xf0] sm:$0xff]
            %885 = vst [vmem:[%s823 + $0xf0] sm:$0xff] %v884
            %v886 = vld [vmem:[%s822 + $0xf8] sm:$0xff]
            %887 = vst [vmem:[%s823 + $0xf8] sm:$0xff] %v886
            %v888 = vld [vmem:[%s822 + $0x100] sm:$0xff]
            %889 = vst [vmem:[%s823 + $0x100] sm:$0xff] %v888
            %v890 = vld [vmem:[%s822 + $0x108] sm:$0xff]
            %891 = vst [vmem:[%s823 + $0x108] sm:$0xff] %v890
            %v892 = vld [vmem:[%s822 + $0x110] sm:$0xff]
            %893 = vst [vmem:[%s823 + $0x110] sm:$0xff] %v892
            %v894 = vld [vmem:[%s822 + $0x118] sm:$0xff]
            %895 = vst [vmem:[%s823 + $0x118] sm:$0xff] %v894
            %v896 = vld [vmem:[%s822 + $0x120] sm:$0xff]
            %897 = vst [vmem:[%s823 + $0x120] sm:$0xff] %v896
            %v898 = vld [vmem:[%s822 + $0x128] sm:$0xff]
            %899 = vst [vmem:[%s823 + $0x128] sm:$0xff] %v898
            %v900 = vld [vmem:[%s822 + $0x130] sm:$0xff]
            %901 = vst [vmem:[%s823 + $0x130] sm:$0xff] %v900
            %v902 = vld [vmem:[%s822 + $0x138] sm:$0xff]
            %903 = vst [vmem:[%s823 + $0x138] sm:$0xff] %v902
            %v904 = vld [vmem:[%s822 + $0x140] sm:$0xff]
            %905 = vst [vmem:[%s823 + $0x140] sm:$0xff] %v904
            %v906 = vld [vmem:[%s822 + $0x148] sm:$0xff]
            %907 = vst [vmem:[%s823 + $0x148] sm:$0xff] %v906
            %v908 = vld [vmem:[%s822 + $0x150] sm:$0xff]
            %909 = vst [vmem:[%s823 + $0x150] sm:$0xff] %v908
            %v910 = vld [vmem:[%s822 + $0x158] sm:$0xff]
            %911 = vst [vmem:[%s823 + $0x158] sm:$0xff] %v910
            %v912 = vld [vmem:[%s822 + $0x160] sm:$0xff]
            %913 = vst [vmem:[%s823 + $0x160] sm:$0xff] %v912
            %v914 = vld [vmem:[%s822 + $0x168] sm:$0xff]
            %915 = vst [vmem:[%s823 + $0x168] sm:$0xff] %v914
            %v916 = vld [vmem:[%s822 + $0x170] sm:$0xff]
            %917 = vst [vmem:[%s823 + $0x170] sm:$0xff] %v916
            %v918 = vld [vmem:[%s822 + $0x178] sm:$0xff]
            %919 = vst [vmem:[%s823 + $0x178] sm:$0xff] %v918
            %v920 = vld [vmem:[%s822 + $0x180] sm:$0xff]
            %921 = vst [vmem:[%s823 + $0x180] sm:$0xff] %v920
            %v922 = vld [vmem:[%s822 + $0x188] sm:$0xff]
            %923 = vst [vmem:[%s823 + $0x188] sm:$0xff] %v922
            %v924 = vld [vmem:[%s822 + $0x190] sm:$0xff]
            %925 = vst [vmem:[%s823 + $0x190] sm:$0xff] %v924
            %v926 = vld [vmem:[%s822 + $0x198] sm:$0xff]
            %927 = vst [vmem:[%s823 + $0x198] sm:$0xff] %v926
            %v928 = vld [vmem:[%s822 + $0x1a0] sm:$0xff]
            %929 = vst [vmem:[%s823 + $0x1a0] sm:$0xff] %v928
            %v930 = vld [vmem:[%s822 + $0x1a8] sm:$0xff]
            %931 = vst [vmem:[%s823 + $0x1a8] sm:$0xff] %v930
            %v932 = vld [vmem:[%s822 + $0x1b0] sm:$0xff]
            %933 = vst [vmem:[%s823 + $0x1b0] sm:$0xff] %v932
            %v934 = vld [vmem:[%s822 + $0x1b8] sm:$0xff]
            %935 = vst [vmem:[%s823 + $0x1b8] sm:$0xff] %v934
            %v936 = vld [vmem:[%s822 + $0x1c0] sm:$0xff]
            %937 = vst [vmem:[%s823 + $0x1c0] sm:$0xff] %v936
            %v938 = vld [vmem:[%s822 + $0x1c8] sm:$0xff]
            %939 = vst [vmem:[%s823 + $0x1c8] sm:$0xff] %v938
            %v940 = vld [vmem:[%s822 + $0x1d0] sm:$0xff]
            %941 = vst [vmem:[%s823 + $0x1d0] sm:$0xff] %v940
            %v942 = vld [vmem:[%s822 + $0x1d8] sm:$0xff]
            %943 = vst [vmem:[%s823 + $0x1d8] sm:$0xff] %v942
            %v944 = vld [vmem:[%s822 + $0x1e0] sm:$0xff]
            %945 = vst [vmem:[%s823 + $0x1e0] sm:$0xff] %v944
            %v946 = vld [vmem:[%s822 + $0x1e8] sm:$0xff]
            %947 = vst [vmem:[%s823 + $0x1e8] sm:$0xff] %v946
            %v948 = vld [vmem:[%s822 + $0x1f0] sm:$0xff]
            %949 = vst [vmem:[%s823 + $0x1f0] sm:$0xff] %v948
            %v950 = vld [vmem:[%s822 + $0x1f8] sm:$0xff]
            %951 = vst [vmem:[%s823 + $0x1f8] sm:$0xff] %v950
          $region63: #{reverse.10} parent=57 // loop_footer
            %s821 = sadd.s32 1, %s817
          $region64: #{reverse.10} parent=57 // loop_footer_branch
            %816 = sbr.rel target = $region60
          $region65: #{reverse.10} parent=57 // loop_exit
            _
        $region58: #{reverse.10} parent=42 // pred_fallthru
          _
        // Predicated region
        $region66: #{reverse.10} parent=42 // pred_check
          _
        $region67: #{reverse.10} parent=42 // pred_check_branch
          %953 = sbr.rel target = $region69
        $region68: #{reverse.10} parent=42 // pred_region
          _
        $region69: #{reverse.10} parent=42 // pred_fallthru
          _
      $region43: #{reverse.10} parent=38 // pred_fallthru
        _
      // Predicated region
      $region44: #{reverse.10} parent=38 // pred_check
        _
      $region45: #{reverse.10} parent=38 // pred_check_branch
        %676 = sbr.rel target = $region47
      $region46: #{reverse.10} parent=38 // pred_region
        loop: start=0, step=1, limit=1
        $region48: #{reverse.10} parent=46 // loop_pre_header
          _
        $region49: #{reverse.10} parent=46 // loop_header
          %s679 = sphi 0, %s683
          %p680 = scmp.ge.s32.totalorder %s679, 1
          %s684 = sphi [#allocation1], [#allocation1]
          %s685 = sphi %s1, %s1
        $region50: #{reverse.10} parent=46 // loop_header_branch
          %682 = sbr.rel (%p680) target = $region54
        $region51: #{reverse.10} parent=46 // loop_body
          %v686 = vld [vmem:[%s684] sm:$0xff]
          %687 = vst [vmem:[%s685] sm:$0xff] %v686
          %v688 = vld [vmem:[%s684 + $0x8] sm:$0xff]
          %689 = vst [vmem:[%s685 + $0x8] sm:$0xff] %v688
          %v690 = vld [vmem:[%s684 + $0x10] sm:$0xff]
          %691 = vst [vmem:[%s685 + $0x10] sm:$0xff] %v690
          %v692 = vld [vmem:[%s684 + $0x18] sm:$0xff]
          %693 = vst [vmem:[%s685 + $0x18] sm:$0xff] %v692
          %v694 = vld [vmem:[%s684 + $0x20] sm:$0xff]
          %695 = vst [vmem:[%s685 + $0x20] sm:$0xff] %v694
          %v696 = vld [vmem:[%s684 + $0x28] sm:$0xff]
          %697 = vst [vmem:[%s685 + $0x28] sm:$0xff] %v696
          %v698 = vld [vmem:[%s684 + $0x30] sm:$0xff]
          %699 = vst [vmem:[%s685 + $0x30] sm:$0xff] %v698
          %v700 = vld [vmem:[%s684 + $0x38] sm:$0xff]
          %701 = vst [vmem:[%s685 + $0x38] sm:$0xff] %v700
          %v702 = vld [vmem:[%s684 + $0x40] sm:$0xff]
          %703 = vst [vmem:[%s685 + $0x40] sm:$0xff] %v702
          %v704 = vld [vmem:[%s684 + $0x48] sm:$0xff]
          %705 = vst [vmem:[%s685 + $0x48] sm:$0xff] %v704
          %v706 = vld [vmem:[%s684 + $0x50] sm:$0xff]
          %707 = vst [vmem:[%s685 + $0x50] sm:$0xff] %v706
          %v708 = vld [vmem:[%s684 + $0x58] sm:$0xff]
          %709 = vst [vmem:[%s685 + $0x58] sm:$0xff] %v708
          %v710 = vld [vmem:[%s684 + $0x60] sm:$0xff]
          %711 = vst [vmem:[%s685 + $0x60] sm:$0xff] %v710
          %v712 = vld [vmem:[%s684 + $0x68] sm:$0xff]
          %713 = vst [vmem:[%s685 + $0x68] sm:$0xff] %v712
          %v714 = vld [vmem:[%s684 + $0x70] sm:$0xff]
          %715 = vst [vmem:[%s685 + $0x70] sm:$0xff] %v714
          %v716 = vld [vmem:[%s684 + $0x78] sm:$0xff]
          %717 = vst [vmem:[%s685 + $0x78] sm:$0xff] %v716
          %v718 = vld [vmem:[%s684 + $0x80] sm:$0xff]
          %719 = vst [vmem:[%s685 + $0x80] sm:$0xff] %v718
          %v720 = vld [vmem:[%s684 + $0x88] sm:$0xff]
          %721 = vst [vmem:[%s685 + $0x88] sm:$0xff] %v720
          %v722 = vld [vmem:[%s684 + $0x90] sm:$0xff]
          %723 = vst [vmem:[%s685 + $0x90] sm:$0xff] %v722
          %v724 = vld [vmem:[%s684 + $0x98] sm:$0xff]
          %725 = vst [vmem:[%s685 + $0x98] sm:$0xff] %v724
          %v726 = vld [vmem:[%s684 + $0xa0] sm:$0xff]
          %727 = vst [vmem:[%s685 + $0xa0] sm:$0xff] %v726
          %v728 = vld [vmem:[%s684 + $0xa8] sm:$0xff]
          %729 = vst [vmem:[%s685 + $0xa8] sm:$0xff] %v728
          %v730 = vld [vmem:[%s684 + $0xb0] sm:$0xff]
          %731 = vst [vmem:[%s685 + $0xb0] sm:$0xff] %v730
          %v732 = vld [vmem:[%s684 + $0xb8] sm:$0xff]
          %733 = vst [vmem:[%s685 + $0xb8] sm:$0xff] %v732
          %v734 = vld [vmem:[%s684 + $0xc0] sm:$0xff]
          %735 = vst [vmem:[%s685 + $0xc0] sm:$0xff] %v734
          %v736 = vld [vmem:[%s684 + $0xc8] sm:$0xff]
          %737 = vst [vmem:[%s685 + $0xc8] sm:$0xff] %v736
          %v738 = vld [vmem:[%s684 + $0xd0] sm:$0xff]
          %739 = vst [vmem:[%s685 + $0xd0] sm:$0xff] %v738
          %v740 = vld [vmem:[%s684 + $0xd8] sm:$0xff]
          %741 = vst [vmem:[%s685 + $0xd8] sm:$0xff] %v740
          %v742 = vld [vmem:[%s684 + $0xe0] sm:$0xff]
          %743 = vst [vmem:[%s685 + $0xe0] sm:$0xff] %v742
          %v744 = vld [vmem:[%s684 + $0xe8] sm:$0xff]
          %745 = vst [vmem:[%s685 + $0xe8] sm:$0xff] %v744
          %v746 = vld [vmem:[%s684 + $0xf0] sm:$0xff]
          %747 = vst [vmem:[%s685 + $0xf0] sm:$0xff] %v746
          %v748 = vld [vmem:[%s684 + $0xf8] sm:$0xff]
          %749 = vst [vmem:[%s685 + $0xf8] sm:$0xff] %v748
          %v750 = vld [vmem:[%s684 + $0x100] sm:$0xff]
          %751 = vst [vmem:[%s685 + $0x100] sm:$0xff] %v750
          %v752 = vld [vmem:[%s684 + $0x108] sm:$0xff]
          %753 = vst [vmem:[%s685 + $0x108] sm:$0xff] %v752
          %v754 = vld [vmem:[%s684 + $0x110] sm:$0xff]
          %755 = vst [vmem:[%s685 + $0x110] sm:$0xff] %v754
          %v756 = vld [vmem:[%s684 + $0x118] sm:$0xff]
          %757 = vst [vmem:[%s685 + $0x118] sm:$0xff] %v756
          %v758 = vld [vmem:[%s684 + $0x120] sm:$0xff]
          %759 = vst [vmem:[%s685 + $0x120] sm:$0xff] %v758
          %v760 = vld [vmem:[%s684 + $0x128] sm:$0xff]
          %761 = vst [vmem:[%s685 + $0x128] sm:$0xff] %v760
          %v762 = vld [vmem:[%s684 + $0x130] sm:$0xff]
          %763 = vst [vmem:[%s685 + $0x130] sm:$0xff] %v762
          %v764 = vld [vmem:[%s684 + $0x138] sm:$0xff]
          %765 = vst [vmem:[%s685 + $0x138] sm:$0xff] %v764
          %v766 = vld [vmem:[%s684 + $0x140] sm:$0xff]
          %767 = vst [vmem:[%s685 + $0x140] sm:$0xff] %v766
          %v768 = vld [vmem:[%s684 + $0x148] sm:$0xff]
          %769 = vst [vmem:[%s685 + $0x148] sm:$0xff] %v768
          %v770 = vld [vmem:[%s684 + $0x150] sm:$0xff]
          %771 = vst [vmem:[%s685 + $0x150] sm:$0xff] %v770
          %v772 = vld [vmem:[%s684 + $0x158] sm:$0xff]
          %773 = vst [vmem:[%s685 + $0x158] sm:$0xff] %v772
          %v774 = vld [vmem:[%s684 + $0x160] sm:$0xff]
          %775 = vst [vmem:[%s685 + $0x160] sm:$0xff] %v774
          %v776 = vld [vmem:[%s684 + $0x168] sm:$0xff]
          %777 = vst [vmem:[%s685 + $0x168] sm:$0xff] %v776
          %v778 = vld [vmem:[%s684 + $0x170] sm:$0xff]
          %779 = vst [vmem:[%s685 + $0x170] sm:$0xff] %v778
          %v780 = vld [vmem:[%s684 + $0x178] sm:$0xff]
          %781 = vst [vmem:[%s685 + $0x178] sm:$0xff] %v780
          %v782 = vld [vmem:[%s684 + $0x180] sm:$0xff]
          %783 = vst [vmem:[%s685 + $0x180] sm:$0xff] %v782
          %v784 = vld [vmem:[%s684 + $0x188] sm:$0xff]
          %785 = vst [vmem:[%s685 + $0x188] sm:$0xff] %v784
          %v786 = vld [vmem:[%s684 + $0x190] sm:$0xff]
          %787 = vst [vmem:[%s685 + $0x190] sm:$0xff] %v786
          %v788 = vld [vmem:[%s684 + $0x198] sm:$0xff]
          %789 = vst [vmem:[%s685 + $0x198] sm:$0xff] %v788
          %v790 = vld [vmem:[%s684 + $0x1a0] sm:$0xff]
          %791 = vst [vmem:[%s685 + $0x1a0] sm:$0xff] %v790
          %v792 = vld [vmem:[%s684 + $0x1a8] sm:$0xff]
          %793 = vst [vmem:[%s685 + $0x1a8] sm:$0xff] %v792
          %v794 = vld [vmem:[%s684 + $0x1b0] sm:$0xff]
          %795 = vst [vmem:[%s685 + $0x1b0] sm:$0xff] %v794
          %v796 = vld [vmem:[%s684 + $0x1b8] sm:$0xff]
          %797 = vst [vmem:[%s685 + $0x1b8] sm:$0xff] %v796
          %v798 = vld [vmem:[%s684 + $0x1c0] sm:$0xff]
          %799 = vst [vmem:[%s685 + $0x1c0] sm:$0xff] %v798
          %v800 = vld [vmem:[%s684 + $0x1c8] sm:$0xff]
          %801 = vst [vmem:[%s685 + $0x1c8] sm:$0xff] %v800
          %v802 = vld [vmem:[%s684 + $0x1d0] sm:$0xff]
          %803 = vst [vmem:[%s685 + $0x1d0] sm:$0xff] %v802
          %v804 = vld [vmem:[%s684 + $0x1d8] sm:$0xff]
          %805 = vst [vmem:[%s685 + $0x1d8] sm:$0xff] %v804
          %v806 = vld [vmem:[%s684 + $0x1e0] sm:$0xff]
          %807 = vst [vmem:[%s685 + $0x1e0] sm:$0xff] %v806
          %v808 = vld [vmem:[%s684 + $0x1e8] sm:$0xff]
          %809 = vst [vmem:[%s685 + $0x1e8] sm:$0xff] %v808
          %v810 = vld [vmem:[%s684 + $0x1f0] sm:$0xff]
          %811 = vst [vmem:[%s685 + $0x1f0] sm:$0xff] %v810
          %v812 = vld [vmem:[%s684 + $0x1f8] sm:$0xff]
          %813 = vst [vmem:[%s685 + $0x1f8] sm:$0xff] %v812
        $region52: #{reverse.10} parent=46 // loop_footer
          %s683 = sadd.s32 1, %s679
        $region53: #{reverse.10} parent=46 // loop_footer_branch
          %678 = sbr.rel target = $region49
        $region54: #{reverse.10} parent=46 // loop_exit
          _
      $region47: #{reverse.10} parent=38 // pred_fallthru
        _
    $region39: #{reverse.10} parent=1 // pred_fallthru
      _
    %954 = vnop

// kernel: _lambda_.11
$region0: #{_lambda_.11}
  #allocation0 [shape = 'u32[]', space=smem, size = 0x4, offset = 0x4, fixed_abs, tag = 'smem constant byte address 0x4 - core index']
  #allocation1 [shape = 'u32[144,128]{1,0:T(1,128)}', space=vmem, size = 0x12000, scoped, tag = 'internal scratch']
  %s0 = inlined_call_operand.vmem [shape: f32[512,16], index: 0, kind: input, shape index: {}]
  %s1 = inlined_call_operand.vmem [shape: f32[16,32], index: 1, kind: input, shape index: {}]
  %s2 = inlined_call_operand.vmem [shape: f32[1,32], index: 2, kind: input, shape index: {}]
  %s3 = inlined_call_operand.vmem [shape: f32[32,16], index: 3, kind: input, shape index: {}]
  %s4 = inlined_call_operand.vmem [shape: f32[1,16], index: 4, kind: input, shape index: {}]
  %s5 = inlined_call_operand.vmem [shape: f32[512,16], index: 5, kind: input, shape index: {}]
  %s6 = inlined_call_operand.vmem [shape: f32[512,16], index: 6, kind: output, shape index: {}]
  %s7 = sld [smem:[#allocation0]]
  $region57: #{_lambda_.11} parent=0
    _
  %s9 = ssub.s32 1, %s7
  %s10 = scalar_select 0, %s9, %s7
  loop: start=0, step=1, limit=6
  $region2: #{_lambda_.11} parent=0 // loop_pre_header
    _
  $region3: #{_lambda_.11} parent=0 // loop_header
    %s12 = sphi 0, %s16
    %p13 = scmp.ge.s32.totalorder %s12, 6
    %s22 = sphi 0, %s24
    %s25 = sphi 0, %s22
    %s26 = sphi 0, %s25
    %s42 = sphi 0, %s26
    %s46 = sphi 0, %s46
    %s48 = sphi 0, %s46
    %s49 = sphi 0, %s48
    %s63 = sphi 0, %s49
    %s67 = sphi 0, %s67
    %s69 = sphi 0, %s67
    %s70 = sphi 0, %s69
    %s84 = sphi 0, %s70
    %s88 = sphi 0, %s88
    %s90 = sphi 0, %s88
    %s91 = sphi 0, %s90
    %s105 = sphi 0, %s91
    %s109 = sphi 0, %s109
    %s111 = sphi 0, %s109
    %s112 = sphi 0, %s111
    %s126 = sphi 0, %s112
    %s132 = sphi 0, %s134
    %s135 = sphi 0, %s132
    %s136 = sphi 0, %s135
    %s152 = sphi 0, %s136
    %s158 = sphi 0, %s160
    %s161 = sphi 0, %s158
    %s162 = sphi 0, %s161
    %s178 = sphi 0, %s162
  $region4: #{_lambda_.11} parent=0 // loop_header_branch
    %15 = sbr.rel (%p13) target = $region8
  $region5: #{_lambda_.11} parent=0 // loop_body
    %s17 = ssub.s32 %s12, 1
    %s18 = ssub.s32 %s12, 2
    %s19 = sadd.s32 %s12, 1
    %s20 = ssub.s32 %s12, %s19
    %p21 = scmp.eq.s32.totalorder %s20, 0
    %s23 = sadd.s32 %s22, 1
    %s24 = scalar_select %p21, %s22, %s23
    %p27 = pneg %p21
    %p28 = scmp.eq.s32.totalorder %s12, 3
    %p29 = por %p27, %p28
    %p30 = scmp.ne.s32.totalorder %s22, %s25
    %p31 = scmp.eq.s32.totalorder %s12, 0
    %p32 = por %p30, %p31
    %p33 = scmp.ne.s32.totalorder %s22, %s25
    %p34 = scmp.eq.s32.totalorder %s17, 3
    %p35 = por %p33, %p34
    %p36 = scmp.ne.s32.totalorder %s25, %s26
    %p37 = scmp.eq.s32.totalorder %s17, 0
    %p38 = por %p36, %p37
    %p39 = scmp.ne.s32.totalorder %s25, %s26
    %p40 = scmp.eq.s32.totalorder %s18, 3
    %p41 = por %p39, %p40
    %p43 = scmp.ne.s32.totalorder %s26, %s42
    %p44 = scmp.eq.s32.totalorder %s18, 0
    %p45 = por %p43, %p44
    %s47 = sadd.s32 %s46, 1
    %p50 = scmp.eq.s32.totalorder %s12, 3
    %p51 = scmp.ne.s32.totalorder %s46, %s48
    %p52 = scmp.eq.s32.totalorder %s12, 0
    %p53 = por %p51, %p52
    %p54 = scmp.ne.s32.totalorder %s46, %s48
    %p55 = scmp.eq.s32.totalorder %s17, 3
    %p56 = por %p54, %p55
    %p57 = scmp.ne.s32.totalorder %s48, %s49
    %p58 = scmp.eq.s32.totalorder %s17, 0
    %p59 = por %p57, %p58
    %p60 = scmp.ne.s32.totalorder %s48, %s49
    %p61 = scmp.eq.s32.totalorder %s18, 3
    %p62 = por %p60, %p61
    %p64 = scmp.ne.s32.totalorder %s49, %s63
    %p65 = scmp.eq.s32.totalorder %s18, 0
    %p66 = por %p64, %p65
    %s68 = sadd.s32 %s67, 1
    %p71 = scmp.eq.s32.totalorder %s12, 3
    %p72 = scmp.ne.s32.totalorder %s67, %s69
    %p73 = scmp.eq.s32.totalorder %s12, 0
    %p74 = por %p72, %p73
    %p75 = scmp.ne.s32.totalorder %s67, %s69
    %p76 = scmp.eq.s32.totalorder %s17, 3
    %p77 = por %p75, %p76
    %p78 = scmp.ne.s32.totalorder %s69, %s70
    %p79 = scmp.eq.s32.totalorder %s17, 0
    %p80 = por %p78, %p79
    %p81 = scmp.ne.s32.totalorder %s69, %s70
    %p82 = scmp.eq.s32.totalorder %s18, 3
    %p83 = por %p81, %p82
    %p85 = scmp.ne.s32.totalorder %s70, %s84
    %p86 = scmp.eq.s32.totalorder %s18, 0
    %p87 = por %p85, %p86
    %s89 = sadd.s32 %s88, 1
    %p92 = scmp.eq.s32.totalorder %s12, 3
    %p93 = scmp.ne.s32.totalorder %s88, %s90
    %p94 = scmp.eq.s32.totalorder %s12, 0
    %p95 = por %p93, %p94
    %p96 = scmp.ne.s32.totalorder %s88, %s90
    %p97 = scmp.eq.s32.totalorder %s17, 3
    %p98 = por %p96, %p97
    %p99 = scmp.ne.s32.totalorder %s90, %s91
    %p100 = scmp.eq.s32.totalorder %s17, 0
    %p101 = por %p99, %p100
    %p102 = scmp.ne.s32.totalorder %s90, %s91
    %p103 = scmp.eq.s32.totalorder %s18, 3
    %p104 = por %p102, %p103
    %p106 = scmp.ne.s32.totalorder %s91, %s105
    %p107 = scmp.eq.s32.totalorder %s18, 0
    %p108 = por %p106, %p107
    %s110 = sadd.s32 %s109, 1
    %p113 = scmp.eq.s32.totalorder %s12, 3
    %p114 = scmp.ne.s32.totalorder %s109, %s111
    %p115 = scmp.eq.s32.totalorder %s12, 0
    %p116 = por %p114, %p115
    %p117 = scmp.ne.s32.totalorder %s109, %s111
    %p118 = scmp.eq.s32.totalorder %s17, 3
    %p119 = por %p117, %p118
    %p120 = scmp.ne.s32.totalorder %s111, %s112
    %p121 = scmp.eq.s32.totalorder %s17, 0
    %p122 = por %p120, %p121
    %p123 = scmp.ne.s32.totalorder %s111, %s112
    %p124 = scmp.eq.s32.totalorder %s18, 3
    %p125 = por %p123, %p124
    %p127 = scmp.ne.s32.totalorder %s112, %s126
    %p128 = scmp.eq.s32.totalorder %s18, 0
    %p129 = por %p127, %p128
    %s130 = ssub.s32 %s12, %s19
    %p131 = scmp.eq.s32.totalorder %s130, 0
    %s133 = sadd.s32 %s132, 1
    %s134 = scalar_select %p131, %s132, %s133
    %p137 = pneg %p131
    %p138 = scmp.eq.s32.totalorder %s12, 3
    %p139 = por %p137, %p138
    %p140 = scmp.ne.s32.totalorder %s132, %s135
    %p141 = scmp.eq.s32.totalorder %s12, 0
    %p142 = por %p140, %p141
    %p143 = scmp.ne.s32.totalorder %s132, %s135
    %p144 = scmp.eq.s32.totalorder %s17, 3
    %p145 = por %p143, %p144
    %p146 = scmp.ne.s32.totalorder %s135, %s136
    %p147 = scmp.eq.s32.totalorder %s17, 0
    %p148 = por %p146, %p147
    %p149 = scmp.ne.s32.totalorder %s135, %s136
    %p150 = scmp.eq.s32.totalorder %s18, 3
    %p151 = por %p149, %p150
    %p153 = scmp.ne.s32.totalorder %s136, %s152
    %p154 = scmp.eq.s32.totalorder %s18, 0
    %p155 = por %p153, %p154
    %s156 = ssub.s32 %s12, %s19
    %p157 = scmp.eq.s32.totalorder %s156, 0
    %s159 = sadd.s32 %s158, 1
    %s160 = scalar_select %p157, %s158, %s159
    %p163 = pneg %p157
    %p164 = scmp.eq.s32.totalorder %s12, 3
    %p165 = por %p163, %p164
    %p166 = scmp.ne.s32.totalorder %s158, %s161
    %p167 = scmp.eq.s32.totalorder %s12, 0
    %p168 = por %p166, %p167
    %p169 = scmp.ne.s32.totalorder %s158, %s161
    %p170 = scmp.eq.s32.totalorder %s17, 3
    %p171 = por %p169, %p170
    %p172 = scmp.ne.s32.totalorder %s161, %s162
    %p173 = scmp.eq.s32.totalorder %s17, 0
    %p174 = por %p172, %p173
    %p175 = scmp.ne.s32.totalorder %s161, %s162
    %p176 = scmp.eq.s32.totalorder %s18, 3
    %p177 = por %p175, %p176
    %p179 = scmp.ne.s32.totalorder %s162, %s178
    %p180 = scmp.eq.s32.totalorder %s18, 0
    %p181 = por %p179, %p180
    %p182 = scmp.le.s32.totalorder 1, %s12
    %p183 = scmp.lt.s32.totalorder %s12, 5
    %p184 = pnand %p182, %p183
    %p185 = pneg %p184
    // Predicated region
    $region9: #{_lambda_.11} parent=5 // pred_check
      _
    $region10: #{_lambda_.11} parent=5 // pred_check_branch
      %187 = sbr.rel (%p184) target = $region12
    $region11: #{_lambda_.11} parent=5 // pred_region
      %s188 = ssub.s32 %s12, 1
      // Predicated region
      $region13: #{_lambda_.11} parent=11 // pred_check
        %p189 = pneg %p59
      $region14: #{_lambda_.11} parent=11 // pred_check_branch
        %191 = sbr.rel (%p189) target = $region16
      $region15: #{_lambda_.11} parent=11 // pred_region
        _
      $region16: #{_lambda_.11} parent=11 // pred_fallthru
        _
      // Predicated region
      $region17: #{_lambda_.11} parent=11 // pred_check
        %p192 = pneg %p80
      $region18: #{_lambda_.11} parent=11 // pred_check_branch
        %194 = sbr.rel (%p192) target = $region20
      $region19: #{_lambda_.11} parent=11 // pred_region
        _
      $region20: #{_lambda_.11} parent=11 // pred_fallthru
        _
      // Predicated region
      $region21: #{_lambda_.11} parent=11 // pred_check
        %p195 = pneg %p101
      $region22: #{_lambda_.11} parent=11 // pred_check_branch
        %197 = sbr.rel (%p195) target = $region24
      $region23: #{_lambda_.11} parent=11 // pred_region
        _
      $region24: #{_lambda_.11} parent=11 // pred_fallthru
        _
      // Predicated region
      $region25: #{_lambda_.11} parent=11 // pred_check
        %p198 = pneg %p122
      $region26: #{_lambda_.11} parent=11 // pred_check_branch
        %200 = sbr.rel (%p198) target = $region28
      $region27: #{_lambda_.11} parent=11 // pred_region
        _
      $region28: #{_lambda_.11} parent=11 // pred_fallthru
        _
    $region12: #{_lambda_.11} parent=5 // pred_fallthru
      _
    %p201 = scmp.lt.s32.totalorder %s12, 4
    // Predicated region
    $region29: #{_lambda_.11} parent=5 // pred_check
      %p202 = pneg %p201
    $region30: #{_lambda_.11} parent=5 // pred_check_branch
      %204 = sbr.rel (%p202) target = $region32
    $region31: #{_lambda_.11} parent=5 // pred_region
      // Predicated region
      $region33: #{_lambda_.11} parent=31 // pred_check
        %p205 = pneg %p32
      $region34: #{_lambda_.11} parent=31 // pred_check_branch
        %207 = sbr.rel (%p205) target = $region36
      $region35: #{_lambda_.11} parent=31 // pred_region
        %s208 = smul.u32 16, %s12
        %p209 = scmp.lt.s32.totalorder %s208, 63
        %s210 = scalar_select %p209, %s208, 63
        %s211 = smul.addr %s210, 8
        %s212 = scalar_lea.vmem %s0, %s211
        %s213 = smul.u32 16, %s12
      $region36: #{_lambda_.11} parent=31 // pred_fallthru
        _
      // Predicated region
      $region37: #{_lambda_.11} parent=31 // pred_check
        %p214 = pneg %p142
      $region38: #{_lambda_.11} parent=31 // pred_check_branch
        %216 = sbr.rel (%p214) target = $region40
      $region39: #{_lambda_.11} parent=31 // pred_region
        %s217 = smul.u32 16, %s12
        %p218 = scmp.lt.s32.totalorder %s217, 63
        %s219 = scalar_select %p218, %s217, 63
        %s220 = smul.addr %s219, 8
        %s221 = scalar_lea.vmem %s5, %s220
        %s222 = smul.u32 16, %s12
      $region40: #{_lambda_.11} parent=31 // pred_fallthru
        _
    $region32: #{_lambda_.11} parent=5 // pred_fallthru
      _
    %p223 = scmp.le.s32.totalorder 1, %s12
    %p224 = scmp.lt.s32.totalorder %s12, 5
    %p225 = pnand %p223, %p224
    %p226 = pneg %p225
    // Predicated region
    $region41: #{_lambda_.11} parent=5 // pred_check
      _
    $region42: #{_lambda_.11} parent=5 // pred_check_branch
      %228 = sbr.rel (%p225) target = $region44
    $region43: #{_lambda_.11} parent=5 // pred_region
      %s229 = ssub.s32 %s12, 1
      %s230 = smul.u32 16, %s17
      %p231 = scmp.lt.s32.totalorder %s230, 63
      %s232 = scalar_select %p231, %s230, 63
      %s233 = smul.addr %s232, 8
      %s234 = scalar_lea.vmem %s0, %s233
      %p235 = pneg %p38
      %p236 = pneg %p35
      %p237 = pneg %p59
      %p238 = pneg %p56
      %p239 = pneg %p80
      %p240 = pneg %p77
      %p241 = pneg %p101
      %p242 = pneg %p98
      %p243 = pneg %p122
      %p244 = pneg %p119
      %s245 = smul.u32 16, %s17
      %p246 = scmp.lt.s32.totalorder %s245, 63
      %s247 = scalar_select %p246, %s245, 63
      %s248 = smul.addr %s247, 8
      %s249 = scalar_lea.vmem %s5, %s248
      %p250 = pneg %p148
      %p251 = pneg %p145
      %p252 = pneg %p174
      %p253 = pneg %p171
      %s254 = smul.u32 16, %s17
      %p255 = scmp.lt.s32.totalorder %s254, 63
      %s256 = scalar_select %p255, %s254, 63
      %s257 = smul.addr %s256, 8
      %s258 = scalar_lea.vmem %s6, %s257
      %s259 = smul.u32 16, %s17
      %p260 = scmp.lt.s32.totalorder %s259, 63
      %s261 = scalar_select %p260, %s259, 63
      %s262 = smul.addr %s261, 8
      %s263 = scalar_lea.vmem %s0, %s262
      %s264 = smul.u32 16, %s17
      %s265 = smul.u32 16, %s17
      %p266 = scmp.lt.s32.totalorder %s265, 63
      %s267 = scalar_select %p266, %s265, 63
      %s268 = smul.addr %s267, 8
      %s269 = scalar_lea.vmem %s5, %s268
      %s270 = smul.u32 16, %s17
      %s271 = smul.u32 16, %s17
      %p272 = scmp.lt.s32.totalorder %s271, 63
      %s273 = scalar_select %p272, %s271, 63
      %s274 = smul.addr %s273, 8
      %s275 = scalar_lea.vmem %s6, %s274
      %s276 = smul.u32 16, %s17
      %v277 = vld [vmem:[%s263] sm:$0xff]
      %v278 = vld [vmem:[%s263 + $0x8] sm:$0xff]
      %v279 = vld [vmem:[%s263 + $0x10] sm:$0xff]
      %v280 = vld [vmem:[%s263 + $0x18] sm:$0xff]
      %v281 = vld [vmem:[%s263 + $0x20] sm:$0xff]
      %v282 = vld [vmem:[%s263 + $0x28] sm:$0xff]
      %v283 = vld [vmem:[%s263 + $0x30] sm:$0xff]
      %v284 = vld [vmem:[%s263 + $0x38] sm:$0xff]
      %v285 = vld [vmem:[%s263 + $0x40] sm:$0xff]
      %v286 = vld [vmem:[%s263 + $0x48] sm:$0xff]
      %v287 = vld [vmem:[%s263 + $0x50] sm:$0xff]
      %v288 = vld [vmem:[%s263 + $0x58] sm:$0xff]
      %v289 = vld [vmem:[%s263 + $0x60] sm:$0xff]
      %v290 = vld [vmem:[%s263 + $0x68] sm:$0xff]
      %v291 = vld [vmem:[%s263 + $0x70] sm:$0xff]
      %v292 = vld [vmem:[%s263 + $0x78] sm:$0xff]
      %v293 = vld [vmem:[%s1] sm:$0xff]
      %v294 = vld [vmem:[%s1 + $0x8] sm:$0xff]
      %v295 = vld [vmem:[%s2] sm:$0x1]
      %v297 = vlaneseq
      %v298 = vshrl.u32 %v297, 7
      %v299 = vsub.s32 0, %v298
      %v300 = vrot.slane %v295, %v299
      %vm302 = vcmask 130048
      %v304 = vsel %vm302, %v277, 0
      %v307 = vsel %vm302, %v278, 0
      %v310 = vsel %vm302, %v279, 0
      %v313 = vsel %vm302, %v280, 0
      %v316 = vsel %vm302, %v281, 0
      %v319 = vsel %vm302, %v282, 0
      %v322 = vsel %vm302, %v283, 0
      %v325 = vsel %vm302, %v284, 0
      %v328 = vsel %vm302, %v285, 0
      %v331 = vsel %vm302, %v286, 0
      %v334 = vsel %vm302, %v287, 0
      %v337 = vsel %vm302, %v288, 0
      %v340 = vsel %vm302, %v289, 0
      %v343 = vsel %vm302, %v290, 0
      %v346 = vsel %vm302, %v291, 0
      %v349 = vsel %vm302, %v292, 0
      %351 = vmatprep.subr.mxu0 0.0
      %352 = vmatpush1.msra.mxu0 %v293
      %353 = vmatprep.subr.mxu0 0.0
      %354 = vmatpush1.msra.mxu0 %v294
      %355 = vmatprep.subr.mxu0 0.0
      %356 = vmatpush1.msra.mxu0 0.0
      %357 = vmatprep.subr.mxu0 0.0
      %358 = vmatpush1.msra.mxu0 0.0
      %359 = vmatprep.subr.mxu0 0.0
      %360 = vmatpush1.msra.mxu0 0.0
      %361 = vmatprep.subr.mxu0 0.0
      %362 = vmatpush1.msra.mxu0 0.0
      %363 = vmatprep.subr.mxu0 0.0
      %364 = vmatpush1.msra.mxu0 0.0
      %365 = vmatprep.subr.mxu0 0.0
      %366 = vmatpush1.msra.mxu0 0.0
      %367 = vmatprep.subr.mxu0 0.0
      %368 = vmatpush1.msra.mxu0 0.0
      %369 = vmatprep.subr.mxu0 0.0
      %370 = vmatpush1.msra.mxu0 0.0
      %371 = vmatprep.subr.mxu0 0.0
      %372 = vmatpush1.msra.mxu0 0.0
      %373 = vmatprep.subr.mxu0 0.0
      %374 = vmatpush1.msra.mxu0 0.0
      %375 = vmatprep.subr.mxu0 0.0
      %376 = vmatpush1.msra.mxu0 0.0
      %377 = vmatprep.subr.mxu0 0.0
      %378 = vmatpush1.msra.mxu0 0.0
      %379 = vmatprep.subr.mxu0 0.0
      %380 = vmatpush1.msra.mxu0 0.0
      %381 = vmatprep.subr.mxu0 0.0
      %382 = vmatpush1.msra.mxu0 0.0
      %383 = vmatprep.subr.mxu0 0.0
      %384 = vmatpush1.msra.mxu0 0.0
      %385 = vmatprep.subr.mxu0 0.0
      %386 = vmatpush1.msra.mxu0 0.0
      %387 = vmatprep.subr.mxu0 0.0
      %388 = vmatpush1.msra.mxu0 0.0
      %389 = vmatprep.subr.mxu0 0.0
      %390 = vmatpush1.msra.mxu0 0.0
      %391 = vmatprep.subr.mxu0 0.0
      %392 = vmatpush1.msra.mxu0 0.0
      %393 = vmatprep.subr.mxu0 0.0
      %394 = vmatpush1.msra.mxu0 0.0
      %395 = vmatprep.subr.mxu0 0.0
      %396 = vmatpush1.msra.mxu0 0.0
      %397 = vmatprep.subr.mxu0 0.0
      %398 = vmatpush1.msra.mxu0 0.0
      %399 = vmatprep.subr.mxu0 0.0
      %400 = vmatpush1.msra.mxu0 0.0
      %401 = vmatprep.subr.mxu0 0.0
      %402 = vmatpush1.msra.mxu0 0.0
      %403 = vmatprep.subr.mxu0 0.0
      %404 = vmatpush1.msra.mxu0 0.0
      %405 = vmatprep.subr.mxu0 0.0
      %406 = vmatpush1.msra.mxu0 0.0
      %407 = vmatprep.subr.mxu0 0.0
      %408 = vmatpush1.msra.mxu0 0.0
      %409 = vmatprep.subr.mxu0 0.0
      %410 = vmatpush1.msra.mxu0 0.0
      %411 = vmatprep.subr.mxu0 0.0
      %412 = vmatpush1.msra.mxu0 0.0
      %413 = vmatprep.subr.mxu0 0.0
      %414 = vmatpush1.msra.mxu0 0.0
      %415 = vmatprep.mubr.f32.mxu0 0.0
      %416 = vmatmul.mubr.f32.gmra.mrb[0].mxu0 %v304
      %v417 = vpop.f32.mrb[0].mxu0
      %v418 = vadd.f32 %v300, %v417
      %v419 = vpop.f32.mrb[0].mxu0
      %420 = vmatprep.mubr.f32.mxu0 0.0
      %421 = vmatmul.mubr.f32.gmra.mrb[0].mxu0 %v307
      %v422 = vpop.f32.mrb[0].mxu0
      %v423 = vadd.f32 %v300, %v422
      %v424 = vpop.f32.mrb[0].mxu0
      %425 = vmatprep.mubr.f32.mxu0 0.0
      %426 = vmatmul.mubr.f32.gmra.mrb[0].mxu0 %v310
      %v427 = vpop.f32.mrb[0].mxu0
      %v428 = vadd.f32 %v300, %v427
      %v429 = vpop.f32.mrb[0].mxu0
      %430 = vmatprep.mubr.f32.mxu0 0.0
      %431 = vmatmul.mubr.f32.gmra.mrb[0].mxu0 %v313
      %v432 = vpop.f32.mrb[0].mxu0
      %v433 = vadd.f32 %v300, %v432
      %v434 = vpop.f32.mrb[0].mxu0
      %435 = vmatprep.mubr.f32.mxu0 0.0
      %436 = vmatmul.mubr.f32.gmra.mrb[0].mxu0 %v316
      %v437 = vpop.f32.mrb[0].mxu0
      %v438 = vadd.f32 %v300, %v437
      %v439 = vpop.f32.mrb[0].mxu0
      %440 = vmatprep.mubr.f32.mxu0 0.0
      %441 = vmatmul.mubr.f32.gmra.mrb[0].mxu0 %v319
      %v442 = vpop.f32.mrb[0].mxu0
      %v443 = vadd.f32 %v300, %v442
      %v444 = vpop.f32.mrb[0].mxu0
      %445 = vmatprep.mubr.f32.mxu0 0.0
      %446 = vmatmul.mubr.f32.gmra.mrb[0].mxu0 %v322
      %v447 = vpop.f32.mrb[0].mxu0
      %v448 = vadd.f32 %v300, %v447
      %v449 = vpop.f32.mrb[0].mxu0
      %450 = vmatprep.mubr.f32.mxu0 0.0
      %451 = vmatmul.mubr.f32.gmra.mrb[0].mxu0 %v325
      %v452 = vpop.f32.mrb[0].mxu0
      %v453 = vadd.f32 %v300, %v452
      %v454 = vpop.f32.mrb[0].mxu0
      %455 = vmatprep.mubr.f32.mxu0 0.0
      %456 = vmatmul.mubr.f32.gmra.mrb[0].mxu0 %v328
      %v457 = vpop.f32.mrb[0].mxu0
      %v458 = vadd.f32 %v300, %v457
      %v459 = vpop.f32.mrb[0].mxu0
      %460 = vmatprep.mubr.f32.mxu0 0.0
      %461 = vmatmul.mubr.f32.gmra.mrb[0].mxu0 %v331
      %v462 = vpop.f32.mrb[0].mxu0
      %v463 = vadd.f32 %v300, %v462
      %v464 = vpop.f32.mrb[0].mxu0
      %465 = vmatprep.mubr.f32.mxu0 0.0
      %466 = vmatmul.mubr.f32.gmra.mrb[0].mxu0 %v334
      %v467 = vpop.f32.mrb[0].mxu0
      %v468 = vadd.f32 %v300, %v467
      %v469 = vpop.f32.mrb[0].mxu0
      %470 = vmatprep.mubr.f32.mxu0 0.0
      %471 = vmatmul.mubr.f32.gmra.mrb[0].mxu0 %v337
      %v472 = vpop.f32.mrb[0].mxu0
      %v473 = vadd.f32 %v300, %v472
      %v474 = vpop.f32.mrb[0].mxu0
      %475 = vmatprep.mubr.f32.mxu0 0.0
      %476 = vmatmul.mubr.f32.gmra.mrb[0].mxu0 %v340
      %v477 = vpop.f32.mrb[0].mxu0
      %v478 = vadd.f32 %v300, %v477
      %v479 = vpop.f32.mrb[0].mxu0
      %480 = vmatprep.mubr.f32.mxu0 0.0
      %481 = vmatmul.mubr.f32.gmra.mrb[0].mxu0 %v343
      %v482 = vpop.f32.mrb[0].mxu0
      %v483 = vadd.f32 %v300, %v482
      %v484 = vpop.f32.mrb[0].mxu0
      %485 = vmatprep.mubr.f32.mxu0 0.0
      %486 = vmatmul.mubr.f32.gmra.mrb[0].mxu0 %v346
      %v487 = vpop.f32.mrb[0].mxu0
      %v488 = vadd.f32 %v300, %v487
      %v489 = vpop.f32.mrb[0].mxu0
      %490 = vmatprep.mubr.f32.mxu0 0.0
      %491 = vmatmul.mubr.f32.gmra.mrb[0].mxu0 %v349
      %v492 = vpop.f32.mrb[0].mxu0
      %v493 = vadd.f32 %v300, %v492
      %v494 = vpop.f32.mrb[0].mxu0
      %495 = vdwg.mxu0
      %v496 = vmax.f32 %v418, 0.0
      %v497 = vmax.f32 %v423, 0.0
      %v498 = vmax.f32 %v428, 0.0
      %v499 = vmax.f32 %v433, 0.0
      %v500 = vmax.f32 %v438, 0.0
      %v501 = vmax.f32 %v443, 0.0
      %v502 = vmax.f32 %v448, 0.0
      %v503 = vmax.f32 %v453, 0.0
      %v504 = vmax.f32 %v458, 0.0
      %v505 = vmax.f32 %v463, 0.0
      %v506 = vmax.f32 %v468, 0.0
      %v507 = vmax.f32 %v473, 0.0
      %v508 = vmax.f32 %v478, 0.0
      %v509 = vmax.f32 %v483, 0.0
      %v510 = vmax.f32 %v488, 0.0
      %v511 = vmax.f32 %v493, 0.0
      %v512 = vld [vmem:[%s3] sm:$0xff]
      %v513 = vld [vmem:[%s3 + $0x8] sm:$0xff]
      %v514 = vld [vmem:[%s3 + $0x10] sm:$0xff]
      %v515 = vld [vmem:[%s3 + $0x18] sm:$0xff]
      %v516 = vld [vmem:[%s4] sm:$0x1]
      %v518 = vlaneseq
      %v519 = vshrl.u32 %v518, 7
      %v520 = vsub.s32 0, %v519
      %v521 = vrot.slane %v516, %v520
      %vm523 = vcmask 261120
      %v525 = vsel %vm523, %v496, 0
      %v528 = vsel %vm523, %v497, 0
      %v531 = vsel %vm523, %v498, 0
      %v534 = vsel %vm523, %v499, 0
      %v537 = vsel %vm523, %v500, 0
      %v540 = vsel %vm523, %v501, 0
      %v543 = vsel %vm523, %v502, 0
      %v546 = vsel %vm523, %v503, 0
      %v549 = vsel %vm523, %v504, 0
      %v552 = vsel %vm523, %v505, 0
      %v555 = vsel %vm523, %v506, 0
      %v558 = vsel %vm523, %v507, 0
      %v561 = vsel %vm523, %v508, 0
      %v564 = vsel %vm523, %v509, 0
      %v567 = vsel %vm523, %v510, 0
      %v570 = vsel %vm523, %v511, 0
      %572 = vmatprep.subr.mxu0 0.0
      %573 = vmatpush1.msra.mxu0 %v512
      %574 = vmatprep.subr.mxu0 0.0
      %575 = vmatpush1.msra.mxu0 %v513
      %576 = vmatprep.subr.mxu0 0.0
      %577 = vmatpush1.msra.mxu0 %v514
      %578 = vmatprep.subr.mxu0 0.0
      %579 = vmatpush1.msra.mxu0 %v515
      %580 = vmatprep.subr.mxu0 0.0
      %581 = vmatpush1.msra.mxu0 0.0
      %582 = vmatprep.subr.mxu0 0.0
      %583 = vmatpush1.msra.mxu0 0.0
      %584 = vmatprep.subr.mxu0 0.0
      %585 = vmatpush1.msra.mxu0 0.0
      %586 = vmatprep.subr.mxu0 0.0
      %587 = vmatpush1.msra.mxu0 0.0
      %588 = vmatprep.subr.mxu0 0.0
      %589 = vmatpush1.msra.mxu0 0.0
      %590 = vmatprep.subr.mxu0 0.0
      %591 = vmatpush1.msra.mxu0 0.0
      %592 = vmatprep.subr.mxu0 0.0
      %593 = vmatpush1.msra.mxu0 0.0
      %594 = vmatprep.subr.mxu0 0.0
      %595 = vmatpush1.msra.mxu0 0.0
      %596 = vmatprep.subr.mxu0 0.0
      %597 = vmatpush1.msra.mxu0 0.0
      %598 = vmatprep.subr.mxu0 0.0
      %599 = vmatpush1.msra.mxu0 0.0
      %600 = vmatprep.subr.mxu0 0.0
      %601 = vmatpush1.msra.mxu0 0.0
      %602 = vmatprep.subr.mxu0 0.0
      %603 = vmatpush1.msra.mxu0 0.0
      %604 = vmatprep.subr.mxu0 0.0
      %605 = vmatpush1.msra.mxu0 0.0
      %606 = vmatprep.subr.mxu0 0.0
      %607 = vmatpush1.msra.mxu0 0.0
      %608 = vmatprep.subr.mxu0 0.0
      %609 = vmatpush1.msra.mxu0 0.0
      %610 = vmatprep.subr.mxu0 0.0
      %611 = vmatpush1.msra.mxu0 0.0
      %612 = vmatprep.subr.mxu0 0.0
      %613 = vmatpush1.msra.mxu0 0.0
      %614 = vmatprep.subr.mxu0 0.0
      %615 = vmatpush1.msra.mxu0 0.0
      %616 = vmatprep.subr.mxu0 0.0
      %617 = vmatpush1.msra.mxu0 0.0
      %618 = vmatprep.subr.mxu0 0.0
      %619 = vmatpush1.msra.mxu0 0.0
      %620 = vmatprep.subr.mxu0 0.0
      %621 = vmatpush1.msra.mxu0 0.0
      %622 = vmatprep.subr.mxu0 0.0
      %623 = vmatpush1.msra.mxu0 0.0
      %624 = vmatprep.subr.mxu0 0.0
      %625 = vmatpush1.msra.mxu0 0.0
      %626 = vmatprep.subr.mxu0 0.0
      %627 = vmatpush1.msra.mxu0 0.0
      %628 = vmatprep.subr.mxu0 0.0
      %629 = vmatpush1.msra.mxu0 0.0
      %630 = vmatprep.subr.mxu0 0.0
      %631 = vmatpush1.msra.mxu0 0.0
      %632 = vmatprep.subr.mxu0 0.0
      %633 = vmatpush1.msra.mxu0 0.0
      %634 = vmatprep.subr.mxu0 0.0
      %635 = vmatpush1.msra.mxu0 0.0
      %636 = vmatprep.mubr.f32.mxu0 0.0
      %637 = vmatmul.mubr.f32.gmra.mrb[0].mxu0 %v525
      %v638 = vpop.f32.mrb[0].mxu0
      %v639 = vadd.f32 %v521, %v638
      %v640 = vpop.f32.mrb[0].mxu0
      %641 = vmatprep.mubr.f32.mxu0 0.0
      %642 = vmatmul.mubr.f32.gmra.mrb[0].mxu0 %v528
      %v643 = vpop.f32.mrb[0].mxu0
      %v644 = vadd.f32 %v521, %v643
      %v645 = vpop.f32.mrb[0].mxu0
      %646 = vmatprep.mubr.f32.mxu0 0.0
      %647 = vmatmul.mubr.f32.gmra.mrb[0].mxu0 %v531
      %v648 = vpop.f32.mrb[0].mxu0
      %v649 = vadd.f32 %v521, %v648
      %v650 = vpop.f32.mrb[0].mxu0
      %651 = vmatprep.mubr.f32.mxu0 0.0
      %652 = vmatmul.mubr.f32.gmra.mrb[0].mxu0 %v534
      %v653 = vpop.f32.mrb[0].mxu0
      %v654 = vadd.f32 %v521, %v653
      %v655 = vpop.f32.mrb[0].mxu0
      %656 = vmatprep.mubr.f32.mxu0 0.0
      %657 = vmatmul.mubr.f32.gmra.mrb[0].mxu0 %v537
      %v658 = vpop.f32.mrb[0].mxu0
      %v659 = vadd.f32 %v521, %v658
      %v660 = vpop.f32.mrb[0].mxu0
      %661 = vmatprep.mubr.f32.mxu0 0.0
      %662 = vmatmul.mubr.f32.gmra.mrb[0].mxu0 %v540
      %v663 = vpop.f32.mrb[0].mxu0
      %v664 = vadd.f32 %v521, %v663
      %v665 = vpop.f32.mrb[0].mxu0
      %666 = vmatprep.mubr.f32.mxu0 0.0
      %667 = vmatmul.mubr.f32.gmra.mrb[0].mxu0 %v543
      %v668 = vpop.f32.mrb[0].mxu0
      %v669 = vadd.f32 %v521, %v668
      %v670 = vpop.f32.mrb[0].mxu0
      %671 = vmatprep.mubr.f32.mxu0 0.0
      %672 = vmatmul.mubr.f32.gmra.mrb[0].mxu0 %v546
      %v673 = vpop.f32.mrb[0].mxu0
      %v674 = vadd.f32 %v521, %v673
      %v675 = vpop.f32.mrb[0].mxu0
      %676 = vmatprep.mubr.f32.mxu0 0.0
      %677 = vmatmul.mubr.f32.gmra.mrb[0].mxu0 %v549
      %v678 = vpop.f32.mrb[0].mxu0
      %v679 = vadd.f32 %v521, %v678
      %v680 = vpop.f32.mrb[0].mxu0
      %681 = vmatprep.mubr.f32.mxu0 0.0
      %682 = vmatmul.mubr.f32.gmra.mrb[0].mxu0 %v552
      %v683 = vpop.f32.mrb[0].mxu0
      %v684 = vadd.f32 %v521, %v683
      %v685 = vpop.f32.mrb[0].mxu0
      %686 = vmatprep.mubr.f32.mxu0 0.0
      %687 = vmatmul.mubr.f32.gmra.mrb[0].mxu0 %v555
      %v688 = vpop.f32.mrb[0].mxu0
      %v689 = vadd.f32 %v521, %v688
      %v690 = vpop.f32.mrb[0].mxu0
      %691 = vmatprep.mubr.f32.mxu0 0.0
      %692 = vmatmul.mubr.f32.gmra.mrb[0].mxu0 %v558
      %v693 = vpop.f32.mrb[0].mxu0
      %v694 = vadd.f32 %v521, %v693
      %v695 = vpop.f32.mrb[0].mxu0
      %696 = vmatprep.mubr.f32.mxu0 0.0
      %697 = vmatmul.mubr.f32.gmra.mrb[0].mxu0 %v561
      %v698 = vpop.f32.mrb[0].mxu0
      %v699 = vadd.f32 %v521, %v698
      %v700 = vpop.f32.mrb[0].mxu0
      %701 = vmatprep.mubr.f32.mxu0 0.0
      %702 = vmatmul.mubr.f32.gmra.mrb[0].mxu0 %v564
      %v703 = vpop.f32.mrb[0].mxu0
      %v704 = vadd.f32 %v521, %v703
      %v705 = vpop.f32.mrb[0].mxu0
      %706 = vmatprep.mubr.f32.mxu0 0.0
      %707 = vmatmul.mubr.f32.gmra.mrb[0].mxu0 %v567
      %v708 = vpop.f32.mrb[0].mxu0
      %v709 = vadd.f32 %v521, %v708
      %v710 = vpop.f32.mrb[0].mxu0
      %711 = vmatprep.mubr.f32.mxu0 0.0
      %712 = vmatmul.mubr.f32.gmra.mrb[0].mxu0 %v570
      %v713 = vpop.f32.mrb[0].mxu0
      %v714 = vadd.f32 %v521, %v713
      %v715 = vpop.f32.mrb[0].mxu0
      %716 = vdwg.mxu0
      %v717 = vld [vmem:[%s269] sm:$0xff]
      %v718 = vld [vmem:[%s269 + $0x8] sm:$0xff]
      %v719 = vld [vmem:[%s269 + $0x10] sm:$0xff]
      %v720 = vld [vmem:[%s269 + $0x18] sm:$0xff]
      %v721 = vld [vmem:[%s269 + $0x20] sm:$0xff]
      %v722 = vld [vmem:[%s269 + $0x28] sm:$0xff]
      %v723 = vld [vmem:[%s269 + $0x30] sm:$0xff]
      %v724 = vld [vmem:[%s269 + $0x38] sm:$0xff]
      %v725 = vld [vmem:[%s269 + $0x40] sm:$0xff]
      %v726 = vld [vmem:[%s269 + $0x48] sm:$0xff]
      %v727 = vld [vmem:[%s269 + $0x50] sm:$0xff]
      %v728 = vld [vmem:[%s269 + $0x58] sm:$0xff]
      %v729 = vld [vmem:[%s269 + $0x60] sm:$0xff]
      %v730 = vld [vmem:[%s269 + $0x68] sm:$0xff]
      %v731 = vld [vmem:[%s269 + $0x70] sm:$0xff]
      %v732 = vld [vmem:[%s269 + $0x78] sm:$0xff]
      %v733 = vadd.f32 %v639, %v717
      %v734 = vadd.f32 %v644, %v718
      %v735 = vadd.f32 %v649, %v719
      %v736 = vadd.f32 %v654, %v720
      %v737 = vadd.f32 %v659, %v721
      %v738 = vadd.f32 %v664, %v722
      %v739 = vadd.f32 %v669, %v723
      %v740 = vadd.f32 %v674, %v724
      %v741 = vadd.f32 %v679, %v725
      %v742 = vadd.f32 %v684, %v726
      %v743 = vadd.f32 %v689, %v727
      %v744 = vadd.f32 %v694, %v728
      %v745 = vadd.f32 %v699, %v729
      %v746 = vadd.f32 %v704, %v730
      %v747 = vadd.f32 %v709, %v731
      %v748 = vadd.f32 %v714, %v732
      %749 = vst.msk [vmem:[%s275] sm:$0xff] %vm302, %v733
      %750 = vst.msk [vmem:[%s275 + $0x8] sm:$0xff] %vm302, %v734
      %751 = vst.msk [vmem:[%s275 + $0x10] sm:$0xff] %vm302, %v735
      %752 = vst.msk [vmem:[%s275 + $0x18] sm:$0xff] %vm302, %v736
      %753 = vst.msk [vmem:[%s275 + $0x20] sm:$0xff] %vm302, %v737
      %754 = vst.msk [vmem:[%s275 + $0x28] sm:$0xff] %vm302, %v738
      %755 = vst.msk [vmem:[%s275 + $0x30] sm:$0xff] %vm302, %v739
      %756 = vst.msk [vmem:[%s275 + $0x38] sm:$0xff] %vm302, %v740
      %757 = vst.msk [vmem:[%s275 + $0x40] sm:$0xff] %vm302, %v741
      %758 = vst.msk [vmem:[%s275 + $0x48] sm:$0xff] %vm302, %v742
      %759 = vst.msk [vmem:[%s275 + $0x50] sm:$0xff] %vm302, %v743
      %760 = vst.msk [vmem:[%s275 + $0x58] sm:$0xff] %vm302, %v744
      %761 = vst.msk [vmem:[%s275 + $0x60] sm:$0xff] %vm302, %v745
      %762 = vst.msk [vmem:[%s275 + $0x68] sm:$0xff] %vm302, %v746
      %763 = vst.msk [vmem:[%s275 + $0x70] sm:$0xff] %vm302, %v747
      %764 = vst.msk [vmem:[%s275 + $0x78] sm:$0xff] %vm302, %v748
      %s765 = smul.u32 16, %s17
      %p766 = scmp.lt.s32.totalorder %s765, 63
      %s767 = scalar_select %p766, %s765, 63
      %s768 = smul.addr %s767, 8
      %s769 = scalar_lea.vmem %s6, %s768
      // Predicated region
      $region45: #{_lambda_.11} parent=43 // pred_check
        %p770 = pneg %p171
      $region46: #{_lambda_.11} parent=43 // pred_check_branch
        %772 = sbr.rel (%p770) target = $region48
      $region47: #{_lambda_.11} parent=43 // pred_region
        %s773 = smul.u32 16, %s17
      $region48: #{_lambda_.11} parent=43 // pred_fallthru
        _
    $region44: #{_lambda_.11} parent=5 // pred_fallthru
      _
    %p774 = scmp.le.s32.totalorder 2, %s12
    // Predicated region
    $region49: #{_lambda_.11} parent=5 // pred_check
      %p775 = pneg %p774
    $region50: #{_lambda_.11} parent=5 // pred_check_branch
      %777 = sbr.rel (%p775) target = $region52
    $region51: #{_lambda_.11} parent=5 // pred_region
      %s778 = ssub.s32 %s12, 2
      // Predicated region
      $region53: #{_lambda_.11} parent=51 // pred_check
        %p779 = pneg %p177
      $region54: #{_lambda_.11} parent=51 // pred_check_branch
        %781 = sbr.rel (%p779) target = $region56
      $region55: #{_lambda_.11} parent=51 // pred_region
        %s782 = smul.u32 16, %s18
        %p783 = scmp.lt.s32.totalorder %s782, 63
        %s784 = scalar_select %p783, %s782, 63
        %s785 = smul.addr %s784, 8
        %s786 = scalar_lea.vmem %s6, %s785
      $region56: #{_lambda_.11} parent=51 // pred_fallthru
        _
    $region52: #{_lambda_.11} parent=5 // pred_fallthru
      _
  $region6: #{_lambda_.11} parent=0 // loop_footer
    %s16 = sadd.s32 1, %s12
  $region7: #{_lambda_.11} parent=0 // loop_footer_branch
    %11 = sbr.rel target = $region3
  $region8: #{_lambda_.11} parent=0 // loop_exit
    _

// kernel: _lambda_.15
$region0: #{_lambda_.15}
  #allocation0 [shape = 'u32[]', space=smem, size = 0x4, offset = 0x4, fixed_abs, tag = 'smem constant byte address 0x4 - core index']
  #allocation1 [shape = 'u32[144,128]{1,0:T(1,128)}', space=vmem, size = 0x12000, scoped, tag = 'internal scratch']
  %s0 = inlined_call_operand.vmem [shape: f32[512,16], index: 0, kind: input, shape index: {}]
  %s1 = inlined_call_operand.vmem [shape: f32[16,128], index: 1, kind: input, shape index: {}]
  %s2 = inlined_call_operand.vmem [shape: f32[1,128], index: 2, kind: input, shape index: {}]
  %s3 = inlined_call_operand.vmem [shape: f32[128,5], index: 3, kind: input, shape index: {}]
  %s4 = inlined_call_operand.vmem [shape: f32[1,5], index: 4, kind: input, shape index: {}]
  %s5 = inlined_call_operand.vmem [shape: f32[16,128], index: 5, kind: input, shape index: {}]
  %s6 = inlined_call_operand.vmem [shape: f32[1,128], index: 6, kind: input, shape index: {}]
  %s7 = inlined_call_operand.vmem [shape: f32[128,16], index: 7, kind: input, shape index: {}]
  %s8 = inlined_call_operand.vmem [shape: f32[1,16], index: 8, kind: input, shape index: {}]
  %s9 = inlined_call_operand.vmem [shape: f32[512,5], index: 9, kind: output, shape index: {0}]
  %s10 = inlined_call_operand.hbm [shape: f32[512,16], index: 10, kind: output, shape index: {1}]
  %11 = xla_tuple %s9, %s10
  %s12 = sld [smem:[#allocation0]]
  $region77: #{_lambda_.15} parent=0
    _
  %s14 = ssub.s32 1, %s12
  %s15 = scalar_select 0, %s14, %s12
  $region1: #{_lambda_.15} parent=0
    #allocation2 [shape = 'u8[131072]{0}', space=vmem, size = 0x20000, scoped, tag = 'output window, operand 1']
    #allocation3 [shape = 's32[2]{0}', space=sflag, size = 0x8, scoped, tag = 'scoped memory for _lambda_.15']
    %16 = vsyncpa [#allocation3], 0
    %s17 = scalar_lea.sflag [#allocation3], 1
    %18 = vsyncpa %s17, 0
    loop: start=0, step=1, limit=6
    $region2: #{_lambda_.15} parent=1 // loop_pre_header
      _
    $region3: #{_lambda_.15} parent=1 // loop_header
      %s20 = sphi 0, %s24
      %p21 = scmp.ge.s32.totalorder %s20, 6
      %s30 = sphi 0, %s32
      %s33 = sphi 0, %s30
      %s34 = sphi 0, %s33
      %s50 = sphi 0, %s34
      %s54 = sphi 0, %s54
      %s56 = sphi 0, %s54
      %s57 = sphi 0, %s56
      %s71 = sphi 0, %s57
      %s75 = sphi 0, %s75
      %s77 = sphi 0, %s75
      %s78 = sphi 0, %s77
      %s92 = sphi 0, %s78
      %s96 = sphi 0, %s96
      %s98 = sphi 0, %s96
      %s99 = sphi 0, %s98
      %s113 = sphi 0, %s99
      %s117 = sphi 0, %s117
      %s119 = sphi 0, %s117
      %s120 = sphi 0, %s119
      %s134 = sphi 0, %s120
      %s138 = sphi 0, %s138
      %s140 = sphi 0, %s138
      %s141 = sphi 0, %s140
      %s155 = sphi 0, %s141
      %s159 = sphi 0, %s159
      %s161 = sphi 0, %s159
      %s162 = sphi 0, %s161
      %s176 = sphi 0, %s162
      %s180 = sphi 0, %s180
      %s182 = sphi 0, %s180
      %s183 = sphi 0, %s182
      %s197 = sphi 0, %s183
      %s201 = sphi 0, %s201
      %s203 = sphi 0, %s201
      %s204 = sphi 0, %s203
      %s218 = sphi 0, %s204
      %s224 = sphi 0, %s226
      %s227 = sphi 0, %s224
      %s228 = sphi 0, %s227
      %s244 = sphi 0, %s228
      %s250 = sphi 0, %s252
      %s253 = sphi 0, %s250
      %s254 = sphi 0, %s253
      %s270 = sphi 0, %s254
    $region4: #{_lambda_.15} parent=1 // loop_header_branch
      %23 = sbr.rel (%p21) target = $region8
    $region5: #{_lambda_.15} parent=1 // loop_body
      %s25 = ssub.s32 %s20, 1
      %s26 = ssub.s32 %s20, 2
      %s27 = sadd.s32 %s20, 1
      %s28 = ssub.s32 %s20, %s27
      %p29 = scmp.eq.s32.totalorder %s28, 0
      %s31 = sadd.s32 %s30, 1
      %s32 = scalar_select %p29, %s30, %s31
      %p35 = pneg %p29
      %p36 = scmp.eq.s32.totalorder %s20, 3
      %p37 = por %p35, %p36
      %p38 = scmp.ne.s32.totalorder %s30, %s33
      %p39 = scmp.eq.s32.totalorder %s20, 0
      %p40 = por %p38, %p39
      %p41 = scmp.ne.s32.totalorder %s30, %s33
      %p42 = scmp.eq.s32.totalorder %s25, 3
      %p43 = por %p41, %p42
      %p44 = scmp.ne.s32.totalorder %s33, %s34
      %p45 = scmp.eq.s32.totalorder %s25, 0
      %p46 = por %p44, %p45
      %p47 = scmp.ne.s32.totalorder %s33, %s34
      %p48 = scmp.eq.s32.totalorder %s26, 3
      %p49 = por %p47, %p48
      %p51 = scmp.ne.s32.totalorder %s34, %s50
      %p52 = scmp.eq.s32.totalorder %s26, 0
      %p53 = por %p51, %p52
      %s55 = sadd.s32 %s54, 1
      %p58 = scmp.eq.s32.totalorder %s20, 3
      %p59 = scmp.ne.s32.totalorder %s54, %s56
      %p60 = scmp.eq.s32.totalorder %s20, 0
      %p61 = por %p59, %p60
      %p62 = scmp.ne.s32.totalorder %s54, %s56
      %p63 = scmp.eq.s32.totalorder %s25, 3
      %p64 = por %p62, %p63
      %p65 = scmp.ne.s32.totalorder %s56, %s57
      %p66 = scmp.eq.s32.totalorder %s25, 0
      %p67 = por %p65, %p66
      %p68 = scmp.ne.s32.totalorder %s56, %s57
      %p69 = scmp.eq.s32.totalorder %s26, 3
      %p70 = por %p68, %p69
      %p72 = scmp.ne.s32.totalorder %s57, %s71
      %p73 = scmp.eq.s32.totalorder %s26, 0
      %p74 = por %p72, %p73
      %s76 = sadd.s32 %s75, 1
      %p79 = scmp.eq.s32.totalorder %s20, 3
      %p80 = scmp.ne.s32.totalorder %s75, %s77
      %p81 = scmp.eq.s32.totalorder %s20, 0
      %p82 = por %p80, %p81
      %p83 = scmp.ne.s32.totalorder %s75, %s77
      %p84 = scmp.eq.s32.totalorder %s25, 3
      %p85 = por %p83, %p84
      %p86 = scmp.ne.s32.totalorder %s77, %s78
      %p87 = scmp.eq.s32.totalorder %s25, 0
      %p88 = por %p86, %p87
      %p89 = scmp.ne.s32.totalorder %s77, %s78
      %p90 = scmp.eq.s32.totalorder %s26, 3
      %p91 = por %p89, %p90
      %p93 = scmp.ne.s32.totalorder %s78, %s92
      %p94 = scmp.eq.s32.totalorder %s26, 0
      %p95 = por %p93, %p94
      %s97 = sadd.s32 %s96, 1
      %p100 = scmp.eq.s32.totalorder %s20, 3
      %p101 = scmp.ne.s32.totalorder %s96, %s98
      %p102 = scmp.eq.s32.totalorder %s20, 0
      %p103 = por %p101, %p102
      %p104 = scmp.ne.s32.totalorder %s96, %s98
      %p105 = scmp.eq.s32.totalorder %s25, 3
      %p106 = por %p104, %p105
      %p107 = scmp.ne.s32.totalorder %s98, %s99
      %p108 = scmp.eq.s32.totalorder %s25, 0
      %p109 = por %p107, %p108
      %p110 = scmp.ne.s32.totalorder %s98, %s99
      %p111 = scmp.eq.s32.totalorder %s26, 3
      %p112 = por %p110, %p111
      %p114 = scmp.ne.s32.totalorder %s99, %s113
      %p115 = scmp.eq.s32.totalorder %s26, 0
      %p116 = por %p114, %p115
      %s118 = sadd.s32 %s117, 1
      %p121 = scmp.eq.s32.totalorder %s20, 3
      %p122 = scmp.ne.s32.totalorder %s117, %s119
      %p123 = scmp.eq.s32.totalorder %s20, 0
      %p124 = por %p122, %p123
      %p125 = scmp.ne.s32.totalorder %s117, %s119
      %p126 = scmp.eq.s32.totalorder %s25, 3
      %p127 = por %p125, %p126
      %p128 = scmp.ne.s32.totalorder %s119, %s120
      %p129 = scmp.eq.s32.totalorder %s25, 0
      %p130 = por %p128, %p129
      %p131 = scmp.ne.s32.totalorder %s119, %s120
      %p132 = scmp.eq.s32.totalorder %s26, 3
      %p133 = por %p131, %p132
      %p135 = scmp.ne.s32.totalorder %s120, %s134
      %p136 = scmp.eq.s32.totalorder %s26, 0
      %p137 = por %p135, %p136
      %s139 = sadd.s32 %s138, 1
      %p142 = scmp.eq.s32.totalorder %s20, 3
      %p143 = scmp.ne.s32.totalorder %s138, %s140
      %p144 = scmp.eq.s32.totalorder %s20, 0
      %p145 = por %p143, %p144
      %p146 = scmp.ne.s32.totalorder %s138, %s140
      %p147 = scmp.eq.s32.totalorder %s25, 3
      %p148 = por %p146, %p147
      %p149 = scmp.ne.s32.totalorder %s140, %s141
      %p150 = scmp.eq.s32.totalorder %s25, 0
      %p151 = por %p149, %p150
      %p152 = scmp.ne.s32.totalorder %s140, %s141
      %p153 = scmp.eq.s32.totalorder %s26, 3
      %p154 = por %p152, %p153
      %p156 = scmp.ne.s32.totalorder %s141, %s155
      %p157 = scmp.eq.s32.totalorder %s26, 0
      %p158 = por %p156, %p157
      %s160 = sadd.s32 %s159, 1
      %p163 = scmp.eq.s32.totalorder %s20, 3
      %p164 = scmp.ne.s32.totalorder %s159, %s161
      %p165 = scmp.eq.s32.totalorder %s20, 0
      %p166 = por %p164, %p165
      %p167 = scmp.ne.s32.totalorder %s159, %s161
      %p168 = scmp.eq.s32.totalorder %s25, 3
      %p169 = por %p167, %p168
      %p170 = scmp.ne.s32.totalorder %s161, %s162
      %p171 = scmp.eq.s32.totalorder %s25, 0
      %p172 = por %p170, %p171
      %p173 = scmp.ne.s32.totalorder %s161, %s162
      %p174 = scmp.eq.s32.totalorder %s26, 3
      %p175 = por %p173, %p174
      %p177 = scmp.ne.s32.totalorder %s162, %s176
      %p178 = scmp.eq.s32.totalorder %s26, 0
      %p179 = por %p177, %p178
      %s181 = sadd.s32 %s180, 1
      %p184 = scmp.eq.s32.totalorder %s20, 3
      %p185 = scmp.ne.s32.totalorder %s180, %s182
      %p186 = scmp.eq.s32.totalorder %s20, 0
      %p187 = por %p185, %p186
      %p188 = scmp.ne.s32.totalorder %s180, %s182
      %p189 = scmp.eq.s32.totalorder %s25, 3
      %p190 = por %p188, %p189
      %p191 = scmp.ne.s32.totalorder %s182, %s183
      %p192 = scmp.eq.s32.totalorder %s25, 0
      %p193 = por %p191, %p192
      %p194 = scmp.ne.s32.totalorder %s182, %s183
      %p195 = scmp.eq.s32.totalorder %s26, 3
      %p196 = por %p194, %p195
      %p198 = scmp.ne.s32.totalorder %s183, %s197
      %p199 = scmp.eq.s32.totalorder %s26, 0
      %p200 = por %p198, %p199
      %s202 = sadd.s32 %s201, 1
      %p205 = scmp.eq.s32.totalorder %s20, 3
      %p206 = scmp.ne.s32.totalorder %s201, %s203
      %p207 = scmp.eq.s32.totalorder %s20, 0
      %p208 = por %p206, %p207
      %p209 = scmp.ne.s32.totalorder %s201, %s203
      %p210 = scmp.eq.s32.totalorder %s25, 3
      %p211 = por %p209, %p210
      %p212 = scmp.ne.s32.totalorder %s203, %s204
      %p213 = scmp.eq.s32.totalorder %s25, 0
      %p214 = por %p212, %p213
      %p215 = scmp.ne.s32.totalorder %s203, %s204
      %p216 = scmp.eq.s32.totalorder %s26, 3
      %p217 = por %p215, %p216
      %p219 = scmp.ne.s32.totalorder %s204, %s218
      %p220 = scmp.eq.s32.totalorder %s26, 0
      %p221 = por %p219, %p220
      %s222 = ssub.s32 %s20, %s27
      %p223 = scmp.eq.s32.totalorder %s222, 0
      %s225 = sadd.s32 %s224, 1
      %s226 = scalar_select %p223, %s224, %s225
      %p229 = pneg %p223
      %p230 = scmp.eq.s32.totalorder %s20, 3
      %p231 = por %p229, %p230
      %p232 = scmp.ne.s32.totalorder %s224, %s227
      %p233 = scmp.eq.s32.totalorder %s20, 0
      %p234 = por %p232, %p233
      %p235 = scmp.ne.s32.totalorder %s224, %s227
      %p236 = scmp.eq.s32.totalorder %s25, 3
      %p237 = por %p235, %p236
      %p238 = scmp.ne.s32.totalorder %s227, %s228
      %p239 = scmp.eq.s32.totalorder %s25, 0
      %p240 = por %p238, %p239
      %p241 = scmp.ne.s32.totalorder %s227, %s228
      %p242 = scmp.eq.s32.totalorder %s26, 3
      %p243 = por %p241, %p242
      %p245 = scmp.ne.s32.totalorder %s228, %s244
      %p246 = scmp.eq.s32.totalorder %s26, 0
      %p247 = por %p245, %p246
      %s248 = ssub.s32 %s20, %s27
      %p249 = scmp.eq.s32.totalorder %s248, 0
      %s251 = sadd.s32 %s250, 1
      %s252 = scalar_select %p249, %s250, %s251
      %p255 = pneg %p249
      %p256 = scmp.eq.s32.totalorder %s20, 3
      %p257 = por %p255, %p256
      %p258 = scmp.ne.s32.totalorder %s250, %s253
      %p259 = scmp.eq.s32.totalorder %s20, 0
      %p260 = por %p258, %p259
      %p261 = scmp.ne.s32.totalorder %s250, %s253
      %p262 = scmp.eq.s32.totalorder %s25, 3
      %p263 = por %p261, %p262
      %p264 = scmp.ne.s32.totalorder %s253, %s254
      %p265 = scmp.eq.s32.totalorder %s25, 0
      %p266 = por %p264, %p265
      %p267 = scmp.ne.s32.totalorder %s253, %s254
      %p268 = scmp.eq.s32.totalorder %s26, 3
      %p269 = por %p267, %p268
      %p271 = scmp.ne.s32.totalorder %s254, %s270
      %p272 = scmp.eq.s32.totalorder %s26, 0
      %p273 = por %p271, %p272
      %p274 = scmp.le.s32.totalorder 1, %s20
      %p275 = scmp.lt.s32.totalorder %s20, 5
      %p276 = pnand %p274, %p275
      %p277 = pneg %p276
      // Predicated region
      $region9: #{_lambda_.15} parent=5 // pred_check
        _
      $region10: #{_lambda_.15} parent=5 // pred_check_branch
        %279 = sbr.rel (%p276) target = $region12
      $region11: #{_lambda_.15} parent=5 // pred_region
        %s280 = ssub.s32 %s20, 1
        // Predicated region
        $region13: #{_lambda_.15} parent=11 // pred_check
          %p281 = pneg %p67
        $region14: #{_lambda_.15} parent=11 // pred_check_branch
          %283 = sbr.rel (%p281) target = $region16
        $region15: #{_lambda_.15} parent=11 // pred_region
          _
        $region16: #{_lambda_.15} parent=11 // pred_fallthru
          _
        // Predicated region
        $region17: #{_lambda_.15} parent=11 // pred_check
          %p284 = pneg %p88
        $region18: #{_lambda_.15} parent=11 // pred_check_branch
          %286 = sbr.rel (%p284) target = $region20
        $region19: #{_lambda_.15} parent=11 // pred_region
          _
        $region20: #{_lambda_.15} parent=11 // pred_fallthru
          _
        // Predicated region
        $region21: #{_lambda_.15} parent=11 // pred_check
          %p287 = pneg %p109
        $region22: #{_lambda_.15} parent=11 // pred_check_branch
          %289 = sbr.rel (%p287) target = $region24
        $region23: #{_lambda_.15} parent=11 // pred_region
          _
        $region24: #{_lambda_.15} parent=11 // pred_fallthru
          _
        // Predicated region
        $region25: #{_lambda_.15} parent=11 // pred_check
          %p290 = pneg %p130
        $region26: #{_lambda_.15} parent=11 // pred_check_branch
          %292 = sbr.rel (%p290) target = $region28
        $region27: #{_lambda_.15} parent=11 // pred_region
          _
        $region28: #{_lambda_.15} parent=11 // pred_fallthru
          _
        // Predicated region
        $region29: #{_lambda_.15} parent=11 // pred_check
          %p293 = pneg %p151
        $region30: #{_lambda_.15} parent=11 // pred_check_branch
          %295 = sbr.rel (%p293) target = $region32
        $region31: #{_lambda_.15} parent=11 // pred_region
          _
        $region32: #{_lambda_.15} parent=11 // pred_fallthru
          _
        // Predicated region
        $region33: #{_lambda_.15} parent=11 // pred_check
          %p296 = pneg %p172
        $region34: #{_lambda_.15} parent=11 // pred_check_branch
          %298 = sbr.rel (%p296) target = $region36
        $region35: #{_lambda_.15} parent=11 // pred_region
          _
        $region36: #{_lambda_.15} parent=11 // pred_fallthru
          _
        // Predicated region
        $region37: #{_lambda_.15} parent=11 // pred_check
          %p299 = pneg %p193
        $region38: #{_lambda_.15} parent=11 // pred_check_branch
          %301 = sbr.rel (%p299) target = $region40
        $region39: #{_lambda_.15} parent=11 // pred_region
          _
        $region40: #{_lambda_.15} parent=11 // pred_fallthru
          _
        // Predicated region
        $region41: #{_lambda_.15} parent=11 // pred_check
          %p302 = pneg %p214
        $region42: #{_lambda_.15} parent=11 // pred_check_branch
          %304 = sbr.rel (%p302) target = $region44
        $region43: #{_lambda_.15} parent=11 // pred_region
          _
        $region44: #{_lambda_.15} parent=11 // pred_fallthru
          _
      $region12: #{_lambda_.15} parent=5 // pred_fallthru
        _
      %p305 = scmp.lt.s32.totalorder %s20, 4
      // Predicated region
      $region45: #{_lambda_.15} parent=5 // pred_check
        %p306 = pneg %p305
      $region46: #{_lambda_.15} parent=5 // pred_check_branch
        %308 = sbr.rel (%p306) target = $region48
      $region47: #{_lambda_.15} parent=5 // pred_region
        // Predicated region
        $region49: #{_lambda_.15} parent=47 // pred_check
          %p309 = pneg %p40
        $region50: #{_lambda_.15} parent=47 // pred_check_branch
          %311 = sbr.rel (%p309) target = $region52
        $region51: #{_lambda_.15} parent=47 // pred_region
          %s312 = smul.u32 16, %s20
          %p313 = scmp.lt.s32.totalorder %s312, 63
          %s314 = scalar_select %p313, %s312, 63
          %s315 = smul.addr %s314, 8
          %s316 = scalar_lea.vmem %s0, %s315
          %s317 = smul.u32 16, %s20
        $region52: #{_lambda_.15} parent=47 // pred_fallthru
          _
      $region48: #{_lambda_.15} parent=5 // pred_fallthru
        _
      %p318 = scmp.le.s32.totalorder 1, %s20
      %p319 = scmp.lt.s32.totalorder %s20, 5
      %p320 = pnand %p318, %p319
      %p321 = pneg %p320
      // Predicated region
      $region53: #{_lambda_.15} parent=5 // pred_check
        _
      $region54: #{_lambda_.15} parent=5 // pred_check_branch
        %323 = sbr.rel (%p320) target = $region56
      $region55: #{_lambda_.15} parent=5 // pred_region
        %s324 = ssub.s32 %s20, 1
        %s325 = smul.u32 16, %s25
        %p326 = scmp.lt.s32.totalorder %s325, 63
        %s327 = scalar_select %p326, %s325, 63
        %s328 = smul.addr %s327, 8
        %s329 = scalar_lea.vmem %s0, %s328
        %p330 = pneg %p46
        %p331 = pneg %p43
        %p332 = pneg %p67
        %p333 = pneg %p64
        %p334 = pneg %p88
        %p335 = pneg %p85
        %p336 = pneg %p109
        %p337 = pneg %p106
        %p338 = pneg %p130
        %p339 = pneg %p127
        %p340 = pneg %p151
        %p341 = pneg %p148
        %p342 = pneg %p172
        %p343 = pneg %p169
        %p344 = pneg %p193
        %p345 = pneg %p190
        %p346 = pneg %p214
        %p347 = pneg %p211
        %p348 = pneg %p240
        %p349 = pneg %p237
        %s350 = smul.u32 16, %s25
        %p351 = scmp.lt.s32.totalorder %s350, 63
        %s352 = scalar_select %p351, %s350, 63
        %s353 = smul.addr %s352, 8
        %s354 = scalar_lea.vmem %s9, %s353
        %p355 = pneg %p266
        %p356 = pneg %p263
        %s357 = sand.u32 %s253, 1
        %s358 = scalar_lea.sflag [#allocation3], %s357
        %s359 = sand.u32 %s253, 1
        %s360 = smul.addr %s359, 128
        %s361 = scalar_lea.vmem [#allocation2], %s360
        %s362 = smul.u32 16, %s25
        %p363 = scmp.lt.s32.totalorder %s362, 63
        %s364 = scalar_select %p363, %s362, 63
        %s365 = smul.addr %s364, 8
        %s366 = scalar_lea.vmem %s0, %s365
        %s367 = smul.u32 16, %s25
        %s368 = smul.u32 16, %s25
        %p369 = scmp.lt.s32.totalorder %s368, 63
        %s370 = scalar_select %p369, %s368, 63
        %s371 = smul.addr %s370, 8
        %s372 = scalar_lea.vmem %s9, %s371
        %s373 = smul.u32 16, %s25
        %s374 = smul.u32 16, %s25
        %v375 = vld [vmem:[%s366] sm:$0xff]
        %v376 = vld [vmem:[%s366 + $0x8] sm:$0xff]
        %v377 = vld [vmem:[%s366 + $0x10] sm:$0xff]
        %v378 = vld [vmem:[%s366 + $0x18] sm:$0xff]
        %v379 = vld [vmem:[%s366 + $0x20] sm:$0xff]
        %v380 = vld [vmem:[%s366 + $0x28] sm:$0xff]
        %v381 = vld [vmem:[%s366 + $0x30] sm:$0xff]
        %v382 = vld [vmem:[%s366 + $0x38] sm:$0xff]
        %v383 = vld [vmem:[%s366 + $0x40] sm:$0xff]
        %v384 = vld [vmem:[%s366 + $0x48] sm:$0xff]
        %v385 = vld [vmem:[%s366 + $0x50] sm:$0xff]
        %v386 = vld [vmem:[%s366 + $0x58] sm:$0xff]
        %v387 = vld [vmem:[%s366 + $0x60] sm:$0xff]
        %v388 = vld [vmem:[%s366 + $0x68] sm:$0xff]
        %v389 = vld [vmem:[%s366 + $0x70] sm:$0xff]
        %v390 = vld [vmem:[%s366 + $0x78] sm:$0xff]
        %v391 = vld [vmem:[%s1] sm:$0xff]
        %v392 = vld [vmem:[%s1 + $0x8] sm:$0xff]
        %v393 = vld [vmem:[%s2] sm:$0x1]
        %v395 = vlaneseq
        %v396 = vshrl.u32 %v395, 7
        %v397 = vsub.s32 0, %v396
        %v398 = vrot.slane %v393, %v397
        %vm400 = vcmask 130048
        %v402 = vsel %vm400, %v375, 0
        %v405 = vsel %vm400, %v376, 0
        %v408 = vsel %vm400, %v377, 0
        %v411 = vsel %vm400, %v378, 0
        %v414 = vsel %vm400, %v379, 0
        %v417 = vsel %vm400, %v380, 0
        %v420 = vsel %vm400, %v381, 0
        %v423 = vsel %vm400, %v382, 0
        %v426 = vsel %vm400, %v383, 0
        %v429 = vsel %vm400, %v384, 0
        %v432 = vsel %vm400, %v385, 0
        %v435 = vsel %vm400, %v386, 0
        %v438 = vsel %vm400, %v387, 0
        %v441 = vsel %vm400, %v388, 0
        %v444 = vsel %vm400, %v389, 0
        %v447 = vsel %vm400, %v390, 0
        %449 = vmatprep.subr.mxu0 0.0
        %450 = vmatpush1.msra.mxu0 %v391
        %451 = vmatprep.subr.mxu0 0.0
        %452 = vmatpush1.msra.mxu0 %v392
        %453 = vmatprep.subr.mxu0 0.0
        %454 = vmatpush1.msra.mxu0 0.0
        %455 = vmatprep.subr.mxu0 0.0
        %456 = vmatpush1.msra.mxu0 0.0
        %457 = vmatprep.subr.mxu0 0.0
        %458 = vmatpush1.msra.mxu0 0.0
        %459 = vmatprep.subr.mxu0 0.0
        %460 = vmatpush1.msra.mxu0 0.0
        %461 = vmatprep.subr.mxu0 0.0
        %462 = vmatpush1.msra.mxu0 0.0
        %463 = vmatprep.subr.mxu0 0.0
        %464 = vmatpush1.msra.mxu0 0.0
        %465 = vmatprep.subr.mxu0 0.0
        %466 = vmatpush1.msra.mxu0 0.0
        %467 = vmatprep.subr.mxu0 0.0
        %468 = vmatpush1.msra.mxu0 0.0
        %469 = vmatprep.subr.mxu0 0.0
        %470 = vmatpush1.msra.mxu0 0.0
        %471 = vmatprep.subr.mxu0 0.0
        %472 = vmatpush1.msra.mxu0 0.0
        %473 = vmatprep.subr.mxu0 0.0
        %474 = vmatpush1.msra.mxu0 0.0
        %475 = vmatprep.subr.mxu0 0.0
        %476 = vmatpush1.msra.mxu0 0.0
        %477 = vmatprep.subr.mxu0 0.0
        %478 = vmatpush1.msra.mxu0 0.0
        %479 = vmatprep.subr.mxu0 0.0
        %480 = vmatpush1.msra.mxu0 0.0
        %481 = vmatprep.subr.mxu0 0.0
        %482 = vmatpush1.msra.mxu0 0.0
        %483 = vmatprep.subr.mxu0 0.0
        %484 = vmatpush1.msra.mxu0 0.0
        %485 = vmatprep.subr.mxu0 0.0
        %486 = vmatpush1.msra.mxu0 0.0
        %487 = vmatprep.subr.mxu0 0.0
        %488 = vmatpush1.msra.mxu0 0.0
        %489 = vmatprep.subr.mxu0 0.0
        %490 = vmatpush1.msra.mxu0 0.0
        %491 = vmatprep.subr.mxu0 0.0
        %492 = vmatpush1.msra.mxu0 0.0
        %493 = vmatprep.subr.mxu0 0.0
        %494 = vmatpush1.msra.mxu0 0.0
        %495 = vmatprep.subr.mxu0 0.0
        %496 = vmatpush1.msra.mxu0 0.0
        %497 = vmatprep.subr.mxu0 0.0
        %498 = vmatpush1.msra.mxu0 0.0
        %499 = vmatprep.subr.mxu0 0.0
        %500 = vmatpush1.msra.mxu0 0.0
        %501 = vmatprep.subr.mxu0 0.0
        %502 = vmatpush1.msra.mxu0 0.0
        %503 = vmatprep.subr.mxu0 0.0
        %504 = vmatpush1.msra.mxu0 0.0
        %505 = vmatprep.subr.mxu0 0.0
        %506 = vmatpush1.msra.mxu0 0.0
        %507 = vmatprep.subr.mxu0 0.0
        %508 = vmatpush1.msra.mxu0 0.0
        %509 = vmatprep.subr.mxu0 0.0
        %510 = vmatpush1.msra.mxu0 0.0
        %511 = vmatprep.subr.mxu0 0.0
        %512 = vmatpush1.msra.mxu0 0.0
        %513 = vmatprep.mubr.f32.mxu0 0.0
        %514 = vmatmul.mubr.f32.gmra.mrb[0].mxu0 %v402
        %v515 = vpop.f32.mrb[0].mxu0
        %v516 = vadd.f32 %v398, %v515
        %v517 = vpop.f32.mrb[0].mxu0
        %518 = vmatprep.mubr.f32.mxu0 0.0
        %519 = vmatmul.mubr.f32.gmra.mrb[0].mxu0 %v405
        %v520 = vpop.f32.mrb[0].mxu0
        %v521 = vadd.f32 %v398, %v520
        %v522 = vpop.f32.mrb[0].mxu0
        %523 = vmatprep.mubr.f32.mxu0 0.0
        %524 = vmatmul.mubr.f32.gmra.mrb[0].mxu0 %v408
        %v525 = vpop.f32.mrb[0].mxu0
        %v526 = vadd.f32 %v398, %v525
        %v527 = vpop.f32.mrb[0].mxu0
        %528 = vmatprep.mubr.f32.mxu0 0.0
        %529 = vmatmul.mubr.f32.gmra.mrb[0].mxu0 %v411
        %v530 = vpop.f32.mrb[0].mxu0
        %v531 = vadd.f32 %v398, %v530
        %v532 = vpop.f32.mrb[0].mxu0
        %533 = vmatprep.mubr.f32.mxu0 0.0
        %534 = vmatmul.mubr.f32.gmra.mrb[0].mxu0 %v414
        %v535 = vpop.f32.mrb[0].mxu0
        %v536 = vadd.f32 %v398, %v535
        %v537 = vpop.f32.mrb[0].mxu0
        %538 = vmatprep.mubr.f32.mxu0 0.0
        %539 = vmatmul.mubr.f32.gmra.mrb[0].mxu0 %v417
        %v540 = vpop.f32.mrb[0].mxu0
        %v541 = vadd.f32 %v398, %v540
        %v542 = vpop.f32.mrb[0].mxu0
        %543 = vmatprep.mubr.f32.mxu0 0.0
        %544 = vmatmul.mubr.f32.gmra.mrb[0].mxu0 %v420
        %v545 = vpop.f32.mrb[0].mxu0
        %v546 = vadd.f32 %v398, %v545
        %v547 = vpop.f32.mrb[0].mxu0
        %548 = vmatprep.mubr.f32.mxu0 0.0
        %549 = vmatmul.mubr.f32.gmra.mrb[0].mxu0 %v423
        %v550 = vpop.f32.mrb[0].mxu0
        %v551 = vadd.f32 %v398, %v550
        %v552 = vpop.f32.mrb[0].mxu0
        %553 = vmatprep.mubr.f32.mxu0 0.0
        %554 = vmatmul.mubr.f32.gmra.mrb[0].mxu0 %v426
        %v555 = vpop.f32.mrb[0].mxu0
        %v556 = vadd.f32 %v398, %v555
        %v557 = vpop.f32.mrb[0].mxu0
        %558 = vmatprep.mubr.f32.mxu0 0.0
        %559 = vmatmul.mubr.f32.gmra.mrb[0].mxu0 %v429
        %v560 = vpop.f32.mrb[0].mxu0
        %v561 = vadd.f32 %v398, %v560
        %v562 = vpop.f32.mrb[0].mxu0
        %563 = vmatprep.mubr.f32.mxu0 0.0
        %564 = vmatmul.mubr.f32.gmra.mrb[0].mxu0 %v432
        %v565 = vpop.f32.mrb[0].mxu0
        %v566 = vadd.f32 %v398, %v565
        %v567 = vpop.f32.mrb[0].mxu0
        %568 = vmatprep.mubr.f32.mxu0 0.0
        %569 = vmatmul.mubr.f32.gmra.mrb[0].mxu0 %v435
        %v570 = vpop.f32.mrb[0].mxu0
        %v571 = vadd.f32 %v398, %v570
        %v572 = vpop.f32.mrb[0].mxu0
        %573 = vmatprep.mubr.f32.mxu0 0.0
        %574 = vmatmul.mubr.f32.gmra.mrb[0].mxu0 %v438
        %v575 = vpop.f32.mrb[0].mxu0
        %v576 = vadd.f32 %v398, %v575
        %v577 = vpop.f32.mrb[0].mxu0
        %578 = vmatprep.mubr.f32.mxu0 0.0
        %579 = vmatmul.mubr.f32.gmra.mrb[0].mxu0 %v441
        %v580 = vpop.f32.mrb[0].mxu0
        %v581 = vadd.f32 %v398, %v580
        %v582 = vpop.f32.mrb[0].mxu0
        %583 = vmatprep.mubr.f32.mxu0 0.0
        %584 = vmatmul.mubr.f32.gmra.mrb[0].mxu0 %v444
        %v585 = vpop.f32.mrb[0].mxu0
        %v586 = vadd.f32 %v398, %v585
        %v587 = vpop.f32.mrb[0].mxu0
        %588 = vmatprep.mubr.f32.mxu0 0.0
        %589 = vmatmul.mubr.f32.gmra.mrb[0].mxu0 %v447
        %v590 = vpop.f32.mrb[0].mxu0
        %v591 = vadd.f32 %v398, %v590
        %v592 = vpop.f32.mrb[0].mxu0
        %593 = vdwg.mxu0
        %v594 = vld [vmem:[%s3] sm:$0xff]
        %v595 = vld [vmem:[%s3 + $0x8] sm:$0xff]
        %v596 = vld [vmem:[%s3 + $0x10] sm:$0xff]
        %v597 = vld [vmem:[%s3 + $0x18] sm:$0xff]
        %v598 = vld [vmem:[%s3 + $0x20] sm:$0xff]
        %v599 = vld [vmem:[%s3 + $0x28] sm:$0xff]
        %v600 = vld [vmem:[%s3 + $0x30] sm:$0xff]
        %v601 = vld [vmem:[%s3 + $0x38] sm:$0xff]
        %v602 = vld [vmem:[%s3 + $0x40] sm:$0xff]
        %v603 = vld [vmem:[%s3 + $0x48] sm:$0xff]
        %v604 = vld [vmem:[%s3 + $0x50] sm:$0xff]
        %v605 = vld [vmem:[%s3 + $0x58] sm:$0xff]
        %v606 = vld [vmem:[%s3 + $0x60] sm:$0xff]
        %v607 = vld [vmem:[%s3 + $0x68] sm:$0xff]
        %v608 = vld [vmem:[%s3 + $0x70] sm:$0xff]
        %v609 = vld [vmem:[%s3 + $0x78] sm:$0xff]
        %v610 = vld [vmem:[%s4] sm:$0x1]
        %v612 = vlaneseq
        %v613 = vshrl.u32 %v612, 7
        %v614 = vsub.s32 0, %v613
        %v615 = vrot.slane %v610, %v614
        %617 = vmatprep.subr.mxu0 0.0
        %618 = vmatpush1.msra.mxu0 %v594
        %619 = vmatprep.subr.mxu0 0.0
        %620 = vmatpush1.msra.mxu0 %v595
        %621 = vmatprep.subr.mxu0 0.0
        %622 = vmatpush1.msra.mxu0 %v596
        %623 = vmatprep.subr.mxu0 0.0
        %624 = vmatpush1.msra.mxu0 %v597
        %625 = vmatprep.subr.mxu0 0.0
        %626 = vmatpush1.msra.mxu0 %v598
        %627 = vmatprep.subr.mxu0 0.0
        %628 = vmatpush1.msra.mxu0 %v599
        %629 = vmatprep.subr.mxu0 0.0
        %630 = vmatpush1.msra.mxu0 %v600
        %631 = vmatprep.subr.mxu0 0.0
        %632 = vmatpush1.msra.mxu0 %v601
        %633 = vmatprep.subr.mxu0 0.0
        %634 = vmatpush1.msra.mxu0 %v602
        %635 = vmatprep.subr.mxu0 0.0
        %636 = vmatpush1.msra.mxu0 %v603
        %637 = vmatprep.subr.mxu0 0.0
        %638 = vmatpush1.msra.mxu0 %v604
        %639 = vmatprep.subr.mxu0 0.0
        %640 = vmatpush1.msra.mxu0 %v605
        %641 = vmatprep.subr.mxu0 0.0
        %642 = vmatpush1.msra.mxu0 %v606
        %643 = vmatprep.subr.mxu0 0.0
        %644 = vmatpush1.msra.mxu0 %v607
        %645 = vmatprep.subr.mxu0 0.0
        %646 = vmatpush1.msra.mxu0 %v608
        %647 = vmatprep.subr.mxu0 0.0
        %648 = vmatpush1.msra.mxu0 %v609
        %649 = vmatprep.subr.mxu0 0.0
        %650 = vmatpush1.msra.mxu0 0.0
        %651 = vmatprep.subr.mxu0 0.0
        %652 = vmatpush1.msra.mxu0 0.0
        %653 = vmatprep.subr.mxu0 0.0
        %654 = vmatpush1.msra.mxu0 0.0
        %655 = vmatprep.subr.mxu0 0.0
        %656 = vmatpush1.msra.mxu0 0.0
        %657 = vmatprep.subr.mxu0 0.0
        %658 = vmatpush1.msra.mxu0 0.0
        %659 = vmatprep.subr.mxu0 0.0
        %660 = vmatpush1.msra.mxu0 0.0
        %661 = vmatprep.subr.mxu0 0.0
        %662 = vmatpush1.msra.mxu0 0.0
        %663 = vmatprep.subr.mxu0 0.0
        %664 = vmatpush1.msra.mxu0 0.0
        %665 = vmatprep.subr.mxu0 0.0
        %666 = vmatpush1.msra.mxu0 0.0
        %667 = vmatprep.subr.mxu0 0.0
        %668 = vmatpush1.msra.mxu0 0.0
        %669 = vmatprep.subr.mxu0 0.0
        %670 = vmatpush1.msra.mxu0 0.0
        %671 = vmatprep.subr.mxu0 0.0
        %672 = vmatpush1.msra.mxu0 0.0
        %673 = vmatprep.subr.mxu0 0.0
        %674 = vmatpush1.msra.mxu0 0.0
        %675 = vmatprep.subr.mxu0 0.0
        %676 = vmatpush1.msra.mxu0 0.0
        %677 = vmatprep.subr.mxu0 0.0
        %678 = vmatpush1.msra.mxu0 0.0
        %679 = vmatprep.subr.mxu0 0.0
        %680 = vmatpush1.msra.mxu0 0.0
        %681 = vmatprep.mubr.f32.mxu0 0.0
        %682 = vmatmul.mubr.f32.gmra.mrb[0].mxu0 %v516
        %v683 = vpop.f32.mrb[0].mxu0
        %v684 = vadd.f32 %v615, %v683
        %v685 = vpop.f32.mrb[0].mxu0
        %686 = vmatprep.mubr.f32.mxu0 0.0
        %687 = vmatmul.mubr.f32.gmra.mrb[0].mxu0 %v521
        %v688 = vpop.f32.mrb[0].mxu0
        %v689 = vadd.f32 %v615, %v688
        %v690 = vpop.f32.mrb[0].mxu0
        %691 = vmatprep.mubr.f32.mxu0 0.0
        %692 = vmatmul.mubr.f32.gmra.mrb[0].mxu0 %v526
        %v693 = vpop.f32.mrb[0].mxu0
        %v694 = vadd.f32 %v615, %v693
        %v695 = vpop.f32.mrb[0].mxu0
        %696 = vmatprep.mubr.f32.mxu0 0.0
        %697 = vmatmul.mubr.f32.gmra.mrb[0].mxu0 %v531
        %v698 = vpop.f32.mrb[0].mxu0
        %v699 = vadd.f32 %v615, %v698
        %v700 = vpop.f32.mrb[0].mxu0
        %701 = vmatprep.mubr.f32.mxu0 0.0
        %702 = vmatmul.mubr.f32.gmra.mrb[0].mxu0 %v536
        %v703 = vpop.f32.mrb[0].mxu0
        %v704 = vadd.f32 %v615, %v703
        %v705 = vpop.f32.mrb[0].mxu0
        %706 = vmatprep.mubr.f32.mxu0 0.0
        %707 = vmatmul.mubr.f32.gmra.mrb[0].mxu0 %v541
        %v708 = vpop.f32.mrb[0].mxu0
        %v709 = vadd.f32 %v615, %v708
        %v710 = vpop.f32.mrb[0].mxu0
        %711 = vmatprep.mubr.f32.mxu0 0.0
        %712 = vmatmul.mubr.f32.gmra.mrb[0].mxu0 %v546
        %v713 = vpop.f32.mrb[0].mxu0
        %v714 = vadd.f32 %v615, %v713
        %v715 = vpop.f32.mrb[0].mxu0
        %716 = vmatprep.mubr.f32.mxu0 0.0
        %717 = vmatmul.mubr.f32.gmra.mrb[0].mxu0 %v551
        %v718 = vpop.f32.mrb[0].mxu0
        %v719 = vadd.f32 %v615, %v718
        %v720 = vpop.f32.mrb[0].mxu0
        %721 = vmatprep.mubr.f32.mxu0 0.0
        %722 = vmatmul.mubr.f32.gmra.mrb[0].mxu0 %v556
        %v723 = vpop.f32.mrb[0].mxu0
        %v724 = vadd.f32 %v615, %v723
        %v725 = vpop.f32.mrb[0].mxu0
        %726 = vmatprep.mubr.f32.mxu0 0.0
        %727 = vmatmul.mubr.f32.gmra.mrb[0].mxu0 %v561
        %v728 = vpop.f32.mrb[0].mxu0
        %v729 = vadd.f32 %v615, %v728
        %v730 = vpop.f32.mrb[0].mxu0
        %731 = vmatprep.mubr.f32.mxu0 0.0
        %732 = vmatmul.mubr.f32.gmra.mrb[0].mxu0 %v566
        %v733 = vpop.f32.mrb[0].mxu0
        %v734 = vadd.f32 %v615, %v733
        %v735 = vpop.f32.mrb[0].mxu0
        %736 = vmatprep.mubr.f32.mxu0 0.0
        %737 = vmatmul.mubr.f32.gmra.mrb[0].mxu0 %v571
        %v738 = vpop.f32.mrb[0].mxu0
        %v739 = vadd.f32 %v615, %v738
        %v740 = vpop.f32.mrb[0].mxu0
        %741 = vmatprep.mubr.f32.mxu0 0.0
        %742 = vmatmul.mubr.f32.gmra.mrb[0].mxu0 %v576
        %v743 = vpop.f32.mrb[0].mxu0
        %v744 = vadd.f32 %v615, %v743
        %v745 = vpop.f32.mrb[0].mxu0
        %746 = vmatprep.mubr.f32.mxu0 0.0
        %747 = vmatmul.mubr.f32.gmra.mrb[0].mxu0 %v581
        %v748 = vpop.f32.mrb[0].mxu0
        %v749 = vadd.f32 %v615, %v748
        %v750 = vpop.f32.mrb[0].mxu0
        %751 = vmatprep.mubr.f32.mxu0 0.0
        %752 = vmatmul.mubr.f32.gmra.mrb[0].mxu0 %v586
        %v753 = vpop.f32.mrb[0].mxu0
        %v754 = vadd.f32 %v615, %v753
        %v755 = vpop.f32.mrb[0].mxu0
        %756 = vmatprep.mubr.f32.mxu0 0.0
        %757 = vmatmul.mubr.f32.gmra.mrb[0].mxu0 %v591
        %v758 = vpop.f32.mrb[0].mxu0
        %v759 = vadd.f32 %v615, %v758
        %v760 = vpop.f32.mrb[0].mxu0
        %761 = vdwg.mxu0
        %vm762 = vcmask 39936
        %763 = vst.msk [vmem:[%s372] sm:$0xff] %vm762, %v684
        %764 = vst.msk [vmem:[%s372 + $0x8] sm:$0xff] %vm762, %v689
        %765 = vst.msk [vmem:[%s372 + $0x10] sm:$0xff] %vm762, %v694
        %766 = vst.msk [vmem:[%s372 + $0x18] sm:$0xff] %vm762, %v699
        %767 = vst.msk [vmem:[%s372 + $0x20] sm:$0xff] %vm762, %v704
        %768 = vst.msk [vmem:[%s372 + $0x28] sm:$0xff] %vm762, %v709
        %769 = vst.msk [vmem:[%s372 + $0x30] sm:$0xff] %vm762, %v714
        %770 = vst.msk [vmem:[%s372 + $0x38] sm:$0xff] %vm762, %v719
        %771 = vst.msk [vmem:[%s372 + $0x40] sm:$0xff] %vm762, %v724
        %772 = vst.msk [vmem:[%s372 + $0x48] sm:$0xff] %vm762, %v729
        %773 = vst.msk [vmem:[%s372 + $0x50] sm:$0xff] %vm762, %v734
        %774 = vst.msk [vmem:[%s372 + $0x58] sm:$0xff] %vm762, %v739
        %775 = vst.msk [vmem:[%s372 + $0x60] sm:$0xff] %vm762, %v744
        %776 = vst.msk [vmem:[%s372 + $0x68] sm:$0xff] %vm762, %v749
        %777 = vst.msk [vmem:[%s372 + $0x70] sm:$0xff] %vm762, %v754
        %778 = vst.msk [vmem:[%s372 + $0x78] sm:$0xff] %vm762, %v759
        %v779 = vld [vmem:[%s5] sm:$0xff]
        %v780 = vld [vmem:[%s5 + $0x8] sm:$0xff]
        %v781 = vld [vmem:[%s6] sm:$0x1]
        %v783 = vlaneseq
        %v784 = vshrl.u32 %v783, 7
        %v785 = vsub.s32 0, %v784
        %v786 = vrot.slane %v781, %v785
        %788 = vmatprep.subr.mxu0 0.0
        %789 = vmatpush1.msra.mxu0 %v779
        %790 = vmatprep.subr.mxu0 0.0
        %791 = vmatpush1.msra.mxu0 %v780
        %792 = vmatprep.subr.mxu0 0.0
        %793 = vmatpush1.msra.mxu0 0.0
        %794 = vmatprep.subr.mxu0 0.0
        %795 = vmatpush1.msra.mxu0 0.0
        %796 = vmatprep.subr.mxu0 0.0
        %797 = vmatpush1.msra.mxu0 0.0
        %798 = vmatprep.subr.mxu0 0.0
        %799 = vmatpush1.msra.mxu0 0.0
        %800 = vmatprep.subr.mxu0 0.0
        %801 = vmatpush1.msra.mxu0 0.0
        %802 = vmatprep.subr.mxu0 0.0
        %803 = vmatpush1.msra.mxu0 0.0
        %804 = vmatprep.subr.mxu0 0.0
        %805 = vmatpush1.msra.mxu0 0.0
        %806 = vmatprep.subr.mxu0 0.0
        %807 = vmatpush1.msra.mxu0 0.0
        %808 = vmatprep.subr.mxu0 0.0
        %809 = vmatpush1.msra.mxu0 0.0
        %810 = vmatprep.subr.mxu0 0.0
        %811 = vmatpush1.msra.mxu0 0.0
        %812 = vmatprep.subr.mxu0 0.0
        %813 = vmatpush1.msra.mxu0 0.0
        %814 = vmatprep.subr.mxu0 0.0
        %815 = vmatpush1.msra.mxu0 0.0
        %816 = vmatprep.subr.mxu0 0.0
        %817 = vmatpush1.msra.mxu0 0.0
        %818 = vmatprep.subr.mxu0 0.0
        %819 = vmatpush1.msra.mxu0 0.0
        %820 = vmatprep.subr.mxu0 0.0
        %821 = vmatpush1.msra.mxu0 0.0
        %822 = vmatprep.subr.mxu0 0.0
        %823 = vmatpush1.msra.mxu0 0.0
        %824 = vmatprep.subr.mxu0 0.0
        %825 = vmatpush1.msra.mxu0 0.0
        %826 = vmatprep.subr.mxu0 0.0
        %827 = vmatpush1.msra.mxu0 0.0
        %828 = vmatprep.subr.mxu0 0.0
        %829 = vmatpush1.msra.mxu0 0.0
        %830 = vmatprep.subr.mxu0 0.0
        %831 = vmatpush1.msra.mxu0 0.0
        %832 = vmatprep.subr.mxu0 0.0
        %833 = vmatpush1.msra.mxu0 0.0
        %834 = vmatprep.subr.mxu0 0.0
        %835 = vmatpush1.msra.mxu0 0.0
        %836 = vmatprep.subr.mxu0 0.0
        %837 = vmatpush1.msra.mxu0 0.0
        %838 = vmatprep.subr.mxu0 0.0
        %839 = vmatpush1.msra.mxu0 0.0
        %840 = vmatprep.subr.mxu0 0.0
        %841 = vmatpush1.msra.mxu0 0.0
        %842 = vmatprep.subr.mxu0 0.0
        %843 = vmatpush1.msra.mxu0 0.0
        %844 = vmatprep.subr.mxu0 0.0
        %845 = vmatpush1.msra.mxu0 0.0
        %846 = vmatprep.subr.mxu0 0.0
        %847 = vmatpush1.msra.mxu0 0.0
        %848 = vmatprep.subr.mxu0 0.0
        %849 = vmatpush1.msra.mxu0 0.0
        %850 = vmatprep.subr.mxu0 0.0
        %851 = vmatpush1.msra.mxu0 0.0
        %852 = vmatprep.mubr.f32.mxu0 0.0
        %853 = vmatmul.mubr.f32.gmra.mrb[0].mxu0 %v402
        %v854 = vpop.f32.mrb[0].mxu0
        %v855 = vadd.f32 %v786, %v854
        %v856 = vpop.f32.mrb[0].mxu0
        %857 = vmatprep.mubr.f32.mxu0 0.0
        %858 = vmatmul.mubr.f32.gmra.mrb[0].mxu0 %v405
        %v859 = vpop.f32.mrb[0].mxu0
        %v860 = vadd.f32 %v786, %v859
        %v861 = vpop.f32.mrb[0].mxu0
        %862 = vmatprep.mubr.f32.mxu0 0.0
        %863 = vmatmul.mubr.f32.gmra.mrb[0].mxu0 %v408
        %v864 = vpop.f32.mrb[0].mxu0
        %v865 = vadd.f32 %v786, %v864
        %v866 = vpop.f32.mrb[0].mxu0
        %867 = vmatprep.mubr.f32.mxu0 0.0
        %868 = vmatmul.mubr.f32.gmra.mrb[0].mxu0 %v411
        %v869 = vpop.f32.mrb[0].mxu0
        %v870 = vadd.f32 %v786, %v869
        %v871 = vpop.f32.mrb[0].mxu0
        %872 = vmatprep.mubr.f32.mxu0 0.0
        %873 = vmatmul.mubr.f32.gmra.mrb[0].mxu0 %v414
        %v874 = vpop.f32.mrb[0].mxu0
        %v875 = vadd.f32 %v786, %v874
        %v876 = vpop.f32.mrb[0].mxu0
        %877 = vmatprep.mubr.f32.mxu0 0.0
        %878 = vmatmul.mubr.f32.gmra.mrb[0].mxu0 %v417
        %v879 = vpop.f32.mrb[0].mxu0
        %v880 = vadd.f32 %v786, %v879
        %v881 = vpop.f32.mrb[0].mxu0
        %882 = vmatprep.mubr.f32.mxu0 0.0
        %883 = vmatmul.mubr.f32.gmra.mrb[0].mxu0 %v420
        %v884 = vpop.f32.mrb[0].mxu0
        %v885 = vadd.f32 %v786, %v884
        %v886 = vpop.f32.mrb[0].mxu0
        %887 = vmatprep.mubr.f32.mxu0 0.0
        %888 = vmatmul.mubr.f32.gmra.mrb[0].mxu0 %v423
        %v889 = vpop.f32.mrb[0].mxu0
        %v890 = vadd.f32 %v786, %v889
        %v891 = vpop.f32.mrb[0].mxu0
        %892 = vmatprep.mubr.f32.mxu0 0.0
        %893 = vmatmul.mubr.f32.gmra.mrb[0].mxu0 %v426
        %v894 = vpop.f32.mrb[0].mxu0
        %v895 = vadd.f32 %v786, %v894
        %v896 = vpop.f32.mrb[0].mxu0
        %897 = vmatprep.mubr.f32.mxu0 0.0
        %898 = vmatmul.mubr.f32.gmra.mrb[0].mxu0 %v429
        %v899 = vpop.f32.mrb[0].mxu0
        %v900 = vadd.f32 %v786, %v899
        %v901 = vpop.f32.mrb[0].mxu0
        %902 = vmatprep.mubr.f32.mxu0 0.0
        %903 = vmatmul.mubr.f32.gmra.mrb[0].mxu0 %v432
        %v904 = vpop.f32.mrb[0].mxu0
        %v905 = vadd.f32 %v786, %v904
        %v906 = vpop.f32.mrb[0].mxu0
        %907 = vmatprep.mubr.f32.mxu0 0.0
        %908 = vmatmul.mubr.f32.gmra.mrb[0].mxu0 %v435
        %v909 = vpop.f32.mrb[0].mxu0
        %v910 = vadd.f32 %v786, %v909
        %v911 = vpop.f32.mrb[0].mxu0
        %912 = vmatprep.mubr.f32.mxu0 0.0
        %913 = vmatmul.mubr.f32.gmra.mrb[0].mxu0 %v438
        %v914 = vpop.f32.mrb[0].mxu0
        %v915 = vadd.f32 %v786, %v914
        %v916 = vpop.f32.mrb[0].mxu0
        %917 = vmatprep.mubr.f32.mxu0 0.0
        %918 = vmatmul.mubr.f32.gmra.mrb[0].mxu0 %v441
        %v919 = vpop.f32.mrb[0].mxu0
        %v920 = vadd.f32 %v786, %v919
        %v921 = vpop.f32.mrb[0].mxu0
        %922 = vmatprep.mubr.f32.mxu0 0.0
        %923 = vmatmul.mubr.f32.gmra.mrb[0].mxu0 %v444
        %v924 = vpop.f32.mrb[0].mxu0
        %v925 = vadd.f32 %v786, %v924
        %v926 = vpop.f32.mrb[0].mxu0
        %927 = vmatprep.mubr.f32.mxu0 0.0
        %928 = vmatmul.mubr.f32.gmra.mrb[0].mxu0 %v447
        %v929 = vpop.f32.mrb[0].mxu0
        %v930 = vadd.f32 %v786, %v929
        %v931 = vpop.f32.mrb[0].mxu0
        %932 = vdwg.mxu0
        %v933 = vld [vmem:[%s7] sm:$0xff]
        %v934 = vld [vmem:[%s7 + $0x8] sm:$0xff]
        %v935 = vld [vmem:[%s7 + $0x10] sm:$0xff]
        %v936 = vld [vmem:[%s7 + $0x18] sm:$0xff]
        %v937 = vld [vmem:[%s7 + $0x20] sm:$0xff]
        %v938 = vld [vmem:[%s7 + $0x28] sm:$0xff]
        %v939 = vld [vmem:[%s7 + $0x30] sm:$0xff]
        %v940 = vld [vmem:[%s7 + $0x38] sm:$0xff]
        %v941 = vld [vmem:[%s7 + $0x40] sm:$0xff]
        %v942 = vld [vmem:[%s7 + $0x48] sm:$0xff]
        %v943 = vld [vmem:[%s7 + $0x50] sm:$0xff]
        %v944 = vld [vmem:[%s7 + $0x58] sm:$0xff]
        %v945 = vld [vmem:[%s7 + $0x60] sm:$0xff]
        %v946 = vld [vmem:[%s7 + $0x68] sm:$0xff]
        %v947 = vld [vmem:[%s7 + $0x70] sm:$0xff]
        %v948 = vld [vmem:[%s7 + $0x78] sm:$0xff]
        %v949 = vld [vmem:[%s8] sm:$0x1]
        %v951 = vlaneseq
        %v952 = vshrl.u32 %v951, 7
        %v953 = vsub.s32 0, %v952
        %v954 = vrot.slane %v949, %v953
        %956 = vmatprep.subr.mxu0 0.0
        %957 = vmatpush1.msra.mxu0 %v933
        %958 = vmatprep.subr.mxu0 0.0
        %959 = vmatpush1.msra.mxu0 %v934
        %960 = vmatprep.subr.mxu0 0.0
        %961 = vmatpush1.msra.mxu0 %v935
        %962 = vmatprep.subr.mxu0 0.0
        %963 = vmatpush1.msra.mxu0 %v936
        %964 = vmatprep.subr.mxu0 0.0
        %965 = vmatpush1.msra.mxu0 %v937
        %966 = vmatprep.subr.mxu0 0.0
        %967 = vmatpush1.msra.mxu0 %v938
        %968 = vmatprep.subr.mxu0 0.0
        %969 = vmatpush1.msra.mxu0 %v939
        %970 = vmatprep.subr.mxu0 0.0
        %971 = vmatpush1.msra.mxu0 %v940
        %972 = vmatprep.subr.mxu0 0.0
        %973 = vmatpush1.msra.mxu0 %v941
        %974 = vmatprep.subr.mxu0 0.0
        %975 = vmatpush1.msra.mxu0 %v942
        %976 = vmatprep.subr.mxu0 0.0
        %977 = vmatpush1.msra.mxu0 %v943
        %978 = vmatprep.subr.mxu0 0.0
        %979 = vmatpush1.msra.mxu0 %v944
        %980 = vmatprep.subr.mxu0 0.0
        %981 = vmatpush1.msra.mxu0 %v945
        %982 = vmatprep.subr.mxu0 0.0
        %983 = vmatpush1.msra.mxu0 %v946
        %984 = vmatprep.subr.mxu0 0.0
        %985 = vmatpush1.msra.mxu0 %v947
        %986 = vmatprep.subr.mxu0 0.0
        %987 = vmatpush1.msra.mxu0 %v948
        %988 = vmatprep.subr.mxu0 0.0
        %989 = vmatpush1.msra.mxu0 0.0
        %990 = vmatprep.subr.mxu0 0.0
        %991 = vmatpush1.msra.mxu0 0.0
        %992 = vmatprep.subr.mxu0 0.0
        %993 = vmatpush1.msra.mxu0 0.0
        %994 = vmatprep.subr.mxu0 0.0
        %995 = vmatpush1.msra.mxu0 0.0
        %996 = vmatprep.subr.mxu0 0.0
        %997 = vmatpush1.msra.mxu0 0.0
        %998 = vmatprep.subr.mxu0 0.0
        %999 = vmatpush1.msra.mxu0 0.0
        %1000 = vmatprep.subr.mxu0 0.0
        %1001 = vmatpush1.msra.mxu0 0.0
        %1002 = vmatprep.subr.mxu0 0.0
        %1003 = vmatpush1.msra.mxu0 0.0
        %1004 = vmatprep.subr.mxu0 0.0
        %1005 = vmatpush1.msra.mxu0 0.0
        %1006 = vmatprep.subr.mxu0 0.0
        %1007 = vmatpush1.msra.mxu0 0.0
        %1008 = vmatprep.subr.mxu0 0.0
        %1009 = vmatpush1.msra.mxu0 0.0
        %1010 = vmatprep.subr.mxu0 0.0
        %1011 = vmatpush1.msra.mxu0 0.0
        %1012 = vmatprep.subr.mxu0 0.0
        %1013 = vmatpush1.msra.mxu0 0.0
        %1014 = vmatprep.subr.mxu0 0.0
        %1015 = vmatpush1.msra.mxu0 0.0
        %1016 = vmatprep.subr.mxu0 0.0
        %1017 = vmatpush1.msra.mxu0 0.0
        %1018 = vmatprep.subr.mxu0 0.0
        %1019 = vmatpush1.msra.mxu0 0.0
        %1020 = vmatprep.mubr.f32.mxu0 0.0
        %1021 = vmatmul.mubr.f32.gmra.mrb[0].mxu0 %v855
        %v1022 = vpop.f32.mrb[0].mxu0
        %v1023 = vadd.f32 %v954, %v1022
        %v1024 = vpop.f32.mrb[0].mxu0
        %1025 = vmatprep.mubr.f32.mxu0 0.0
        %1026 = vmatmul.mubr.f32.gmra.mrb[0].mxu0 %v860
        %v1027 = vpop.f32.mrb[0].mxu0
        %v1028 = vadd.f32 %v954, %v1027
        %v1029 = vpop.f32.mrb[0].mxu0
        %1030 = vmatprep.mubr.f32.mxu0 0.0
        %1031 = vmatmul.mubr.f32.gmra.mrb[0].mxu0 %v865
        %v1032 = vpop.f32.mrb[0].mxu0
        %v1033 = vadd.f32 %v954, %v1032
        %v1034 = vpop.f32.mrb[0].mxu0
        %1035 = vmatprep.mubr.f32.mxu0 0.0
        %1036 = vmatmul.mubr.f32.gmra.mrb[0].mxu0 %v870
        %v1037 = vpop.f32.mrb[0].mxu0
        %v1038 = vadd.f32 %v954, %v1037
        %v1039 = vpop.f32.mrb[0].mxu0
        %1040 = vmatprep.mubr.f32.mxu0 0.0
        %1041 = vmatmul.mubr.f32.gmra.mrb[0].mxu0 %v875
        %v1042 = vpop.f32.mrb[0].mxu0
        %v1043 = vadd.f32 %v954, %v1042
        %v1044 = vpop.f32.mrb[0].mxu0
        %1045 = vmatprep.mubr.f32.mxu0 0.0
        %1046 = vmatmul.mubr.f32.gmra.mrb[0].mxu0 %v880
        %v1047 = vpop.f32.mrb[0].mxu0
        %v1048 = vadd.f32 %v954, %v1047
        %v1049 = vpop.f32.mrb[0].mxu0
        %1050 = vmatprep.mubr.f32.mxu0 0.0
        %1051 = vmatmul.mubr.f32.gmra.mrb[0].mxu0 %v885
        %v1052 = vpop.f32.mrb[0].mxu0
        %v1053 = vadd.f32 %v954, %v1052
        %v1054 = vpop.f32.mrb[0].mxu0
        %1055 = vmatprep.mubr.f32.mxu0 0.0
        %1056 = vmatmul.mubr.f32.gmra.mrb[0].mxu0 %v890
        %v1057 = vpop.f32.mrb[0].mxu0
        %v1058 = vadd.f32 %v954, %v1057
        %v1059 = vpop.f32.mrb[0].mxu0
        %1060 = vmatprep.mubr.f32.mxu0 0.0
        %1061 = vmatmul.mubr.f32.gmra.mrb[0].mxu0 %v895
        %v1062 = vpop.f32.mrb[0].mxu0
        %v1063 = vadd.f32 %v954, %v1062
        %v1064 = vpop.f32.mrb[0].mxu0
        %1065 = vmatprep.mubr.f32.mxu0 0.0
        %1066 = vmatmul.mubr.f32.gmra.mrb[0].mxu0 %v900
        %v1067 = vpop.f32.mrb[0].mxu0
        %v1068 = vadd.f32 %v954, %v1067
        %v1069 = vpop.f32.mrb[0].mxu0
        %1070 = vmatprep.mubr.f32.mxu0 0.0
        %1071 = vmatmul.mubr.f32.gmra.mrb[0].mxu0 %v905
        %v1072 = vpop.f32.mrb[0].mxu0
        %v1073 = vadd.f32 %v954, %v1072
        %v1074 = vpop.f32.mrb[0].mxu0
        %1075 = vmatprep.mubr.f32.mxu0 0.0
        %1076 = vmatmul.mubr.f32.gmra.mrb[0].mxu0 %v910
        %v1077 = vpop.f32.mrb[0].mxu0
        %v1078 = vadd.f32 %v954, %v1077
        %v1079 = vpop.f32.mrb[0].mxu0
        %1080 = vmatprep.mubr.f32.mxu0 0.0
        %1081 = vmatmul.mubr.f32.gmra.mrb[0].mxu0 %v915
        %v1082 = vpop.f32.mrb[0].mxu0
        %v1083 = vadd.f32 %v954, %v1082
        %v1084 = vpop.f32.mrb[0].mxu0
        %1085 = vmatprep.mubr.f32.mxu0 0.0
        %1086 = vmatmul.mubr.f32.gmra.mrb[0].mxu0 %v920
        %v1087 = vpop.f32.mrb[0].mxu0
        %v1088 = vadd.f32 %v954, %v1087
        %v1089 = vpop.f32.mrb[0].mxu0
        %1090 = vmatprep.mubr.f32.mxu0 0.0
        %1091 = vmatmul.mubr.f32.gmra.mrb[0].mxu0 %v925
        %v1092 = vpop.f32.mrb[0].mxu0
        %v1093 = vadd.f32 %v954, %v1092
        %v1094 = vpop.f32.mrb[0].mxu0
        %1095 = vmatprep.mubr.f32.mxu0 0.0
        %1096 = vmatmul.mubr.f32.gmra.mrb[0].mxu0 %v930
        %v1097 = vpop.f32.mrb[0].mxu0
        %v1098 = vadd.f32 %v954, %v1097
        %v1099 = vpop.f32.mrb[0].mxu0
        %1100 = vdwg.mxu0
        %1101 = vst.msk [vmem:[%s361] sm:$0xff] %vm400, %v1023
        %1102 = vst.msk [vmem:[%s361 + $0x8] sm:$0xff] %vm400, %v1028
        %1103 = vst.msk [vmem:[%s361 + $0x10] sm:$0xff] %vm400, %v1033
        %1104 = vst.msk [vmem:[%s361 + $0x18] sm:$0xff] %vm400, %v1038
        %1105 = vst.msk [vmem:[%s361 + $0x20] sm:$0xff] %vm400, %v1043
        %1106 = vst.msk [vmem:[%s361 + $0x28] sm:$0xff] %vm400, %v1048
        %1107 = vst.msk [vmem:[%s361 + $0x30] sm:$0xff] %vm400, %v1053
        %1108 = vst.msk [vmem:[%s361 + $0x38] sm:$0xff] %vm400, %v1058
        %1109 = vst.msk [vmem:[%s361 + $0x40] sm:$0xff] %vm400, %v1063
        %1110 = vst.msk [vmem:[%s361 + $0x48] sm:$0xff] %vm400, %v1068
        %1111 = vst.msk [vmem:[%s361 + $0x50] sm:$0xff] %vm400, %v1073
        %1112 = vst.msk [vmem:[%s361 + $0x58] sm:$0xff] %vm400, %v1078
        %1113 = vst.msk [vmem:[%s361 + $0x60] sm:$0xff] %vm400, %v1083
        %1114 = vst.msk [vmem:[%s361 + $0x68] sm:$0xff] %vm400, %v1088
        %1115 = vst.msk [vmem:[%s361 + $0x70] sm:$0xff] %vm400, %v1093
        %1116 = vst.msk [vmem:[%s361 + $0x78] sm:$0xff] %vm400, %v1098
        %s1117 = smul.u32 16, %s25
        %p1118 = scmp.lt.s32.totalorder %s1117, 63
        %s1119 = scalar_select %p1118, %s1117, 63
        %s1120 = smul.addr %s1119, 8
        %s1121 = scalar_lea.vmem %s9, %s1120
        %s1122 = sand.u32 %s253, 1
        %s1123 = scalar_lea.sflag [#allocation3], %s1122
        %s1124 = sand.u32 %s253, 1
        %s1125 = smul.addr %s1124, 128
        %s1126 = scalar_lea.vmem [#allocation2], %s1125
        // Predicated region
        $region57: #{_lambda_.15} parent=55 // pred_check
          %p1127 = pneg %p237
        $region58: #{_lambda_.15} parent=55 // pred_check_branch
          %1129 = sbr.rel (%p1127) target = $region60
        $region59: #{_lambda_.15} parent=55 // pred_region
          %s1130 = smul.u32 16, %s25
        $region60: #{_lambda_.15} parent=55 // pred_fallthru
          _
        // Predicated region
        $region61: #{_lambda_.15} parent=55 // pred_check
          %p1131 = pneg %p263
        $region62: #{_lambda_.15} parent=55 // pred_check_branch
          %1133 = sbr.rel (%p1131) target = $region64
        $region63: #{_lambda_.15} parent=55 // pred_region
          %s1134 = smul.u32 16, %s25
          %s1136 = ssub.s32 2048, 2048
          %1137 = vsyncadd %s1123, %s1136
          %s1138 = smul.addr %s1134, 128
          %s1139 = scalar_lea.hbm %s10, %s1138
          %s1140 = sshll.u32 %s1126, 4
          %s1141 = int_to_ptr.vmem [resolvable:$true] %s1140
          %1146 = dma.vmem_to_hbm [thread:$0]  %s1141, 2048, %s1139, %s1123, 128, 128, 8
        $region64: #{_lambda_.15} parent=55 // pred_fallthru
          _
      $region56: #{_lambda_.15} parent=5 // pred_fallthru
        _
      %p1147 = scmp.le.s32.totalorder 2, %s20
      // Predicated region
      $region65: #{_lambda_.15} parent=5 // pred_check
        %p1148 = pneg %p1147
      $region66: #{_lambda_.15} parent=5 // pred_check_branch
        %1150 = sbr.rel (%p1148) target = $region68
      $region67: #{_lambda_.15} parent=5 // pred_region
        %s1151 = ssub.s32 %s20, 2
        // Predicated region
        $region69: #{_lambda_.15} parent=67 // pred_check
          %p1152 = pneg %p243
        $region70: #{_lambda_.15} parent=67 // pred_check_branch
          %1154 = sbr.rel (%p1152) target = $region72
        $region71: #{_lambda_.15} parent=67 // pred_region
          %s1155 = smul.u32 16, %s26
          %p1156 = scmp.lt.s32.totalorder %s1155, 63
          %s1157 = scalar_select %p1156, %s1155, 63
          %s1158 = smul.addr %s1157, 8
          %s1159 = scalar_lea.vmem %s9, %s1158
        $region72: #{_lambda_.15} parent=67 // pred_fallthru
          _
        // Predicated region
        $region73: #{_lambda_.15} parent=67 // pred_check
          %p1160 = pneg %p269
        $region74: #{_lambda_.15} parent=67 // pred_check_branch
          %1162 = sbr.rel (%p1160) target = $region76
        $region75: #{_lambda_.15} parent=67 // pred_region
          %s1163 = sand.u32 %s254, 1
          %s1164 = scalar_lea.sflag [#allocation3], %s1163
          %s1165 = sand.u32 %s254, 1
          %s1166 = smul.addr %s1165, 128
          %s1167 = scalar_lea.vmem [#allocation2], %s1166
          %1168 = dma.done %s1164, 2048
        $region76: #{_lambda_.15} parent=67 // pred_fallthru
          _
      $region68: #{_lambda_.15} parent=5 // pred_fallthru
        _
    $region6: #{_lambda_.15} parent=1 // loop_footer
      %s24 = sadd.s32 1, %s20
    $region7: #{_lambda_.15} parent=1 // loop_footer_branch
      %19 = sbr.rel target = $region3
    $region8: #{_lambda_.15} parent=1 // loop_exit
      _
    %1169 = vsyncpa [#allocation3], 1
    %s1170 = scalar_lea.sflag [#allocation3], 1
    %1171 = vsyncpa %s1170, 1

</llo_original>
